<compile_context>
chip_gen: v6e
topology: v6e:2x2x1
jax: 0.10.0
libtpu: 0.0.40
codegen_flags: <defaults>
</compile_context>

<pallas_src>
import jax
import jax.numpy as jnp
from jax.experimental import pallas as pl
from jax.experimental.pallas import tpu as pltpu

BN_EPS = 1e-5

_NN = (((1,), (0,)), ((), ()))   # A @ B
_NT = (((1,), (1,)), ((), ()))   # A @ B.T  (contract against transposed RHS)


def _split_dot(a_f32, b01_bf16, dims):
    """f32-data x {0,1}-matrix matmul as 2 single-pass bf16 MXU matmuls.

    `a` is split into bf16 hi/lo parts (hi + lo carries ~16 mantissa bits of a);
    the 0/1 matrix is exact in bf16, so summing the two passes reproduces the
    f32 product to ~1e-5 relative accuracy at ~1/3 of the MXU passes that
    Precision.HIGHEST would spend on f32 x f32 operands.
    """
    f32 = jnp.float32
    a_hi = a_f32.astype(jnp.bfloat16)
    a_lo = (a_f32 - a_hi.astype(f32)).astype(jnp.bfloat16)
    out = jax.lax.dot_general(a_hi, b01_bf16, dims, preferred_element_type=f32)
    return out + jax.lax.dot_general(a_lo, b01_bf16, dims,
                                     preferred_element_type=f32)


def _coordatt_kernel(x_ref, ph_ref, pw_ref, w1h_ref, w1w_ref, t_ref,
                     wh_ref, bh_ref, ww_ref, bw_ref, out_ref):
    """One grid step = one (rows, HW) row-block, rows = batch_tile * C.

    All 1x1-conv weights are block-diagonal per image, so everything below is
    plain 2-D matmuls — no batch loop, no relayout of the big tensors.
    """
    f32 = jnp.float32
    hi = jax.lax.Precision.HIGHEST

    x = x_ref[...]            # (rows, HW) f32, lane-dense spatial axis
    ph = ph_ref[...]          # (HW, H) bf16 0/1: column h selects s // W == h
    pw = pw_ref[...]          # (HW, W) bf16 0/1: column w selects s %  W == w

    # ---- coordinate pooling (sum over W / over H) as MXU matmuls ------------
    sum_h = _split_dot(x, ph, _NN)                                  # (rows, H)
    sum_w = _split_dot(x, pw, _NN)                                  # (rows, W)

    # ---- conv1 (+ folded bias / eval-BN / 1/W,1/H pooling scale) ------------
    y_h = jnp.dot(w1h_ref[...], sum_h, precision=hi,
                  preferred_element_type=f32) + t_ref[...]          # (rows_m, H)
    y_w = jnp.dot(w1w_ref[...], sum_w, precision=hi,
                  preferred_element_type=f32) + t_ref[...]          # (rows_m, W)

    # h_swish: v * relu6(v + 3) / 6
    y_h = y_h * jnp.clip(y_h + 3.0, 0.0, 6.0) * (1.0 / 6.0)
    y_w = y_w * jnp.clip(y_w + 3.0, 0.0, 6.0) * (1.0 / 6.0)

    # ---- conv_h / conv_w (1x1) + sigmoid ------------------------------------
    a_h = jax.nn.sigmoid(jnp.dot(wh_ref[...], y_h, precision=hi,
                                 preferred_element_type=f32) + bh_ref[...])
    a_w = jax.nn.sigmoid(jnp.dot(ww_ref[...], y_w, precision=hi,
                                 preferred_element_type=f32) + bw_ref[...])

    # ---- broadcast back to (rows, HW) via transposed-RHS matmuls; only one
    #      full-size map is live at a time.  Multiply order matches PyTorch:
    #      (identity * a_w) * a_h.
    a_w_full = _split_dot(a_w, pw, _NT)                             # (rows, HW)
    tmp = x * a_w_full
    a_h_full = _split_dot(a_h, ph, _NT)                             # (rows, HW)
    out_ref[...] = (tmp * a_h_full).astype(out_ref.dtype)


def _block_diag(m, bt):
    """bt copies of m along the diagonal: (r, c) -> (bt*r, bt*c)."""
    if bt == 1:
        return m
    r, c = m.shape
    eye = jnp.eye(bt, dtype=m.dtype)
    return (eye[:, None, :, None] * m[None, :, None, :]).reshape(bt * r, bt * c)


def _vmem_limit_bytes():
    """Generation-aware scoped-VMEM limit, leaving Mosaic scratch headroom."""
    cap = 128 * 1024 * 1024
    try:
        cap = int(getattr(pltpu.get_tpu_info(), "vmem_capacity_bytes", cap))
    except Exception:
        pass
    # ~40 MiB on 64-MiB-VMEM parts (v7x), ~80 MiB on 128-MiB parts (v5e/v6e).
    return (40 if cap <= 64 * 1024 * 1024 else 80) * 1024 * 1024


def _choose_batch_tile(n, c, hw, itemsize, mip, x_budget_bytes):
    """Rows-per-grid-step = bt * C.  Preferences, in order:
       1. x block fits its share of the VMEM budget,
       2. even grid-step count (or a single step) so v7x's 2 TCs split evenly,
       3. sublane-aligned rows (bt*C % 8 == 0) — no padded f32 tiles,
       4. at least 2 grid steps so the DMA pipeline overlaps,
       5. block size as close to ~2 MB as possible (mem-bound sweet spot).
    bt is also capped so the block-diagonal 1x1-conv matmuls (HIGHEST, O(bt^2))
    stay negligible next to the pooling/broadcast matmuls."""
    max_bt_mxu = max(1, hw // (4 * mip))
    cands = [bt for bt in range(1, n + 1)
             if n % bt == 0 and (bt == 1 or bt <= max_bt_mxu)]

    def score(bt):
        steps = n // bt
        blk = bt * c * hw * itemsize
        return (
            blk <= x_budget_bytes,
            (steps % 2 == 0) or steps == 1,
            (bt * c) % 8 == 0,
            steps >= 2,
            -abs(blk - (2 << 20)),
        )

    return max(cands, key=score)


def coord_att(x, params):
    """x: (N, C, H, W) float32.  params: raw CoordAtt weights (see init_params).

    Eval-mode BatchNorm semantics (running stats folded into conv1).
    For best efficiency C should be a multiple of 8 (f32 sublane); other C
    still run correctly but pad the row tiles."""
    N, C, H, W = x.shape
    HW = H * W
    f32 = jnp.float32
    w1 = params["w1"]                       # (mip, C)
    mip = w1.shape[0]
    oup = params["wh"].shape[0]
    assert oup == C, "CoordAtt broadcast requires oup == inp"

    # ---- fold conv1 bias + eval-mode BN + 1/W (resp. 1/H) pooling scale -----
    s = params["gamma"] * jax.lax.rsqrt(params["var"] + BN_EPS)     # (mip, 1)
    w1h = ((s / W) * w1).astype(f32)                                # (mip, C)
    w1w = ((s / H) * w1).astype(f32)
    t = ((params["b1"] - params["mean"]) * s + params["beta"]).astype(f32)

    # ---- bf16 0/1 pooling matrices (exact in bf16; also reused transposed
    #      for the attention broadcast) ---------------------------------------
    s_idx = jnp.arange(HW, dtype=jnp.int32)
    ph = (s_idx[:, None] // W == jnp.arange(H, dtype=jnp.int32)[None, :]
          ).astype(jnp.bfloat16)                                    # (HW, H)
    pw = (s_idx[:, None] % W == jnp.arange(W, dtype=jnp.int32)[None, :]
          ).astype(jnp.bfloat16)                                    # (HW, W)

    # ---- batch tile & VMEM budget --------------------------------------------
    vmem_limit = _vmem_limit_bytes()
    const_bytes = 2 * (ph.size + pw.size) * 2 + (1 << 20)  # worst case: 2 bufs
    # ~8 live copies of the x block: 2x in, 2x out (double-buffered), hi/lo
    # split, a_*_full / tmp temporaries.
    x_budget = max((vmem_limit - const_bytes) // 8, 128 * 1024)
    bt = _choose_batch_tile(N, C, HW, x.dtype.itemsize, mip, x_budget)

    G = N // bt
    R = bt * C            # rows per grid step

    x3 = x.reshape(G, R, HW)          # contiguous, lane-dense -> free reshape

    # Per-image 1x1-conv weights become block-diagonal over the batch tile.
    w1h_b = _block_diag(w1h, bt)                          # (bt*mip, R)
    w1w_b = _block_diag(w1w, bt)
    wh_b = _block_diag(params["wh"].astype(f32), bt)      # (R, bt*mip)
    ww_b = _block_diag(params["ww"].astype(f32), bt)
    t_b = jnp.tile(t, (bt, 1))                            # (bt*mip, 1)
    bh_b = jnp.tile(params["bh"].astype(f32), (bt, 1))    # (R, 1)
    bw_b = jnp.tile(params["bw"].astype(f32), (bt, 1))

    consts = (ph, pw, w1h_b, w1w_b, t_b, wh_b, bh_b, ww_b, bw_b)

    def run(single_buffer_consts):
        def cspec(arr):
            idx = lambda g, nd=arr.ndim: (0,) * nd
            if single_buffer_consts:
                return pl.BlockSpec(arr.shape, idx, pipeline_mode=pl.Buffered(1))
            return pl.BlockSpec(arr.shape, idx)

        grid_spec = pltpu.PrefetchScalarGridSpec(
            num_scalar_prefetch=0,
            grid=(G,),
            in_specs=[pl.BlockSpec((None, R, HW), lambda g: (g, 0, 0))]
                     + [cspec(a) for a in consts],
            out_specs=pl.BlockSpec((None, R, HW), lambda g: (g, 0, 0)),
        )
        return pl.pallas_call(
            _coordatt_kernel,
            out_shape=jax.ShapeDtypeStruct((G, R, HW), x.dtype),
            grid_spec=grid_spec,
            compiler_params=pltpu.CompilerParams(
                dimension_semantics=("parallel",),
                vmem_limit_bytes=vmem_limit),
        )(x3, *consts)

    try:
        # Grid-invariant constants: single-buffer them to save VMEM (v7x).
        out3 = run(single_buffer_consts=True)
    except Exception:
        # Fallback if this Pallas build rejects pipeline_mode / Buffered(1).
        out3 = run(single_buffer_consts=False)

    return out3.reshape(N, C, H, W)


def init_params(key, inp, oup, reduction=32):
    mip = max(8, inp // reduction)
    ks = jax.random.split(key, 6)
    scale = 0.1
    return {
        "w1": scale * jax.random.normal(ks[0], (mip, inp), jnp.float32),
        "b1": scale * jax.random.normal(ks[1], (mip, 1), jnp.float32),
        "gamma": jnp.ones((mip, 1), jnp.float32),
        "beta": jnp.zeros((mip, 1), jnp.float32),
        "mean": jnp.zeros((mip, 1), jnp.float32),
        "var": jnp.ones((mip, 1), jnp.float32),
        "wh": scale * jax.random.normal(ks[2], (oup, mip), jnp.float32),
        "bh": scale * jax.random.normal(ks[3], (oup, 1), jnp.float32),
        "ww": scale * jax.random.normal(ks[4], (oup, mip), jnp.float32),
        "bw": scale * jax.random.normal(ks[5], (oup, 1), jnp.float32),
    }


def coord_att_reference(x, p):
    """Plain-JAX reference matching the PyTorch forward (eval-mode BN)."""
    hi = jax.lax.Precision.HIGHEST
    N, C, H, W = x.shape
    x_h = jnp.mean(x, axis=3)                               # (N, C, H)
    x_w = jnp.mean(x, axis=2)                               # (N, C, W)
    y = jnp.concatenate([x_h, x_w], axis=2)                 # (N, C, H+W)
    y = jnp.einsum("mc,ncs->nms", p["w1"], y, precision=hi) + p["b1"][None]
    y = (y - p["mean"][None]) / jnp.sqrt(p["var"][None] + BN_EPS) \
        * p["gamma"][None] + p["beta"][None]
    y = y * jnp.clip(y + 3.0, 0.0, 6.0) / 6.0
    y_h, y_w = y[:, :, :H], y[:, :, H:]
    a_h = jax.nn.sigmoid(
        jnp.einsum("om,nms->nos", p["wh"], y_h, precision=hi) + p["bh"][None])
    a_w = jax.nn.sigmoid(
        jnp.einsum("om,nms->nos", p["ww"], y_w, precision=hi) + p["bw"][None])
    return x * a_w[:, :, None, :] * a_h[:, :, :, None]


if __name__ == "__main__":
    N, C, H, W = 2, 4, 16, 16
    key = jax.random.PRNGKey(0)
    kx, kp = jax.random.split(key)
    x = jax.random.normal(kx, (N, C, H, W), jnp.float32)
    params = init_params(kp, inp=C, oup=C, reduction=32)

    out = jax.block_until_ready(coord_att(x, params))
    ref = coord_att_reference(x, params)

    assert out.shape == (N, C, H, W)
    # The 2-pass bf16 hi/lo data split keeps ~16 mantissa bits; worst-case
    # output error for this op is ~1e-4 * |x|, so 2e-4 is a safe tight bound.
    err = float(jnp.max(jnp.abs(out - ref)))
    assert jnp.allclose(out, ref, atol=2e-4, rtol=2e-4), err
    print("KERNEL_OK")
</pallas_src>

<mosaic_0001>
module attributes {stable_mosaic.version = 11 : i64} {
  func.func @_coordatt_kernel(%arg0: i32, %arg1: memref<1x8x256xf32, #tpu.memory_space<vmem>>, %arg2: memref<256x16xbf16, #tpu.memory_space<vmem>>, %arg3: memref<256x16xbf16, #tpu.memory_space<vmem>>, %arg4: memref<16x8xf32, #tpu.memory_space<vmem>>, %arg5: memref<16x8xf32, #tpu.memory_space<vmem>>, %arg6: memref<16x1xf32, #tpu.memory_space<vmem>>, %arg7: memref<8x16xf32, #tpu.memory_space<vmem>>, %arg8: memref<8x1xf32, #tpu.memory_space<vmem>>, %arg9: memref<8x16xf32, #tpu.memory_space<vmem>>, %arg10: memref<8x1xf32, #tpu.memory_space<vmem>>, %arg11: memref<1x8x256xf32, #tpu.memory_space<vmem>>) attributes {dimension_semantics = [#tpu.dimension_semantics<parallel>], iteration_bounds = array<i64: 1>, scalar_prefetch = 0 : i64, scratch_operands = 0 : i64, tpu.core_type = #tpu.core_type<tc>, window_params = [{transform_indices = @transform_0, window_bounds = array<i64: 1, 8, 256>}, {pipeline_mode = #tpu.pipeline_mode<synchronous>, transform_indices = @transform_1, window_bounds = array<i64: 256, 16>}, {pipeline_mode = #tpu.pipeline_mode<synchronous>, transform_indices = @transform_2, window_bounds = array<i64: 256, 16>}, {pipeline_mode = #tpu.pipeline_mode<synchronous>, transform_indices = @transform_3, window_bounds = array<i64: 16, 8>}, {pipeline_mode = #tpu.pipeline_mode<synchronous>, transform_indices = @transform_4, window_bounds = array<i64: 16, 8>}, {pipeline_mode = #tpu.pipeline_mode<synchronous>, transform_indices = @transform_5, window_bounds = array<i64: 16, 1>}, {pipeline_mode = #tpu.pipeline_mode<synchronous>, transform_indices = @transform_6, window_bounds = array<i64: 8, 16>}, {pipeline_mode = #tpu.pipeline_mode<synchronous>, transform_indices = @transform_7, window_bounds = array<i64: 8, 1>}, {pipeline_mode = #tpu.pipeline_mode<synchronous>, transform_indices = @transform_8, window_bounds = array<i64: 8, 16>}, {pipeline_mode = #tpu.pipeline_mode<synchronous>, transform_indices = @transform_9, window_bounds = array<i64: 8, 1>}, {transform_indices = @transform_10, window_bounds = array<i64: 1, 8, 256>}]} {
    %c0 = arith.constant 0 : index
    %c0_0 = arith.constant 0 : index
    %c0_1 = arith.constant 0 : index
    %0 = vector.load %arg1[%c0, %c0_0, %c0_1] : memref<1x8x256xf32, #tpu.memory_space<vmem>>, vector<1x8x256xf32>
    %1 = vector.shape_cast %0 : vector<1x8x256xf32> to vector<8x256xf32>
    %c0_2 = arith.constant 0 : index
    %c0_3 = arith.constant 0 : index
    %2 = vector.load %arg2[%c0_2, %c0_3] : memref<256x16xbf16, #tpu.memory_space<vmem>>, vector<256x16xbf16>
    %c0_4 = arith.constant 0 : index
    %c0_5 = arith.constant 0 : index
    %3 = vector.load %arg3[%c0_4, %c0_5] : memref<256x16xbf16, #tpu.memory_space<vmem>>, vector<256x16xbf16>
    %4 = arith.truncf %1 : vector<8x256xf32> to vector<8x256xbf16>
    %5 = arith.extf %4 : vector<8x256xbf16> to vector<8x256xf32>
    %6 = arith.subf %1, %5 : vector<8x256xf32>
    %7 = arith.truncf %6 : vector<8x256xf32> to vector<8x256xbf16>
    %cst = arith.constant dense<0.000000e+00> : vector<8x16xf32>
    %8 = tpu.matmul %4, %2, %cst {dimension_numbers = #tpu.dot_dimension_numbers<[1], [0], [0], [1], [0, 0, 1, 1], [], []>} : vector<8x256xbf16>, vector<256x16xbf16>, vector<8x16xf32> -> vector<8x16xf32>
    %cst_6 = arith.constant dense<0.000000e+00> : vector<8x16xf32>
    %9 = tpu.matmul %7, %2, %cst_6 {dimension_numbers = #tpu.dot_dimension_numbers<[1], [0], [0], [1], [0, 0, 1, 1], [], []>} : vector<8x256xbf16>, vector<256x16xbf16>, vector<8x16xf32> -> vector<8x16xf32>
    %10 = arith.addf %8, %9 : vector<8x16xf32>
    %11 = arith.truncf %1 : vector<8x256xf32> to vector<8x256xbf16>
    %12 = arith.extf %11 : vector<8x256xbf16> to vector<8x256xf32>
    %13 = arith.subf %1, %12 : vector<8x256xf32>
    %14 = arith.truncf %13 : vector<8x256xf32> to vector<8x256xbf16>
    %cst_7 = arith.constant dense<0.000000e+00> : vector<8x16xf32>
    %15 = tpu.matmul %11, %3, %cst_7 {dimension_numbers = #tpu.dot_dimension_numbers<[1], [0], [0], [1], [0, 0, 1, 1], [], []>} : vector<8x256xbf16>, vector<256x16xbf16>, vector<8x16xf32> -> vector<8x16xf32>
    %cst_8 = arith.constant dense<0.000000e+00> : vector<8x16xf32>
    %16 = tpu.matmul %14, %3, %cst_8 {dimension_numbers = #tpu.dot_dimension_numbers<[1], [0], [0], [1], [0, 0, 1, 1], [], []>} : vector<8x256xbf16>, vector<256x16xbf16>, vector<8x16xf32> -> vector<8x16xf32>
    %17 = arith.addf %15, %16 : vector<8x16xf32>
    %c0_9 = arith.constant 0 : index
    %c0_10 = arith.constant 0 : index
    %18 = vector.load %arg4[%c0_9, %c0_10] : memref<16x8xf32, #tpu.memory_space<vmem>>, vector<16x8xf32>
    %cst_11 = arith.constant dense<0.000000e+00> : vector<16x16xf32>
    %19 = tpu.matmul %18, %10, %cst_11 {dimension_numbers = #tpu.dot_dimension_numbers<[1], [0], [0], [1], [0, 0, 1, 1], [], []>, precision = #tpu.contract_precision<fp32>} : vector<16x8xf32>, vector<8x16xf32>, vector<16x16xf32> -> vector<16x16xf32>
    %c0_12 = arith.constant 0 : index
    %c0_13 = arith.constant 0 : index
    %20 = vector.load %arg6[%c0_12, %c0_13] : memref<16x1xf32, #tpu.memory_space<vmem>>, vector<16x1xf32>
    %21 = vector.broadcast %20 : vector<16x1xf32> to vector<16x16xf32>
    %22 = arith.addf %19, %21 : vector<16x16xf32>
    %c0_14 = arith.constant 0 : index
    %c0_15 = arith.constant 0 : index
    %23 = vector.load %arg5[%c0_14, %c0_15] : memref<16x8xf32, #tpu.memory_space<vmem>>, vector<16x8xf32>
    %cst_16 = arith.constant dense<0.000000e+00> : vector<16x16xf32>
    %24 = tpu.matmul %23, %17, %cst_16 {dimension_numbers = #tpu.dot_dimension_numbers<[1], [0], [0], [1], [0, 0, 1, 1], [], []>, precision = #tpu.contract_precision<fp32>} : vector<16x8xf32>, vector<8x16xf32>, vector<16x16xf32> -> vector<16x16xf32>
    %c0_17 = arith.constant 0 : index
    %c0_18 = arith.constant 0 : index
    %25 = vector.load %arg6[%c0_17, %c0_18] : memref<16x1xf32, #tpu.memory_space<vmem>>, vector<16x1xf32>
    %26 = vector.broadcast %25 : vector<16x1xf32> to vector<16x16xf32>
    %27 = arith.addf %24, %26 : vector<16x16xf32>
    %cst_19 = arith.constant 3.000000e+00 : f32
    %28 = vector.broadcast %cst_19 : f32 to vector<16x16xf32>
    %29 = arith.addf %22, %28 : vector<16x16xf32>
    %cst_20 = arith.constant 0.000000e+00 : f32
    %cst_21 = arith.constant 6.000000e+00 : f32
    %30 = vector.broadcast %cst_20 : f32 to vector<16x16xf32>
    %31 = arith.maximumf %30, %29 : vector<16x16xf32>
    %32 = vector.broadcast %cst_21 : f32 to vector<16x16xf32>
    %33 = arith.minimumf %32, %31 : vector<16x16xf32>
    %34 = arith.mulf %22, %33 : vector<16x16xf32>
    %cst_22 = arith.constant 0.166666672 : f32
    %35 = vector.broadcast %cst_22 : f32 to vector<16x16xf32>
    %36 = arith.mulf %34, %35 : vector<16x16xf32>
    %cst_23 = arith.constant 3.000000e+00 : f32
    %37 = vector.broadcast %cst_23 : f32 to vector<16x16xf32>
    %38 = arith.addf %27, %37 : vector<16x16xf32>
    %cst_24 = arith.constant 0.000000e+00 : f32
    %cst_25 = arith.constant 6.000000e+00 : f32
    %39 = vector.broadcast %cst_24 : f32 to vector<16x16xf32>
    %40 = arith.maximumf %39, %38 : vector<16x16xf32>
    %41 = vector.broadcast %cst_25 : f32 to vector<16x16xf32>
    %42 = arith.minimumf %41, %40 : vector<16x16xf32>
    %43 = arith.mulf %27, %42 : vector<16x16xf32>
    %cst_26 = arith.constant 0.166666672 : f32
    %44 = vector.broadcast %cst_26 : f32 to vector<16x16xf32>
    %45 = arith.mulf %43, %44 : vector<16x16xf32>
    %c0_27 = arith.constant 0 : index
    %c0_28 = arith.constant 0 : index
    %46 = vector.load %arg7[%c0_27, %c0_28] : memref<8x16xf32, #tpu.memory_space<vmem>>, vector<8x16xf32>
    %cst_29 = arith.constant dense<0.000000e+00> : vector<8x16xf32>
    %47 = tpu.matmul %46, %36, %cst_29 {dimension_numbers = #tpu.dot_dimension_numbers<[1], [0], [0], [1], [0, 0, 1, 1], [], []>, precision = #tpu.contract_precision<fp32>} : vector<8x16xf32>, vector<16x16xf32>, vector<8x16xf32> -> vector<8x16xf32>
    %c0_30 = arith.constant 0 : index
    %c0_31 = arith.constant 0 : index
    %48 = vector.load %arg8[%c0_30, %c0_31] : memref<8x1xf32, #tpu.memory_space<vmem>>, vector<8x1xf32>
    %49 = vector.broadcast %48 : vector<8x1xf32> to vector<8x16xf32>
    %50 = arith.addf %47, %49 : vector<8x16xf32>
    %51 = arith.negf %50 : vector<8x16xf32>
    %52 = math.exp %51 : vector<8x16xf32>
    %cst_32 = arith.constant 1.000000e+00 : f32
    %53 = vector.broadcast %cst_32 : f32 to vector<8x16xf32>
    %54 = arith.addf %53, %52 : vector<8x16xf32>
    %55 = arith.divf %53, %54 : vector<8x16xf32>
    %c0_33 = arith.constant 0 : index
    %c0_34 = arith.constant 0 : index
    %56 = vector.load %arg9[%c0_33, %c0_34] : memref<8x16xf32, #tpu.memory_space<vmem>>, vector<8x16xf32>
    %cst_35 = arith.constant dense<0.000000e+00> : vector<8x16xf32>
    %57 = tpu.matmul %56, %45, %cst_35 {dimension_numbers = #tpu.dot_dimension_numbers<[1], [0], [0], [1], [0, 0, 1, 1], [], []>, precision = #tpu.contract_precision<fp32>} : vector<8x16xf32>, vector<16x16xf32>, vector<8x16xf32> -> vector<8x16xf32>
    %c0_36 = arith.constant 0 : index
    %c0_37 = arith.constant 0 : index
    %58 = vector.load %arg10[%c0_36, %c0_37] : memref<8x1xf32, #tpu.memory_space<vmem>>, vector<8x1xf32>
    %59 = vector.broadcast %58 : vector<8x1xf32> to vector<8x16xf32>
    %60 = arith.addf %57, %59 : vector<8x16xf32>
    %61 = arith.negf %60 : vector<8x16xf32>
    %62 = math.exp %61 : vector<8x16xf32>
    %cst_38 = arith.constant 1.000000e+00 : f32
    %63 = vector.broadcast %cst_38 : f32 to vector<8x16xf32>
    %64 = arith.addf %63, %62 : vector<8x16xf32>
    %65 = arith.divf %63, %64 : vector<8x16xf32>
    %66 = arith.truncf %65 : vector<8x16xf32> to vector<8x16xbf16>
    %67 = arith.extf %66 : vector<8x16xbf16> to vector<8x16xf32>
    %68 = arith.subf %65, %67 : vector<8x16xf32>
    %69 = arith.truncf %68 : vector<8x16xf32> to vector<8x16xbf16>
    %cst_39 = arith.constant dense<0.000000e+00> : vector<8x256xf32>
    %70 = tpu.matmul %66, %3, %cst_39 {dimension_numbers = #tpu.dot_dimension_numbers<[1], [1], [0], [0], [0, 0, 1, 0], [], []>} : vector<8x16xbf16>, vector<256x16xbf16>, vector<8x256xf32> -> vector<8x256xf32>
    %cst_40 = arith.constant dense<0.000000e+00> : vector<8x256xf32>
    %71 = tpu.matmul %69, %3, %cst_40 {dimension_numbers = #tpu.dot_dimension_numbers<[1], [1], [0], [0], [0, 0, 1, 0], [], []>} : vector<8x16xbf16>, vector<256x16xbf16>, vector<8x256xf32> -> vector<8x256xf32>
    %72 = arith.addf %70, %71 : vector<8x256xf32>
    %73 = arith.mulf %1, %72 : vector<8x256xf32>
    %74 = arith.truncf %55 : vector<8x16xf32> to vector<8x16xbf16>
    %75 = arith.extf %74 : vector<8x16xbf16> to vector<8x16xf32>
    %76 = arith.subf %55, %75 : vector<8x16xf32>
    %77 = arith.truncf %76 : vector<8x16xf32> to vector<8x16xbf16>
    %cst_41 = arith.constant dense<0.000000e+00> : vector<8x256xf32>
    %78 = tpu.matmul %74, %2, %cst_41 {dimension_numbers = #tpu.dot_dimension_numbers<[1], [1], [0], [0], [0, 0, 1, 0], [], []>} : vector<8x16xbf16>, vector<256x16xbf16>, vector<8x256xf32> -> vector<8x256xf32>
    %cst_42 = arith.constant dense<0.000000e+00> : vector<8x256xf32>
    %79 = tpu.matmul %77, %2, %cst_42 {dimension_numbers = #tpu.dot_dimension_numbers<[1], [1], [0], [0], [0, 0, 1, 0], [], []>} : vector<8x16xbf16>, vector<256x16xbf16>, vector<8x256xf32> -> vector<8x256xf32>
    %80 = arith.addf %78, %79 : vector<8x256xf32>
    %81 = arith.mulf %73, %80 : vector<8x256xf32>
    %c0_43 = arith.constant 0 : index
    %c0_44 = arith.constant 0 : index
    %c0_45 = arith.constant 0 : index
    %82 = vector.load %arg11[%c0_43, %c0_44, %c0_45] : memref<1x8x256xf32, #tpu.memory_space<vmem>>, vector<1x8x256xf32>
    %83 = vector.shape_cast %82 : vector<1x8x256xf32> to vector<8x256xf32>
    %84 = vector.shape_cast %81 : vector<8x256xf32> to vector<1x8x256xf32>
    tpu.vector_store %arg11[%c0_43, %c0_44, %c0_45], %84 {strides = array<i32>} : memref<1x8x256xf32, #tpu.memory_space<vmem>>, vector<1x8x256xf32>,
    return
  }
  func.func @transform_0(%arg0: i32) -> (i32, i32, i32) {
    %c0_i32 = arith.constant 0 : i32
    %c0_i32_0 = arith.constant 0 : i32
    %c0_i32_1 = arith.constant 0 : i32
    return %arg0, %c0_i32, %c0_i32_0 : i32, i32, i32
  }
  func.func @transform_1(%arg0: i32) -> (i32, i32) {
    %c0_i32 = arith.constant 0 : i32
    %c0_i32_0 = arith.constant 0 : i32
    %c0_i32_1 = arith.constant 0 : i32
    return %c0_i32, %c0_i32_0 : i32, i32
  }
  func.func @transform_2(%arg0: i32) -> (i32, i32) {
    %c0_i32 = arith.constant 0 : i32
    %c0_i32_0 = arith.constant 0 : i32
    %c0_i32_1 = arith.constant 0 : i32
    return %c0_i32, %c0_i32_0 : i32, i32
  }
  func.func @transform_3(%arg0: i32) -> (i32, i32) {
    %c0_i32 = arith.constant 0 : i32
    %c0_i32_0 = arith.constant 0 : i32
    %c0_i32_1 = arith.constant 0 : i32
    return %c0_i32, %c0_i32_0 : i32, i32
  }
  func.func @transform_4(%arg0: i32) -> (i32, i32) {
    %c0_i32 = arith.constant 0 : i32
    %c0_i32_0 = arith.constant 0 : i32
    %c0_i32_1 = arith.constant 0 : i32
    return %c0_i32, %c0_i32_0 : i32, i32
  }
  func.func @transform_5(%arg0: i32) -> (i32, i32) {
    %c0_i32 = arith.constant 0 : i32
    %c0_i32_0 = arith.constant 0 : i32
    %c0_i32_1 = arith.constant 0 : i32
    return %c0_i32, %c0_i32_0 : i32, i32
  }
  func.func @transform_6(%arg0: i32) -> (i32, i32) {
    %c0_i32 = arith.constant 0 : i32
    %c0_i32_0 = arith.constant 0 : i32
    %c0_i32_1 = arith.constant 0 : i32
    return %c0_i32, %c0_i32_0 : i32, i32
  }
  func.func @transform_7(%arg0: i32) -> (i32, i32) {
    %c0_i32 = arith.constant 0 : i32
    %c0_i32_0 = arith.constant 0 : i32
    %c0_i32_1 = arith.constant 0 : i32
    return %c0_i32, %c0_i32_0 : i32, i32
  }
  func.func @transform_8(%arg0: i32) -> (i32, i32) {
    %c0_i32 = arith.constant 0 : i32
    %c0_i32_0 = arith.constant 0 : i32
    %c0_i32_1 = arith.constant 0 : i32
    return %c0_i32, %c0_i32_0 : i32, i32
  }
  func.func @transform_9(%arg0: i32) -> (i32, i32) {
    %c0_i32 = arith.constant 0 : i32
    %c0_i32_0 = arith.constant 0 : i32
    %c0_i32_1 = arith.constant 0 : i32
    return %c0_i32, %c0_i32_0 : i32, i32
  }
  func.func @transform_10(%arg0: i32) -> (i32, i32, i32) {
    %c0_i32 = arith.constant 0 : i32
    %c0_i32_0 = arith.constant 0 : i32
    %c0_i32_1 = arith.constant 0 : i32
    return %arg0, %c0_i32, %c0_i32_0 : i32, i32, i32
  }
}

module attributes {stable_mosaic.version = 11 : i64} {
  func.func @_coordatt_kernel(%arg0: i32, %arg1: memref<1x8x256xf32, #tpu.memory_space<vmem>>, %arg2: memref<256x16xbf16, #tpu.memory_space<vmem>>, %arg3: memref<256x16xbf16, #tpu.memory_space<vmem>>, %arg4: memref<16x8xf32, #tpu.memory_space<vmem>>, %arg5: memref<16x8xf32, #tpu.memory_space<vmem>>, %arg6: memref<16x1xf32, #tpu.memory_space<vmem>>, %arg7: memref<8x16xf32, #tpu.memory_space<vmem>>, %arg8: memref<8x1xf32, #tpu.memory_space<vmem>>, %arg9: memref<8x16xf32, #tpu.memory_space<vmem>>, %arg10: memref<8x1xf32, #tpu.memory_space<vmem>>, %arg11: memref<1x8x256xf32, #tpu.memory_space<vmem>>) attributes {dimension_semantics = [#tpu.dimension_semantics<parallel>], iteration_bounds = array<i64: 1>, scalar_prefetch = 0 : i64, scratch_operands = 0 : i64, tpu.core_type = #tpu.core_type<tc>, window_params = [{transform_indices = @transform_0, window_bounds = array<i64: 1, 8, 256>}, {pipeline_mode = #tpu.pipeline_mode<synchronous>, transform_indices = @transform_1, window_bounds = array<i64: 256, 16>}, {pipeline_mode = #tpu.pipeline_mode<synchronous>, transform_indices = @transform_2, window_bounds = array<i64: 256, 16>}, {pipeline_mode = #tpu.pipeline_mode<synchronous>, transform_indices = @transform_3, window_bounds = array<i64: 16, 8>}, {pipeline_mode = #tpu.pipeline_mode<synchronous>, transform_indices = @transform_4, window_bounds = array<i64: 16, 8>}, {pipeline_mode = #tpu.pipeline_mode<synchronous>, transform_indices = @transform_5, window_bounds = array<i64: 16, 1>}, {pipeline_mode = #tpu.pipeline_mode<synchronous>, transform_indices = @transform_6, window_bounds = array<i64: 8, 16>}, {pipeline_mode = #tpu.pipeline_mode<synchronous>, transform_indices = @transform_7, window_bounds = array<i64: 8, 1>}, {pipeline_mode = #tpu.pipeline_mode<synchronous>, transform_indices = @transform_8, window_bounds = array<i64: 8, 16>}, {pipeline_mode = #tpu.pipeline_mode<synchronous>, transform_indices = @transform_9, window_bounds = array<i64: 8, 1>}, {transform_indices = @transform_10, window_bounds = array<i64: 1, 8, 256>}]} {
    %c0 = arith.constant 0 : index
    %c0_0 = arith.constant 0 : index
    %c0_1 = arith.constant 0 : index
    %0 = vector.load %arg1[%c0, %c0_0, %c0_1] : memref<1x8x256xf32, #tpu.memory_space<vmem>>, vector<1x8x256xf32>
    %1 = vector.shape_cast %0 : vector<1x8x256xf32> to vector<8x256xf32>
    %c0_2 = arith.constant 0 : index
    %c0_3 = arith.constant 0 : index
    %2 = vector.load %arg2[%c0_2, %c0_3] : memref<256x16xbf16, #tpu.memory_space<vmem>>, vector<256x16xbf16>
    %c0_4 = arith.constant 0 : index
    %c0_5 = arith.constant 0 : index
    %3 = vector.load %arg3[%c0_4, %c0_5] : memref<256x16xbf16, #tpu.memory_space<vmem>>, vector<256x16xbf16>
    %4 = arith.truncf %1 : vector<8x256xf32> to vector<8x256xbf16>
    %5 = arith.extf %4 : vector<8x256xbf16> to vector<8x256xf32>
    %6 = arith.subf %1, %5 : vector<8x256xf32>
    %7 = arith.truncf %6 : vector<8x256xf32> to vector<8x256xbf16>
    %cst = arith.constant dense<0.000000e+00> : vector<8x16xf32>
    %8 = tpu.matmul %4, %2, %cst {dimension_numbers = #tpu.dot_dimension_numbers<[1], [0], [0], [1], [0, 0, 1, 1], [], []>} : vector<8x256xbf16>, vector<256x16xbf16>, vector<8x16xf32> -> vector<8x16xf32>
    %cst_6 = arith.constant dense<0.000000e+00> : vector<8x16xf32>
    %9 = tpu.matmul %7, %2, %cst_6 {dimension_numbers = #tpu.dot_dimension_numbers<[1], [0], [0], [1], [0, 0, 1, 1], [], []>} : vector<8x256xbf16>, vector<256x16xbf16>, vector<8x16xf32> -> vector<8x16xf32>
    %10 = arith.addf %8, %9 : vector<8x16xf32>
    %11 = arith.truncf %1 : vector<8x256xf32> to vector<8x256xbf16>
    %12 = arith.extf %11 : vector<8x256xbf16> to vector<8x256xf32>
    %13 = arith.subf %1, %12 : vector<8x256xf32>
    %14 = arith.truncf %13 : vector<8x256xf32> to vector<8x256xbf16>
    %cst_7 = arith.constant dense<0.000000e+00> : vector<8x16xf32>
    %15 = tpu.matmul %11, %3, %cst_7 {dimension_numbers = #tpu.dot_dimension_numbers<[1], [0], [0], [1], [0, 0, 1, 1], [], []>} : vector<8x256xbf16>, vector<256x16xbf16>, vector<8x16xf32> -> vector<8x16xf32>
    %cst_8 = arith.constant dense<0.000000e+00> : vector<8x16xf32>
    %16 = tpu.matmul %14, %3, %cst_8 {dimension_numbers = #tpu.dot_dimension_numbers<[1], [0], [0], [1], [0, 0, 1, 1], [], []>} : vector<8x256xbf16>, vector<256x16xbf16>, vector<8x16xf32> -> vector<8x16xf32>
    %17 = arith.addf %15, %16 : vector<8x16xf32>
    %c0_9 = arith.constant 0 : index
    %c0_10 = arith.constant 0 : index
    %18 = vector.load %arg4[%c0_9, %c0_10] : memref<16x8xf32, #tpu.memory_space<vmem>>, vector<16x8xf32>
    %cst_11 = arith.constant dense<0.000000e+00> : vector<16x16xf32>
    %19 = tpu.matmul %18, %10, %cst_11 {dimension_numbers = #tpu.dot_dimension_numbers<[1], [0], [0], [1], [0, 0, 1, 1], [], []>, precision = #tpu.contract_precision<fp32>} : vector<16x8xf32>, vector<8x16xf32>, vector<16x16xf32> -> vector<16x16xf32>
    %c0_12 = arith.constant 0 : index
    %c0_13 = arith.constant 0 : index
    %20 = vector.load %arg6[%c0_12, %c0_13] : memref<16x1xf32, #tpu.memory_space<vmem>>, vector<16x1xf32>
    %21 = vector.broadcast %20 : vector<16x1xf32> to vector<16x16xf32>
    %22 = arith.addf %19, %21 : vector<16x16xf32>
    %c0_14 = arith.constant 0 : index
    %c0_15 = arith.constant 0 : index
    %23 = vector.load %arg5[%c0_14, %c0_15] : memref<16x8xf32, #tpu.memory_space<vmem>>, vector<16x8xf32>
    %cst_16 = arith.constant dense<0.000000e+00> : vector<16x16xf32>
    %24 = tpu.matmul %23, %17, %cst_16 {dimension_numbers = #tpu.dot_dimension_numbers<[1], [0], [0], [1], [0, 0, 1, 1], [], []>, precision = #tpu.contract_precision<fp32>} : vector<16x8xf32>, vector<8x16xf32>, vector<16x16xf32> -> vector<16x16xf32>
    %c0_17 = arith.constant 0 : index
    %c0_18 = arith.constant 0 : index
    %25 = vector.load %arg6[%c0_17, %c0_18] : memref<16x1xf32, #tpu.memory_space<vmem>>, vector<16x1xf32>
    %26 = vector.broadcast %25 : vector<16x1xf32> to vector<16x16xf32>
    %27 = arith.addf %24, %26 : vector<16x16xf32>
    %cst_19 = arith.constant 3.000000e+00 : f32
    %28 = vector.broadcast %cst_19 : f32 to vector<16x16xf32>
    %29 = arith.addf %22, %28 : vector<16x16xf32>
    %cst_20 = arith.constant 0.000000e+00 : f32
    %cst_21 = arith.constant 6.000000e+00 : f32
    %30 = vector.broadcast %cst_20 : f32 to vector<16x16xf32>
    %31 = arith.maximumf %30, %29 : vector<16x16xf32>
    %32 = vector.broadcast %cst_21 : f32 to vector<16x16xf32>
    %33 = arith.minimumf %32, %31 : vector<16x16xf32>
    %34 = arith.mulf %22, %33 : vector<16x16xf32>
    %cst_22 = arith.constant 0.166666672 : f32
    %35 = vector.broadcast %cst_22 : f32 to vector<16x16xf32>
    %36 = arith.mulf %34, %35 : vector<16x16xf32>
    %cst_23 = arith.constant 3.000000e+00 : f32
    %37 = vector.broadcast %cst_23 : f32 to vector<16x16xf32>
    %38 = arith.addf %27, %37 : vector<16x16xf32>
    %cst_24 = arith.constant 0.000000e+00 : f32
    %cst_25 = arith.constant 6.000000e+00 : f32
    %39 = vector.broadcast %cst_24 : f32 to vector<16x16xf32>
    %40 = arith.maximumf %39, %38 : vector<16x16xf32>
    %41 = vector.broadcast %cst_25 : f32 to vector<16x16xf32>
    %42 = arith.minimumf %41, %40 : vector<16x16xf32>
    %43 = arith.mulf %27, %42 : vector<16x16xf32>
    %cst_26 = arith.constant 0.166666672 : f32
    %44 = vector.broadcast %cst_26 : f32 to vector<16x16xf32>
    %45 = arith.mulf %43, %44 : vector<16x16xf32>
    %c0_27 = arith.constant 0 : index
    %c0_28 = arith.constant 0 : index
    %46 = vector.load %arg7[%c0_27, %c0_28] : memref<8x16xf32, #tpu.memory_space<vmem>>, vector<8x16xf32>
    %cst_29 = arith.constant dense<0.000000e+00> : vector<8x16xf32>
    %47 = tpu.matmul %46, %36, %cst_29 {dimension_numbers = #tpu.dot_dimension_numbers<[1], [0], [0], [1], [0, 0, 1, 1], [], []>, precision = #tpu.contract_precision<fp32>} : vector<8x16xf32>, vector<16x16xf32>, vector<8x16xf32> -> vector<8x16xf32>
    %c0_30 = arith.constant 0 : index
    %c0_31 = arith.constant 0 : index
    %48 = vector.load %arg8[%c0_30, %c0_31] : memref<8x1xf32, #tpu.memory_space<vmem>>, vector<8x1xf32>
    %49 = vector.broadcast %48 : vector<8x1xf32> to vector<8x16xf32>
    %50 = arith.addf %47, %49 : vector<8x16xf32>
    %51 = arith.negf %50 : vector<8x16xf32>
    %52 = math.exp %51 : vector<8x16xf32>
    %cst_32 = arith.constant 1.000000e+00 : f32
    %53 = vector.broadcast %cst_32 : f32 to vector<8x16xf32>
    %54 = arith.addf %53, %52 : vector<8x16xf32>
    %55 = arith.divf %53, %54 : vector<8x16xf32>
    %c0_33 = arith.constant 0 : index
    %c0_34 = arith.constant 0 : index
    %56 = vector.load %arg9[%c0_33, %c0_34] : memref<8x16xf32, #tpu.memory_space<vmem>>, vector<8x16xf32>
    %cst_35 = arith.constant dense<0.000000e+00> : vector<8x16xf32>
    %57 = tpu.matmul %56, %45, %cst_35 {dimension_numbers = #tpu.dot_dimension_numbers<[1], [0], [0], [1], [0, 0, 1, 1], [], []>, precision = #tpu.contract_precision<fp32>} : vector<8x16xf32>, vector<16x16xf32>, vector<8x16xf32> -> vector<8x16xf32>
    %c0_36 = arith.constant 0 : index
    %c0_37 = arith.constant 0 : index
    %58 = vector.load %arg10[%c0_36, %c0_37] : memref<8x1xf32, #tpu.memory_space<vmem>>, vector<8x1xf32>
    %59 = vector.broadcast %58 : vector<8x1xf32> to vector<8x16xf32>
    %60 = arith.addf %57, %59 : vector<8x16xf32>
    %61 = arith.negf %60 : vector<8x16xf32>
    %62 = math.exp %61 : vector<8x16xf32>
    %cst_38 = arith.constant 1.000000e+00 : f32
    %63 = vector.broadcast %cst_38 : f32 to vector<8x16xf32>
    %64 = arith.addf %63, %62 : vector<8x16xf32>
    %65 = arith.divf %63, %64 : vector<8x16xf32>
    %66 = arith.truncf %65 : vector<8x16xf32> to vector<8x16xbf16>
    %67 = arith.extf %66 : vector<8x16xbf16> to vector<8x16xf32>
    %68 = arith.subf %65, %67 : vector<8x16xf32>
    %69 = arith.truncf %68 : vector<8x16xf32> to vector<8x16xbf16>
    %cst_39 = arith.constant dense<0.000000e+00> : vector<8x256xf32>
    %70 = tpu.matmul %66, %3, %cst_39 {dimension_numbers = #tpu.dot_dimension_numbers<[1], [1], [0], [0], [0, 0, 1, 0], [], []>} : vector<8x16xbf16>, vector<256x16xbf16>, vector<8x256xf32> -> vector<8x256xf32>
    %cst_40 = arith.constant dense<0.000000e+00> : vector<8x256xf32>
    %71 = tpu.matmul %69, %3, %cst_40 {dimension_numbers = #tpu.dot_dimension_numbers<[1], [1], [0], [0], [0, 0, 1, 0], [], []>} : vector<8x16xbf16>, vector<256x16xbf16>, vector<8x256xf32> -> vector<8x256xf32>
    %72 = arith.addf %70, %71 : vector<8x256xf32>
    %73 = arith.mulf %1, %72 : vector<8x256xf32>
    %74 = arith.truncf %55 : vector<8x16xf32> to vector<8x16xbf16>
    %75 = arith.extf %74 : vector<8x16xbf16> to vector<8x16xf32>
    %76 = arith.subf %55, %75 : vector<8x16xf32>
    %77 = arith.truncf %76 : vector<8x16xf32> to vector<8x16xbf16>
    %cst_41 = arith.constant dense<0.000000e+00> : vector<8x256xf32>
    %78 = tpu.matmul %74, %2, %cst_41 {dimension_numbers = #tpu.dot_dimension_numbers<[1], [1], [0], [0], [0, 0, 1, 0], [], []>} : vector<8x16xbf16>, vector<256x16xbf16>, vector<8x256xf32> -> vector<8x256xf32>
    %cst_42 = arith.constant dense<0.000000e+00> : vector<8x256xf32>
    %79 = tpu.matmul %77, %2, %cst_42 {dimension_numbers = #tpu.dot_dimension_numbers<[1], [1], [0], [0], [0, 0, 1, 0], [], []>} : vector<8x16xbf16>, vector<256x16xbf16>, vector<8x256xf32> -> vector<8x256xf32>
    %80 = arith.addf %78, %79 : vector<8x256xf32>
    %81 = arith.mulf %73, %80 : vector<8x256xf32>
    %c0_43 = arith.constant 0 : index
    %c0_44 = arith.constant 0 : index
    %c0_45 = arith.constant 0 : index
    %82 = vector.load %arg11[%c0_43, %c0_44, %c0_45] : memref<1x8x256xf32, #tpu.memory_space<vmem>>, vector<1x8x256xf32>
    %83 = vector.shape_cast %82 : vector<1x8x256xf32> to vector<8x256xf32>
    %84 = vector.shape_cast %81 : vector<8x256xf32> to vector<1x8x256xf32>
    tpu.vector_store %arg11[%c0_43, %c0_44, %c0_45], %84 {strides = array<i32>} : memref<1x8x256xf32, #tpu.memory_space<vmem>>, vector<1x8x256xf32>,
    return
  }
  func.func @transform_0(%arg0: i32) -> (i32, i32, i32) {
    %c0_i32 = arith.constant 0 : i32
    %c0_i32_0 = arith.constant 0 : i32
    %c0_i32_1 = arith.constant 0 : i32
    return %arg0, %c0_i32, %c0_i32_0 : i32, i32, i32
  }
  func.func @transform_1(%arg0: i32) -> (i32, i32) {
    %c0_i32 = arith.constant 0 : i32
    %c0_i32_0 = arith.constant 0 : i32
    %c0_i32_1 = arith.constant 0 : i32
    return %c0_i32, %c0_i32_0 : i32, i32
  }
  func.func @transform_2(%arg0: i32) -> (i32, i32) {
    %c0_i32 = arith.constant 0 : i32
    %c0_i32_0 = arith.constant 0 : i32
    %c0_i32_1 = arith.constant 0 : i32
    return %c0_i32, %c0_i32_0 : i32, i32
  }
  func.func @transform_3(%arg0: i32) -> (i32, i32) {
    %c0_i32 = arith.constant 0 : i32
    %c0_i32_0 = arith.constant 0 : i32
    %c0_i32_1 = arith.constant 0 : i32
    return %c0_i32, %c0_i32_0 : i32, i32
  }
  func.func @transform_4(%arg0: i32) -> (i32, i32) {
    %c0_i32 = arith.constant 0 : i32
    %c0_i32_0 = arith.constant 0 : i32
    %c0_i32_1 = arith.constant 0 : i32
    return %c0_i32, %c0_i32_0 : i32, i32
  }
  func.func @transform_5(%arg0: i32) -> (i32, i32) {
    %c0_i32 = arith.constant 0 : i32
    %c0_i32_0 = arith.constant 0 : i32
    %c0_i32_1 = arith.constant 0 : i32
    return %c0_i32, %c0_i32_0 : i32, i32
  }
  func.func @transform_6(%arg0: i32) -> (i32, i32) {
    %c0_i32 = arith.constant 0 : i32
    %c0_i32_0 = arith.constant 0 : i32
    %c0_i32_1 = arith.constant 0 : i32
    return %c0_i32, %c0_i32_0 : i32, i32
  }
  func.func @transform_7(%arg0: i32) -> (i32, i32) {
    %c0_i32 = arith.constant 0 : i32
    %c0_i32_0 = arith.constant 0 : i32
    %c0_i32_1 = arith.constant 0 : i32
    return %c0_i32, %c0_i32_0 : i32, i32
  }
  func.func @transform_8(%arg0: i32) -> (i32, i32) {
    %c0_i32 = arith.constant 0 : i32
    %c0_i32_0 = arith.constant 0 : i32
    %c0_i32_1 = arith.constant 0 : i32
    return %c0_i32, %c0_i32_0 : i32, i32
  }
  func.func @transform_9(%arg0: i32) -> (i32, i32) {
    %c0_i32 = arith.constant 0 : i32
    %c0_i32_0 = arith.constant 0 : i32
    %c0_i32_1 = arith.constant 0 : i32
    return %c0_i32, %c0_i32_0 : i32, i32
  }
  func.func @transform_10(%arg0: i32) -> (i32, i32, i32) {
    %c0_i32 = arith.constant 0 : i32
    %c0_i32_0 = arith.constant 0 : i32
    %c0_i32_1 = arith.constant 0 : i32
    return %arg0, %c0_i32, %c0_i32_0 : i32, i32, i32
  }
}

</mosaic_0001>

<llo_original>
// kernel: tpu_custom_call.1
$region0: #{tpu_custom_call.1}
  #allocation0 [shape = 'u32[]', space=smem, size = 0x4, offset = 0x4, fixed_abs, tag = 'smem constant byte address 0x4 - core index']
  #allocation1 [shape = 'u32[144,128]{1,0:T(1,128)}', space=vmem, size = 0x12000, scoped, tag = 'internal scratch']
  %s0 = inlined_call_operand.vmem [shape: f32[1,8,256], index: 0, kind: input, shape index: {}]
  %s1 = inlined_call_operand.vmem [shape: bf16[256,16], index: 1, kind: input, shape index: {}]
  %s2 = inlined_call_operand.vmem [shape: bf16[256,16], index: 2, kind: input, shape index: {}]
  %s3 = inlined_call_operand.vmem [shape: f32[16,8], index: 3, kind: input, shape index: {}]
  %s4 = inlined_call_operand.vmem [shape: f32[16,8], index: 4, kind: input, shape index: {}]
  %s5 = inlined_call_operand.vmem [shape: f32[16,1], index: 5, kind: input, shape index: {}]
  %s6 = inlined_call_operand.vmem [shape: f32[8,16], index: 6, kind: input, shape index: {}]
  %s7 = inlined_call_operand.vmem [shape: f32[8,1], index: 7, kind: input, shape index: {}]
  %s8 = inlined_call_operand.vmem [shape: f32[8,16], index: 8, kind: input, shape index: {}]
  %s9 = inlined_call_operand.vmem [shape: f32[8,1], index: 9, kind: input, shape index: {}]
  %s10 = inlined_call_operand.hbm [shape: f32[1,8,256], index: 10, kind: output, shape index: {}]
  %s11 = sld [smem:[#allocation0]]
  $region50: #{tpu_custom_call.1} parent=0
    _
  %s13 = ssub.s32 1, %s11
  %s14 = scalar_select 0, %s13, %s11
  $region1: #{tpu_custom_call.1} parent=0
    #allocation2 [shape = 'u8[8192]{0}', space=vmem, size = 0x2000, scoped, tag = 'output window, operand 0, single buffered']
    #allocation3 [shape = 's32[1]{0}', space=sflag, size = 0x4, scoped, tag = 'scoped memory for tpu_custom_call.1']
    %15 = vsyncpa [#allocation3], 0
    // Predicated region
    $region2: #{tpu_custom_call.1} parent=1 // pred_check
      _
    $region3: #{tpu_custom_call.1} parent=1 // pred_check_branch
      %17 = sbr.rel (0) target = $region5
    $region4: #{tpu_custom_call.1} parent=1 // pred_region
      _
    $region5: #{tpu_custom_call.1} parent=1 // pred_fallthru
      _
    // Predicated region
    $region6: #{tpu_custom_call.1} parent=1 // pred_check
      _
    $region7: #{tpu_custom_call.1} parent=1 // pred_check_branch
      %19 = sbr.rel (0) target = $region9
    $region8: #{tpu_custom_call.1} parent=1 // pred_region
      _
    $region9: #{tpu_custom_call.1} parent=1 // pred_fallthru
      _
    // Predicated region
    $region10: #{tpu_custom_call.1} parent=1 // pred_check
      _
    $region11: #{tpu_custom_call.1} parent=1 // pred_check_branch
      %21 = sbr.rel (0) target = $region13
    $region12: #{tpu_custom_call.1} parent=1 // pred_region
      _
    $region13: #{tpu_custom_call.1} parent=1 // pred_fallthru
      _
    // Predicated region
    $region14: #{tpu_custom_call.1} parent=1 // pred_check
      _
    $region15: #{tpu_custom_call.1} parent=1 // pred_check_branch
      %23 = sbr.rel (0) target = $region17
    $region16: #{tpu_custom_call.1} parent=1 // pred_region
      _
    $region17: #{tpu_custom_call.1} parent=1 // pred_fallthru
      _
    // Predicated region
    $region18: #{tpu_custom_call.1} parent=1 // pred_check
      _
    $region19: #{tpu_custom_call.1} parent=1 // pred_check_branch
      %25 = sbr.rel (0) target = $region21
    $region20: #{tpu_custom_call.1} parent=1 // pred_region
      _
    $region21: #{tpu_custom_call.1} parent=1 // pred_fallthru
      _
    // Predicated region
    $region22: #{tpu_custom_call.1} parent=1 // pred_check
      _
    $region23: #{tpu_custom_call.1} parent=1 // pred_check_branch
      %27 = sbr.rel (0) target = $region25
    $region24: #{tpu_custom_call.1} parent=1 // pred_region
      _
    $region25: #{tpu_custom_call.1} parent=1 // pred_fallthru
      _
    // Predicated region
    $region26: #{tpu_custom_call.1} parent=1 // pred_check
      _
    $region27: #{tpu_custom_call.1} parent=1 // pred_check_branch
      %29 = sbr.rel (0) target = $region29
    $region28: #{tpu_custom_call.1} parent=1 // pred_region
      _
    $region29: #{tpu_custom_call.1} parent=1 // pred_fallthru
      _
    // Predicated region
    $region30: #{tpu_custom_call.1} parent=1 // pred_check
      _
    $region31: #{tpu_custom_call.1} parent=1 // pred_check_branch
      %31 = sbr.rel (0) target = $region33
    $region32: #{tpu_custom_call.1} parent=1 // pred_region
      _
    $region33: #{tpu_custom_call.1} parent=1 // pred_fallthru
      _
    // Predicated region
    $region34: #{tpu_custom_call.1} parent=1 // pred_check
      _
    $region35: #{tpu_custom_call.1} parent=1 // pred_check_branch
      %33 = sbr.rel (0) target = $region37
    $region36: #{tpu_custom_call.1} parent=1 // pred_region
      _
    $region37: #{tpu_custom_call.1} parent=1 // pred_fallthru
      _
    // Predicated region
    $region38: #{tpu_custom_call.1} parent=1 // pred_check
      _
    $region39: #{tpu_custom_call.1} parent=1 // pred_check_branch
      %35 = sbr.rel (0) target = $region41
    $region40: #{tpu_custom_call.1} parent=1 // pred_region
      _
    $region41: #{tpu_custom_call.1} parent=1 // pred_fallthru
      _
    %v37 = vld [vmem:[%s0] sm:$0xff]
    %v38 = vld [vmem:[%s0 + $0x8] sm:$0xff]
    %v39 = vld [vmem:[%s1] sm:$0xf]
    %v40 = vld [vmem:[%s1 + $0x4] sm:$0xf]
    %v41 = vld [vmem:[%s1 + $0x8] sm:$0xf]
    %v42 = vld [vmem:[%s1 + $0xc] sm:$0xf]
    %v43 = vld [vmem:[%s1 + $0x10] sm:$0xf]
    %v44 = vld [vmem:[%s1 + $0x14] sm:$0xf]
    %v45 = vld [vmem:[%s1 + $0x18] sm:$0xf]
    %v46 = vld [vmem:[%s1 + $0x1c] sm:$0xf]
    %v47 = vld [vmem:[%s1 + $0x20] sm:$0xf]
    %v48 = vld [vmem:[%s1 + $0x24] sm:$0xf]
    %v49 = vld [vmem:[%s1 + $0x28] sm:$0xf]
    %v50 = vld [vmem:[%s1 + $0x2c] sm:$0xf]
    %v51 = vld [vmem:[%s1 + $0x30] sm:$0xf]
    %v52 = vld [vmem:[%s1 + $0x34] sm:$0xf]
    %v53 = vld [vmem:[%s1 + $0x38] sm:$0xf]
    %v54 = vld [vmem:[%s1 + $0x3c] sm:$0xf]
    %v55 = vld [vmem:[%s1 + $0x40] sm:$0xf]
    %v56 = vld [vmem:[%s1 + $0x44] sm:$0xf]
    %v57 = vld [vmem:[%s1 + $0x48] sm:$0xf]
    %v58 = vld [vmem:[%s1 + $0x4c] sm:$0xf]
    %v59 = vld [vmem:[%s1 + $0x50] sm:$0xf]
    %v60 = vld [vmem:[%s1 + $0x54] sm:$0xf]
    %v61 = vld [vmem:[%s1 + $0x58] sm:$0xf]
    %v62 = vld [vmem:[%s1 + $0x5c] sm:$0xf]
    %v63 = vld [vmem:[%s1 + $0x60] sm:$0xf]
    %v64 = vld [vmem:[%s1 + $0x64] sm:$0xf]
    %v65 = vld [vmem:[%s1 + $0x68] sm:$0xf]
    %v66 = vld [vmem:[%s1 + $0x6c] sm:$0xf]
    %v67 = vld [vmem:[%s1 + $0x70] sm:$0xf]
    %v68 = vld [vmem:[%s1 + $0x74] sm:$0xf]
    %v69 = vld [vmem:[%s1 + $0x78] sm:$0xf]
    %v70 = vld [vmem:[%s1 + $0x7c] sm:$0xf]
    %v71 = vld [vmem:[%s2] sm:$0xf]
    %v72 = vld [vmem:[%s2 + $0x4] sm:$0xf]
    %v73 = vld [vmem:[%s2 + $0x8] sm:$0xf]
    %v74 = vld [vmem:[%s2 + $0xc] sm:$0xf]
    %v75 = vld [vmem:[%s2 + $0x10] sm:$0xf]
    %v76 = vld [vmem:[%s2 + $0x14] sm:$0xf]
    %v77 = vld [vmem:[%s2 + $0x18] sm:$0xf]
    %v78 = vld [vmem:[%s2 + $0x1c] sm:$0xf]
    %v79 = vld [vmem:[%s2 + $0x20] sm:$0xf]
    %v80 = vld [vmem:[%s2 + $0x24] sm:$0xf]
    %v81 = vld [vmem:[%s2 + $0x28] sm:$0xf]
    %v82 = vld [vmem:[%s2 + $0x2c] sm:$0xf]
    %v83 = vld [vmem:[%s2 + $0x30] sm:$0xf]
    %v84 = vld [vmem:[%s2 + $0x34] sm:$0xf]
    %v85 = vld [vmem:[%s2 + $0x38] sm:$0xf]
    %v86 = vld [vmem:[%s2 + $0x3c] sm:$0xf]
    %v87 = vld [vmem:[%s2 + $0x40] sm:$0xf]
    %v88 = vld [vmem:[%s2 + $0x44] sm:$0xf]
    %v89 = vld [vmem:[%s2 + $0x48] sm:$0xf]
    %v90 = vld [vmem:[%s2 + $0x4c] sm:$0xf]
    %v91 = vld [vmem:[%s2 + $0x50] sm:$0xf]
    %v92 = vld [vmem:[%s2 + $0x54] sm:$0xf]
    %v93 = vld [vmem:[%s2 + $0x58] sm:$0xf]
    %v94 = vld [vmem:[%s2 + $0x5c] sm:$0xf]
    %v95 = vld [vmem:[%s2 + $0x60] sm:$0xf]
    %v96 = vld [vmem:[%s2 + $0x64] sm:$0xf]
    %v97 = vld [vmem:[%s2 + $0x68] sm:$0xf]
    %v98 = vld [vmem:[%s2 + $0x6c] sm:$0xf]
    %v99 = vld [vmem:[%s2 + $0x70] sm:$0xf]
    %v100 = vld [vmem:[%s2 + $0x74] sm:$0xf]
    %v101 = vld [vmem:[%s2 + $0x78] sm:$0xf]
    %v102 = vld [vmem:[%s2 + $0x7c] sm:$0xf]
    %v103 = vpack.c.bf16 %v37, %v37
    %v104 = vpack.c.bf16 %v38, %v38
    %v105 = vunpack.c.l.bf16 %v103
    %v106 = vunpack.c.l.bf16 %v104
    %v107 = vsub.f32 %v37, %v105
    %v108 = vsub.f32 %v38, %v106
    %v109 = vpack.c.bf16 %v107, %v107
    %v110 = vpack.c.bf16 %v108, %v108
    %v143 = vunpack.c.l.b16 %v39
    %v144 = vunpack.c.l.b16 %v40
    %v145 = vunpack.c.l.b16 %v41
    %v146 = vunpack.c.l.b16 %v42
    %v147 = vunpack.c.l.b16 %v43
    %v148 = vunpack.c.l.b16 %v44
    %v149 = vunpack.c.l.b16 %v45
    %v150 = vunpack.c.l.b16 %v46
    %v151 = vunpack.c.l.b16 %v47
    %v152 = vunpack.c.l.b16 %v48
    %v153 = vunpack.c.l.b16 %v49
    %v154 = vunpack.c.l.b16 %v50
    %v155 = vunpack.c.l.b16 %v51
    %v156 = vunpack.c.l.b16 %v52
    %v157 = vunpack.c.l.b16 %v53
    %v158 = vunpack.c.l.b16 %v54
    %v159 = vunpack.c.l.b16 %v55
    %v160 = vunpack.c.l.b16 %v56
    %v161 = vunpack.c.l.b16 %v57
    %v162 = vunpack.c.l.b16 %v58
    %v163 = vunpack.c.l.b16 %v59
    %v164 = vunpack.c.l.b16 %v60
    %v165 = vunpack.c.l.b16 %v61
    %v166 = vunpack.c.l.b16 %v62
    %v167 = vunpack.c.l.b16 %v63
    %v168 = vunpack.c.l.b16 %v64
    %v169 = vunpack.c.l.b16 %v65
    %v170 = vunpack.c.l.b16 %v66
    %v171 = vunpack.c.l.b16 %v67
    %v172 = vunpack.c.l.b16 %v68
    %v173 = vunpack.c.l.b16 %v69
    %v174 = vunpack.c.l.b16 %v70
    %v175 = vpack.c.b16 %v144, %v143
    %v176 = vpack.c.b16 %v146, %v145
    %v177 = vpack.c.b16 %v148, %v147
    %v178 = vpack.c.b16 %v150, %v149
    %v179 = vpack.c.b16 %v152, %v151
    %v180 = vpack.c.b16 %v154, %v153
    %v181 = vpack.c.b16 %v156, %v155
    %v182 = vpack.c.b16 %v158, %v157
    %v183 = vpack.c.b16 %v160, %v159
    %v184 = vpack.c.b16 %v162, %v161
    %v185 = vpack.c.b16 %v164, %v163
    %v186 = vpack.c.b16 %v166, %v165
    %v187 = vpack.c.b16 %v168, %v167
    %v188 = vpack.c.b16 %v170, %v169
    %v189 = vpack.c.b16 %v172, %v171
    %v190 = vpack.c.b16 %v174, %v173
    %207 = vmatprep.subr.bf16.mxu0 0
    %208 = vmatpush1.bf16.msra.mxu0 %v182
    %209 = vmatprep.subr.bf16.mxu0 0
    %210 = vmatpush1.bf16.msra.mxu0 %v181
    %211 = vmatprep.subr.bf16.mxu0 0
    %212 = vmatpush1.bf16.msra.mxu0 %v180
    %213 = vmatprep.subr.bf16.mxu0 0
    %214 = vmatpush1.bf16.msra.mxu0 %v179
    %215 = vmatprep.subr.bf16.mxu0 0
    %216 = vmatpush1.bf16.msra.mxu0 %v178
    %217 = vmatprep.subr.bf16.mxu0 0
    %218 = vmatpush1.bf16.msra.mxu0 %v177
    %219 = vmatprep.subr.bf16.mxu0 0
    %220 = vmatpush1.bf16.msra.mxu0 %v176
    %221 = vmatprep.subr.bf16.mxu0 0
    %222 = vmatpush1.bf16.msra.mxu0 %v175
    %223 = vmatprep.subr.bf16.mxu0 0
    %224 = vmatpush2.bf16.msra.mxu0 %v190
    %225 = vmatprep.subr.bf16.mxu0 0
    %226 = vmatpush2.bf16.msra.mxu0 %v189
    %227 = vmatprep.subr.bf16.mxu0 0
    %228 = vmatpush2.bf16.msra.mxu0 %v188
    %229 = vmatprep.subr.bf16.mxu0 0
    %230 = vmatpush2.bf16.msra.mxu0 %v187
    %231 = vmatprep.subr.bf16.mxu0 0
    %232 = vmatpush2.bf16.msra.mxu0 %v186
    %233 = vmatprep.subr.bf16.mxu0 0
    %234 = vmatpush2.bf16.msra.mxu0 %v185
    %235 = vmatprep.subr.bf16.mxu0 0
    %236 = vmatpush2.bf16.msra.mxu0 %v184
    %237 = vmatprep.subr.bf16.mxu0 0
    %238 = vmatpush2.bf16.msra.mxu0 %v183
    %239 = vmatprep.mubr.bf16.mxu0 %v110
    %240 = vmatmul.mubr.bf16.gmra.mxu0 %v109
    %v241 = vpop.f32.mrf.mxu0
    %v242 = vadd.f32 0.0, %v241
    %v243 = vpop.f32.mrf.mxu0
    %v244 = vpop.f32.mrf.mxu0
    %v245 = vpop.f32.mrf.mxu0
    %246 = vdwg.mxu0
    %247 = vmatprep.subr.bf16.mxu0 0
    %248 = vmatpush1.bf16.msra.mxu0 %v182
    %249 = vmatprep.subr.bf16.mxu0 0
    %250 = vmatpush1.bf16.msra.mxu0 %v181
    %251 = vmatprep.subr.bf16.mxu0 0
    %252 = vmatpush1.bf16.msra.mxu0 %v180
    %253 = vmatprep.subr.bf16.mxu0 0
    %254 = vmatpush1.bf16.msra.mxu0 %v179
    %255 = vmatprep.subr.bf16.mxu0 0
    %256 = vmatpush1.bf16.msra.mxu0 %v178
    %257 = vmatprep.subr.bf16.mxu0 0
    %258 = vmatpush1.bf16.msra.mxu0 %v177
    %259 = vmatprep.subr.bf16.mxu0 0
    %260 = vmatpush1.bf16.msra.mxu0 %v176
    %261 = vmatprep.subr.bf16.mxu0 0
    %262 = vmatpush1.bf16.msra.mxu0 %v175
    %263 = vmatprep.subr.bf16.mxu0 0
    %264 = vmatpush2.bf16.msra.mxu0 %v190
    %265 = vmatprep.subr.bf16.mxu0 0
    %266 = vmatpush2.bf16.msra.mxu0 %v189
    %267 = vmatprep.subr.bf16.mxu0 0
    %268 = vmatpush2.bf16.msra.mxu0 %v188
    %269 = vmatprep.subr.bf16.mxu0 0
    %270 = vmatpush2.bf16.msra.mxu0 %v187
    %271 = vmatprep.subr.bf16.mxu0 0
    %272 = vmatpush2.bf16.msra.mxu0 %v186
    %273 = vmatprep.subr.bf16.mxu0 0
    %274 = vmatpush2.bf16.msra.mxu0 %v185
    %275 = vmatprep.subr.bf16.mxu0 0
    %276 = vmatpush2.bf16.msra.mxu0 %v184
    %277 = vmatprep.subr.bf16.mxu0 0
    %278 = vmatpush2.bf16.msra.mxu0 %v183
    %279 = vmatprep.mubr.bf16.mxu0 %v104
    %280 = vmatmul.mubr.bf16.gmra.mxu0 %v103
    %v281 = vpop.f32.mrf.mxu0
    %v282 = vadd.f32 %v242, %v281
    %v283 = vpop.f32.mrf.mxu0
    %v284 = vpop.f32.mrf.mxu0
    %v285 = vpop.f32.mrf.mxu0
    %286 = vdwg.mxu0
    %v319 = vunpack.c.l.b16 %v71
    %v320 = vunpack.c.l.b16 %v72
    %v321 = vunpack.c.l.b16 %v73
    %v322 = vunpack.c.l.b16 %v74
    %v323 = vunpack.c.l.b16 %v75
    %v324 = vunpack.c.l.b16 %v76
    %v325 = vunpack.c.l.b16 %v77
    %v326 = vunpack.c.l.b16 %v78
    %v327 = vunpack.c.l.b16 %v79
    %v328 = vunpack.c.l.b16 %v80
    %v329 = vunpack.c.l.b16 %v81
    %v330 = vunpack.c.l.b16 %v82
    %v331 = vunpack.c.l.b16 %v83
    %v332 = vunpack.c.l.b16 %v84
    %v333 = vunpack.c.l.b16 %v85
    %v334 = vunpack.c.l.b16 %v86
    %v335 = vunpack.c.l.b16 %v87
    %v336 = vunpack.c.l.b16 %v88
    %v337 = vunpack.c.l.b16 %v89
    %v338 = vunpack.c.l.b16 %v90
    %v339 = vunpack.c.l.b16 %v91
    %v340 = vunpack.c.l.b16 %v92
    %v341 = vunpack.c.l.b16 %v93
    %v342 = vunpack.c.l.b16 %v94
    %v343 = vunpack.c.l.b16 %v95
    %v344 = vunpack.c.l.b16 %v96
    %v345 = vunpack.c.l.b16 %v97
    %v346 = vunpack.c.l.b16 %v98
    %v347 = vunpack.c.l.b16 %v99
    %v348 = vunpack.c.l.b16 %v100
    %v349 = vunpack.c.l.b16 %v101
    %v350 = vunpack.c.l.b16 %v102
    %v351 = vpack.c.b16 %v320, %v319
    %v352 = vpack.c.b16 %v322, %v321
    %v353 = vpack.c.b16 %v324, %v323
    %v354 = vpack.c.b16 %v326, %v325
    %v355 = vpack.c.b16 %v328, %v327
    %v356 = vpack.c.b16 %v330, %v329
    %v357 = vpack.c.b16 %v332, %v331
    %v358 = vpack.c.b16 %v334, %v333
    %v359 = vpack.c.b16 %v336, %v335
    %v360 = vpack.c.b16 %v338, %v337
    %v361 = vpack.c.b16 %v340, %v339
    %v362 = vpack.c.b16 %v342, %v341
    %v363 = vpack.c.b16 %v344, %v343
    %v364 = vpack.c.b16 %v346, %v345
    %v365 = vpack.c.b16 %v348, %v347
    %v366 = vpack.c.b16 %v350, %v349
    %383 = vmatprep.subr.bf16.mxu0 0
    %384 = vmatpush1.bf16.msra.mxu0 %v358
    %385 = vmatprep.subr.bf16.mxu0 0
    %386 = vmatpush1.bf16.msra.mxu0 %v357
    %387 = vmatprep.subr.bf16.mxu0 0
    %388 = vmatpush1.bf16.msra.mxu0 %v356
    %389 = vmatprep.subr.bf16.mxu0 0
    %390 = vmatpush1.bf16.msra.mxu0 %v355
    %391 = vmatprep.subr.bf16.mxu0 0
    %392 = vmatpush1.bf16.msra.mxu0 %v354
    %393 = vmatprep.subr.bf16.mxu0 0
    %394 = vmatpush1.bf16.msra.mxu0 %v353
    %395 = vmatprep.subr.bf16.mxu0 0
    %396 = vmatpush1.bf16.msra.mxu0 %v352
    %397 = vmatprep.subr.bf16.mxu0 0
    %398 = vmatpush1.bf16.msra.mxu0 %v351
    %399 = vmatprep.subr.bf16.mxu0 0
    %400 = vmatpush2.bf16.msra.mxu0 %v366
    %401 = vmatprep.subr.bf16.mxu0 0
    %402 = vmatpush2.bf16.msra.mxu0 %v365
    %403 = vmatprep.subr.bf16.mxu0 0
    %404 = vmatpush2.bf16.msra.mxu0 %v364
    %405 = vmatprep.subr.bf16.mxu0 0
    %406 = vmatpush2.bf16.msra.mxu0 %v363
    %407 = vmatprep.subr.bf16.mxu0 0
    %408 = vmatpush2.bf16.msra.mxu0 %v362
    %409 = vmatprep.subr.bf16.mxu0 0
    %410 = vmatpush2.bf16.msra.mxu0 %v361
    %411 = vmatprep.subr.bf16.mxu0 0
    %412 = vmatpush2.bf16.msra.mxu0 %v360
    %413 = vmatprep.subr.bf16.mxu0 0
    %414 = vmatpush2.bf16.msra.mxu0 %v359
    %415 = vmatprep.mubr.bf16.mxu0 %v110
    %416 = vmatmul.mubr.bf16.gmra.mxu0 %v109
    %v417 = vpop.f32.mrf.mxu0
    %v418 = vadd.f32 0.0, %v417
    %v419 = vpop.f32.mrf.mxu0
    %v420 = vpop.f32.mrf.mxu0
    %v421 = vpop.f32.mrf.mxu0
    %422 = vdwg.mxu0
    %423 = vmatprep.subr.bf16.mxu0 0
    %424 = vmatpush1.bf16.msra.mxu0 %v358
    %425 = vmatprep.subr.bf16.mxu0 0
    %426 = vmatpush1.bf16.msra.mxu0 %v357
    %427 = vmatprep.subr.bf16.mxu0 0
    %428 = vmatpush1.bf16.msra.mxu0 %v356
    %429 = vmatprep.subr.bf16.mxu0 0
    %430 = vmatpush1.bf16.msra.mxu0 %v355
    %431 = vmatprep.subr.bf16.mxu0 0
    %432 = vmatpush1.bf16.msra.mxu0 %v354
    %433 = vmatprep.subr.bf16.mxu0 0
    %434 = vmatpush1.bf16.msra.mxu0 %v353
    %435 = vmatprep.subr.bf16.mxu0 0
    %436 = vmatpush1.bf16.msra.mxu0 %v352
    %437 = vmatprep.subr.bf16.mxu0 0
    %438 = vmatpush1.bf16.msra.mxu0 %v351
    %439 = vmatprep.subr.bf16.mxu0 0
    %440 = vmatpush2.bf16.msra.mxu0 %v366
    %441 = vmatprep.subr.bf16.mxu0 0
    %442 = vmatpush2.bf16.msra.mxu0 %v365
    %443 = vmatprep.subr.bf16.mxu0 0
    %444 = vmatpush2.bf16.msra.mxu0 %v364
    %445 = vmatprep.subr.bf16.mxu0 0
    %446 = vmatpush2.bf16.msra.mxu0 %v363
    %447 = vmatprep.subr.bf16.mxu0 0
    %448 = vmatpush2.bf16.msra.mxu0 %v362
    %449 = vmatprep.subr.bf16.mxu0 0
    %450 = vmatpush2.bf16.msra.mxu0 %v361
    %451 = vmatprep.subr.bf16.mxu0 0
    %452 = vmatpush2.bf16.msra.mxu0 %v360
    %453 = vmatprep.subr.bf16.mxu0 0
    %454 = vmatpush2.bf16.msra.mxu0 %v359
    %455 = vmatprep.mubr.bf16.mxu0 %v104
    %456 = vmatmul.mubr.bf16.gmra.mxu0 %v103
    %v457 = vpop.f32.mrf.mxu0
    %v458 = vadd.f32 %v418, %v457
    %v459 = vpop.f32.mrf.mxu0
    %v460 = vpop.f32.mrf.mxu0
    %v461 = vpop.f32.mrf.mxu0
    %462 = vdwg.mxu0
    %v463 = vld [vmem:[%s3] sm:$0xff]
    %v464 = vld [vmem:[%s3 + $0x8] sm:$0xff]
    %v465 = vld [vmem:[%s5] sm:$0xff]
    %v466 = vld [vmem:[%s5 + $0x8] sm:$0xff]
    %468 = vset.pattern.permute.xlu0 0
    %469 = vperm.xlu0 %468, %v465
    %v470 = vpop.permute.xlu0 %469
    %473 = vset.pattern.permute.xlu0 0
    %474 = vperm.xlu0 %473, %v466
    %v475 = vpop.permute.xlu0 %474
    %vm477 = vcmask 64512
    %v479 = vsel %vm477, %v463, 0
    %v482 = vsel %vm477, %v464, 0
    %484 = vmatprep.subr.mxu0 0.0
    %485 = vmatpush1.msra.mxu0 0.0
    %486 = vmatprep.subr.mxu0 0.0
    %487 = vmatpush1.msra.mxu0 0.0
    %488 = vmatprep.subr.mxu0 0.0
    %489 = vmatpush1.msra.mxu0 0.0
    %490 = vmatprep.subr.mxu0 0.0
    %491 = vmatpush1.msra.mxu0 0.0
    %492 = vmatprep.subr.mxu0 0.0
    %493 = vmatpush1.msra.mxu0 0.0
    %494 = vmatprep.subr.mxu0 0.0
    %495 = vmatpush1.msra.mxu0 0.0
    %496 = vmatprep.subr.mxu0 0.0
    %497 = vmatpush1.msra.mxu0 0.0
    %498 = vmatprep.subr.mxu0 0.0
    %499 = vmatpush1.msra.mxu0 0.0
    %500 = vmatprep.subr.mxu0 0.0
    %501 = vmatpush1.msra.mxu0 0.0
    %502 = vmatprep.subr.mxu0 0.0
    %503 = vmatpush1.msra.mxu0 0.0
    %504 = vmatprep.subr.mxu0 0.0
    %505 = vmatpush1.msra.mxu0 0.0
    %506 = vmatprep.subr.mxu0 0.0
    %507 = vmatpush1.msra.mxu0 0.0
    %508 = vmatprep.subr.mxu0 0.0
    %509 = vmatpush1.msra.mxu0 0.0
    %510 = vmatprep.subr.mxu0 0.0
    %511 = vmatpush1.msra.mxu0 0.0
    %512 = vmatprep.subr.mxu0 0.0
    %513 = vmatpush1.msra.mxu0 0.0
    %514 = vmatprep.subr.mxu0 0.0
    %v515 = vand.u32 %v282, 4294901760
    %516 = vmatpush1.msra.mxu0 %v515
    %517 = vmatprep.subr.mxu0 0.0
    %518 = vmatpush2.msra.mxu0 0.0
    %519 = vmatprep.subr.mxu0 0.0
    %520 = vmatpush2.msra.mxu0 0.0
    %521 = vmatprep.subr.mxu0 0.0
    %522 = vmatpush2.msra.mxu0 0.0
    %523 = vmatprep.subr.mxu0 0.0
    %524 = vmatpush2.msra.mxu0 0.0
    %525 = vmatprep.subr.mxu0 0.0
    %526 = vmatpush2.msra.mxu0 0.0
    %527 = vmatprep.subr.mxu0 0.0
    %528 = vmatpush2.msra.mxu0 0.0
    %529 = vmatprep.subr.mxu0 0.0
    %530 = vmatpush2.msra.mxu0 0.0
    %531 = vmatprep.subr.mxu0 0.0
    %532 = vmatpush2.msra.mxu0 0.0
    %533 = vmatprep.subr.mxu0 0.0
    %534 = vmatpush2.msra.mxu0 0.0
    %535 = vmatprep.subr.mxu0 0.0
    %536 = vmatpush2.msra.mxu0 0.0
    %537 = vmatprep.subr.mxu0 0.0
    %538 = vmatpush2.msra.mxu0 0.0
    %539 = vmatprep.subr.mxu0 0.0
    %540 = vmatpush2.msra.mxu0 0.0
    %541 = vmatprep.subr.mxu0 0.0
    %542 = vmatpush2.msra.mxu0 0.0
    %543 = vmatprep.subr.mxu0 0.0
    %544 = vmatpush2.msra.mxu0 0.0
    %545 = vmatprep.subr.mxu0 0.0
    %546 = vmatpush2.msra.mxu0 0.0
    %547 = vmatprep.subr.mxu0 0.0
    %548 = vmatpush2.msra.mxu0 0.0
    %549 = vmatprep.mubr.f32.mxu0 0.0
    %v550 = vand.u32 %v479, 4294901760
    %v551 = vsub.f32 %v479, %v550
    %v552 = vand.u32 %v551, 4294901760
    %v553 = vsub.f32 %v551, %v552
    %v554 = vand.u32 %v553, 4294901760
    %555 = vmatmul.mubr.f32.gmra.mxu0 %v554
    %v556 = vpop.f32.mrf.mxu0
    %v557 = vadd.f32 %v470, %v556
    %v558 = vpop.f32.mrf.mxu0
    %559 = vmatprep.mubr.f32.mxu0 0.0
    %v560 = vand.u32 %v482, 4294901760
    %v561 = vsub.f32 %v482, %v560
    %v562 = vand.u32 %v561, 4294901760
    %v563 = vsub.f32 %v561, %v562
    %v564 = vand.u32 %v563, 4294901760
    %565 = vmatmul.mubr.f32.gmra.mxu0 %v564
    %v566 = vpop.f32.mrf.mxu0
    %v567 = vadd.f32 %v475, %v566
    %v568 = vpop.f32.mrf.mxu0
    %569 = vdwg.mxu0
    %570 = vmatprep.subr.mxu0 0.0
    %571 = vmatpush1.msra.mxu0 0.0
    %572 = vmatprep.subr.mxu0 0.0
    %573 = vmatpush1.msra.mxu0 0.0
    %574 = vmatprep.subr.mxu0 0.0
    %575 = vmatpush1.msra.mxu0 0.0
    %576 = vmatprep.subr.mxu0 0.0
    %577 = vmatpush1.msra.mxu0 0.0
    %578 = vmatprep.subr.mxu0 0.0
    %579 = vmatpush1.msra.mxu0 0.0
    %580 = vmatprep.subr.mxu0 0.0
    %581 = vmatpush1.msra.mxu0 0.0
    %582 = vmatprep.subr.mxu0 0.0
    %583 = vmatpush1.msra.mxu0 0.0
    %584 = vmatprep.subr.mxu0 0.0
    %585 = vmatpush1.msra.mxu0 0.0
    %586 = vmatprep.subr.mxu0 0.0
    %587 = vmatpush1.msra.mxu0 0.0
    %588 = vmatprep.subr.mxu0 0.0
    %589 = vmatpush1.msra.mxu0 0.0
    %590 = vmatprep.subr.mxu0 0.0
    %591 = vmatpush1.msra.mxu0 0.0
    %592 = vmatprep.subr.mxu0 0.0
    %593 = vmatpush1.msra.mxu0 0.0
    %594 = vmatprep.subr.mxu0 0.0
    %595 = vmatpush1.msra.mxu0 0.0
    %596 = vmatprep.subr.mxu0 0.0
    %597 = vmatpush1.msra.mxu0 0.0
    %598 = vmatprep.subr.mxu0 0.0
    %599 = vmatpush1.msra.mxu0 0.0
    %600 = vmatprep.subr.mxu0 0.0
    %v601 = vand.u32 %v282, 4294901760
    %v602 = vsub.f32 %v282, %v601
    %v603 = vand.u32 %v602, 4294901760
    %v604 = vsub.f32 %v602, %v603
    %v605 = vand.u32 %v604, 4294901760
    %606 = vmatpush1.msra.mxu0 %v605
    %607 = vmatprep.subr.mxu0 0.0
    %608 = vmatpush2.msra.mxu0 0.0
    %609 = vmatprep.subr.mxu0 0.0
    %610 = vmatpush2.msra.mxu0 0.0
    %611 = vmatprep.subr.mxu0 0.0
    %612 = vmatpush2.msra.mxu0 0.0
    %613 = vmatprep.subr.mxu0 0.0
    %614 = vmatpush2.msra.mxu0 0.0
    %615 = vmatprep.subr.mxu0 0.0
    %616 = vmatpush2.msra.mxu0 0.0
    %617 = vmatprep.subr.mxu0 0.0
    %618 = vmatpush2.msra.mxu0 0.0
    %619 = vmatprep.subr.mxu0 0.0
    %620 = vmatpush2.msra.mxu0 0.0
    %621 = vmatprep.subr.mxu0 0.0
    %622 = vmatpush2.msra.mxu0 0.0
    %623 = vmatprep.subr.mxu0 0.0
    %624 = vmatpush2.msra.mxu0 0.0
    %625 = vmatprep.subr.mxu0 0.0
    %626 = vmatpush2.msra.mxu0 0.0
    %627 = vmatprep.subr.mxu0 0.0
    %628 = vmatpush2.msra.mxu0 0.0
    %629 = vmatprep.subr.mxu0 0.0
    %630 = vmatpush2.msra.mxu0 0.0
    %631 = vmatprep.subr.mxu0 0.0
    %632 = vmatpush2.msra.mxu0 0.0
    %633 = vmatprep.subr.mxu0 0.0
    %634 = vmatpush2.msra.mxu0 0.0
    %635 = vmatprep.subr.mxu0 0.0
    %636 = vmatpush2.msra.mxu0 0.0
    %637 = vmatprep.subr.mxu0 0.0
    %638 = vmatpush2.msra.mxu0 0.0
    %639 = vmatprep.mubr.f32.mxu0 0.0
    %v640 = vand.u32 %v479, 4294901760
    %641 = vmatmul.mubr.f32.gmra.mxu0 %v640
    %v642 = vpop.f32.mrf.mxu0
    %v643 = vadd.f32 %v557, %v642
    %v644 = vpop.f32.mrf.mxu0
    %645 = vmatprep.mubr.f32.mxu0 0.0
    %v646 = vand.u32 %v482, 4294901760
    %647 = vmatmul.mubr.f32.gmra.mxu0 %v646
    %v648 = vpop.f32.mrf.mxu0
    %v649 = vadd.f32 %v567, %v648
    %v650 = vpop.f32.mrf.mxu0
    %651 = vdwg.mxu0
    %652 = vmatprep.subr.mxu0 0.0
    %653 = vmatpush1.msra.mxu0 0.0
    %654 = vmatprep.subr.mxu0 0.0
    %655 = vmatpush1.msra.mxu0 0.0
    %656 = vmatprep.subr.mxu0 0.0
    %657 = vmatpush1.msra.mxu0 0.0
    %658 = vmatprep.subr.mxu0 0.0
    %659 = vmatpush1.msra.mxu0 0.0
    %660 = vmatprep.subr.mxu0 0.0
    %661 = vmatpush1.msra.mxu0 0.0
    %662 = vmatprep.subr.mxu0 0.0
    %663 = vmatpush1.msra.mxu0 0.0
    %664 = vmatprep.subr.mxu0 0.0
    %665 = vmatpush1.msra.mxu0 0.0
    %666 = vmatprep.subr.mxu0 0.0
    %667 = vmatpush1.msra.mxu0 0.0
    %668 = vmatprep.subr.mxu0 0.0
    %669 = vmatpush1.msra.mxu0 0.0
    %670 = vmatprep.subr.mxu0 0.0
    %671 = vmatpush1.msra.mxu0 0.0
    %672 = vmatprep.subr.mxu0 0.0
    %673 = vmatpush1.msra.mxu0 0.0
    %674 = vmatprep.subr.mxu0 0.0
    %675 = vmatpush1.msra.mxu0 0.0
    %676 = vmatprep.subr.mxu0 0.0
    %677 = vmatpush1.msra.mxu0 0.0
    %678 = vmatprep.subr.mxu0 0.0
    %679 = vmatpush1.msra.mxu0 0.0
    %680 = vmatprep.subr.mxu0 0.0
    %681 = vmatpush1.msra.mxu0 0.0
    %682 = vmatprep.subr.mxu0 0.0
    %v683 = vand.u32 %v282, 4294901760
    %v684 = vsub.f32 %v282, %v683
    %685 = vmatpush1.msra.mxu0 %v684
    %686 = vmatprep.subr.mxu0 0.0
    %687 = vmatpush2.msra.mxu0 0.0
    %688 = vmatprep.subr.mxu0 0.0
    %689 = vmatpush2.msra.mxu0 0.0
    %690 = vmatprep.subr.mxu0 0.0
    %691 = vmatpush2.msra.mxu0 0.0
    %692 = vmatprep.subr.mxu0 0.0
    %693 = vmatpush2.msra.mxu0 0.0
    %694 = vmatprep.subr.mxu0 0.0
    %695 = vmatpush2.msra.mxu0 0.0
    %696 = vmatprep.subr.mxu0 0.0
    %697 = vmatpush2.msra.mxu0 0.0
    %698 = vmatprep.subr.mxu0 0.0
    %699 = vmatpush2.msra.mxu0 0.0
    %700 = vmatprep.subr.mxu0 0.0
    %701 = vmatpush2.msra.mxu0 0.0
    %702 = vmatprep.subr.mxu0 0.0
    %703 = vmatpush2.msra.mxu0 0.0
    %704 = vmatprep.subr.mxu0 0.0
    %705 = vmatpush2.msra.mxu0 0.0
    %706 = vmatprep.subr.mxu0 0.0
    %707 = vmatpush2.msra.mxu0 0.0
    %708 = vmatprep.subr.mxu0 0.0
    %709 = vmatpush2.msra.mxu0 0.0
    %710 = vmatprep.subr.mxu0 0.0
    %711 = vmatpush2.msra.mxu0 0.0
    %712 = vmatprep.subr.mxu0 0.0
    %713 = vmatpush2.msra.mxu0 0.0
    %714 = vmatprep.subr.mxu0 0.0
    %715 = vmatpush2.msra.mxu0 0.0
    %716 = vmatprep.subr.mxu0 0.0
    %717 = vmatpush2.msra.mxu0 0.0
    %718 = vmatprep.mubr.f32.mxu0 0.0
    %v719 = vand.u32 %v479, 4294901760
    %v720 = vsub.f32 %v479, %v719
    %721 = vmatmul.mubr.f32.gmra.mxu0 %v720
    %v722 = vpop.f32.mrf.mxu0
    %v723 = vadd.f32 %v643, %v722
    %v724 = vpop.f32.mrf.mxu0
    %725 = vmatprep.mubr.f32.mxu0 0.0
    %v726 = vand.u32 %v482, 4294901760
    %v727 = vsub.f32 %v482, %v726
    %728 = vmatmul.mubr.f32.gmra.mxu0 %v727
    %v729 = vpop.f32.mrf.mxu0
    %v730 = vadd.f32 %v649, %v729
    %v731 = vpop.f32.mrf.mxu0
    %732 = vdwg.mxu0
    %733 = vmatprep.subr.mxu0 0.0
    %734 = vmatpush1.msra.mxu0 0.0
    %735 = vmatprep.subr.mxu0 0.0
    %736 = vmatpush1.msra.mxu0 0.0
    %737 = vmatprep.subr.mxu0 0.0
    %738 = vmatpush1.msra.mxu0 0.0
    %739 = vmatprep.subr.mxu0 0.0
    %740 = vmatpush1.msra.mxu0 0.0
    %741 = vmatprep.subr.mxu0 0.0
    %742 = vmatpush1.msra.mxu0 0.0
    %743 = vmatprep.subr.mxu0 0.0
    %744 = vmatpush1.msra.mxu0 0.0
    %745 = vmatprep.subr.mxu0 0.0
    %746 = vmatpush1.msra.mxu0 0.0
    %747 = vmatprep.subr.mxu0 0.0
    %748 = vmatpush1.msra.mxu0 0.0
    %749 = vmatprep.subr.mxu0 0.0
    %750 = vmatpush1.msra.mxu0 0.0
    %751 = vmatprep.subr.mxu0 0.0
    %752 = vmatpush1.msra.mxu0 0.0
    %753 = vmatprep.subr.mxu0 0.0
    %754 = vmatpush1.msra.mxu0 0.0
    %755 = vmatprep.subr.mxu0 0.0
    %756 = vmatpush1.msra.mxu0 0.0
    %757 = vmatprep.subr.mxu0 0.0
    %758 = vmatpush1.msra.mxu0 0.0
    %759 = vmatprep.subr.mxu0 0.0
    %760 = vmatpush1.msra.mxu0 0.0
    %761 = vmatprep.subr.mxu0 0.0
    %762 = vmatpush1.msra.mxu0 0.0
    %763 = vmatprep.subr.mxu0 0.0
    %v764 = vand.u32 %v282, 4294901760
    %765 = vmatpush1.msra.mxu0 %v764
    %766 = vmatprep.subr.mxu0 0.0
    %767 = vmatpush2.msra.mxu0 0.0
    %768 = vmatprep.subr.mxu0 0.0
    %769 = vmatpush2.msra.mxu0 0.0
    %770 = vmatprep.subr.mxu0 0.0
    %771 = vmatpush2.msra.mxu0 0.0
    %772 = vmatprep.subr.mxu0 0.0
    %773 = vmatpush2.msra.mxu0 0.0
    %774 = vmatprep.subr.mxu0 0.0
    %775 = vmatpush2.msra.mxu0 0.0
    %776 = vmatprep.subr.mxu0 0.0
    %777 = vmatpush2.msra.mxu0 0.0
    %778 = vmatprep.subr.mxu0 0.0
    %779 = vmatpush2.msra.mxu0 0.0
    %780 = vmatprep.subr.mxu0 0.0
    %781 = vmatpush2.msra.mxu0 0.0
    %782 = vmatprep.subr.mxu0 0.0
    %783 = vmatpush2.msra.mxu0 0.0
    %784 = vmatprep.subr.mxu0 0.0
    %785 = vmatpush2.msra.mxu0 0.0
    %786 = vmatprep.subr.mxu0 0.0
    %787 = vmatpush2.msra.mxu0 0.0
    %788 = vmatprep.subr.mxu0 0.0
    %789 = vmatpush2.msra.mxu0 0.0
    %790 = vmatprep.subr.mxu0 0.0
    %791 = vmatpush2.msra.mxu0 0.0
    %792 = vmatprep.subr.mxu0 0.0
    %793 = vmatpush2.msra.mxu0 0.0
    %794 = vmatprep.subr.mxu0 0.0
    %795 = vmatpush2.msra.mxu0 0.0
    %796 = vmatprep.subr.mxu0 0.0
    %797 = vmatpush2.msra.mxu0 0.0
    %798 = vmatprep.mubr.f32.mxu0 0.0
    %v799 = vand.u32 %v479, 4294901760
    %v800 = vsub.f32 %v479, %v799
    %v801 = vand.u32 %v800, 4294901760
    %802 = vmatmul.mubr.f32.gmra.mxu0 %v801
    %v803 = vpop.f32.mrf.mxu0
    %v804 = vadd.f32 %v723, %v803
    %v805 = vpop.f32.mrf.mxu0
    %806 = vmatprep.mubr.f32.mxu0 0.0
    %v807 = vand.u32 %v482, 4294901760
    %v808 = vsub.f32 %v482, %v807
    %v809 = vand.u32 %v808, 4294901760
    %810 = vmatmul.mubr.f32.gmra.mxu0 %v809
    %v811 = vpop.f32.mrf.mxu0
    %v812 = vadd.f32 %v730, %v811
    %v813 = vpop.f32.mrf.mxu0
    %814 = vdwg.mxu0
    %815 = vmatprep.subr.mxu0 0.0
    %816 = vmatpush1.msra.mxu0 0.0
    %817 = vmatprep.subr.mxu0 0.0
    %818 = vmatpush1.msra.mxu0 0.0
    %819 = vmatprep.subr.mxu0 0.0
    %820 = vmatpush1.msra.mxu0 0.0
    %821 = vmatprep.subr.mxu0 0.0
    %822 = vmatpush1.msra.mxu0 0.0
    %823 = vmatprep.subr.mxu0 0.0
    %824 = vmatpush1.msra.mxu0 0.0
    %825 = vmatprep.subr.mxu0 0.0
    %826 = vmatpush1.msra.mxu0 0.0
    %827 = vmatprep.subr.mxu0 0.0
    %828 = vmatpush1.msra.mxu0 0.0
    %829 = vmatprep.subr.mxu0 0.0
    %830 = vmatpush1.msra.mxu0 0.0
    %831 = vmatprep.subr.mxu0 0.0
    %832 = vmatpush1.msra.mxu0 0.0
    %833 = vmatprep.subr.mxu0 0.0
    %834 = vmatpush1.msra.mxu0 0.0
    %835 = vmatprep.subr.mxu0 0.0
    %836 = vmatpush1.msra.mxu0 0.0
    %837 = vmatprep.subr.mxu0 0.0
    %838 = vmatpush1.msra.mxu0 0.0
    %839 = vmatprep.subr.mxu0 0.0
    %840 = vmatpush1.msra.mxu0 0.0
    %841 = vmatprep.subr.mxu0 0.0
    %842 = vmatpush1.msra.mxu0 0.0
    %843 = vmatprep.subr.mxu0 0.0
    %844 = vmatpush1.msra.mxu0 0.0
    %845 = vmatprep.subr.mxu0 0.0
    %v846 = vand.u32 %v282, 4294901760
    %v847 = vsub.f32 %v282, %v846
    %v848 = vand.u32 %v847, 4294901760
    %849 = vmatpush1.msra.mxu0 %v848
    %850 = vmatprep.subr.mxu0 0.0
    %851 = vmatpush2.msra.mxu0 0.0
    %852 = vmatprep.subr.mxu0 0.0
    %853 = vmatpush2.msra.mxu0 0.0
    %854 = vmatprep.subr.mxu0 0.0
    %855 = vmatpush2.msra.mxu0 0.0
    %856 = vmatprep.subr.mxu0 0.0
    %857 = vmatpush2.msra.mxu0 0.0
    %858 = vmatprep.subr.mxu0 0.0
    %859 = vmatpush2.msra.mxu0 0.0
    %860 = vmatprep.subr.mxu0 0.0
    %861 = vmatpush2.msra.mxu0 0.0
    %862 = vmatprep.subr.mxu0 0.0
    %863 = vmatpush2.msra.mxu0 0.0
    %864 = vmatprep.subr.mxu0 0.0
    %865 = vmatpush2.msra.mxu0 0.0
    %866 = vmatprep.subr.mxu0 0.0
    %867 = vmatpush2.msra.mxu0 0.0
    %868 = vmatprep.subr.mxu0 0.0
    %869 = vmatpush2.msra.mxu0 0.0
    %870 = vmatprep.subr.mxu0 0.0
    %871 = vmatpush2.msra.mxu0 0.0
    %872 = vmatprep.subr.mxu0 0.0
    %873 = vmatpush2.msra.mxu0 0.0
    %874 = vmatprep.subr.mxu0 0.0
    %875 = vmatpush2.msra.mxu0 0.0
    %876 = vmatprep.subr.mxu0 0.0
    %877 = vmatpush2.msra.mxu0 0.0
    %878 = vmatprep.subr.mxu0 0.0
    %879 = vmatpush2.msra.mxu0 0.0
    %880 = vmatprep.subr.mxu0 0.0
    %881 = vmatpush2.msra.mxu0 0.0
    %882 = vmatprep.mubr.f32.mxu0 0.0
    %v883 = vand.u32 %v479, 4294901760
    %884 = vmatmul.mubr.f32.gmra.mxu0 %v883
    %v885 = vpop.f32.mrf.mxu0
    %v886 = vadd.f32 %v804, %v885
    %v887 = vpop.f32.mrf.mxu0
    %888 = vmatprep.mubr.f32.mxu0 0.0
    %v889 = vand.u32 %v482, 4294901760
    %890 = vmatmul.mubr.f32.gmra.mxu0 %v889
    %v891 = vpop.f32.mrf.mxu0
    %v892 = vadd.f32 %v812, %v891
    %v893 = vpop.f32.mrf.mxu0
    %894 = vdwg.mxu0
    %895 = vmatprep.subr.mxu0 0.0
    %896 = vmatpush1.msra.mxu0 0.0
    %897 = vmatprep.subr.mxu0 0.0
    %898 = vmatpush1.msra.mxu0 0.0
    %899 = vmatprep.subr.mxu0 0.0
    %900 = vmatpush1.msra.mxu0 0.0
    %901 = vmatprep.subr.mxu0 0.0
    %902 = vmatpush1.msra.mxu0 0.0
    %903 = vmatprep.subr.mxu0 0.0
    %904 = vmatpush1.msra.mxu0 0.0
    %905 = vmatprep.subr.mxu0 0.0
    %906 = vmatpush1.msra.mxu0 0.0
    %907 = vmatprep.subr.mxu0 0.0
    %908 = vmatpush1.msra.mxu0 0.0
    %909 = vmatprep.subr.mxu0 0.0
    %910 = vmatpush1.msra.mxu0 0.0
    %911 = vmatprep.subr.mxu0 0.0
    %912 = vmatpush1.msra.mxu0 0.0
    %913 = vmatprep.subr.mxu0 0.0
    %914 = vmatpush1.msra.mxu0 0.0
    %915 = vmatprep.subr.mxu0 0.0
    %916 = vmatpush1.msra.mxu0 0.0
    %917 = vmatprep.subr.mxu0 0.0
    %918 = vmatpush1.msra.mxu0 0.0
    %919 = vmatprep.subr.mxu0 0.0
    %920 = vmatpush1.msra.mxu0 0.0
    %921 = vmatprep.subr.mxu0 0.0
    %922 = vmatpush1.msra.mxu0 0.0
    %923 = vmatprep.subr.mxu0 0.0
    %924 = vmatpush1.msra.mxu0 0.0
    %925 = vmatprep.subr.mxu0 0.0
    %v926 = vand.u32 %v282, 4294901760
    %927 = vmatpush1.msra.mxu0 %v926
    %928 = vmatprep.subr.mxu0 0.0
    %929 = vmatpush2.msra.mxu0 0.0
    %930 = vmatprep.subr.mxu0 0.0
    %931 = vmatpush2.msra.mxu0 0.0
    %932 = vmatprep.subr.mxu0 0.0
    %933 = vmatpush2.msra.mxu0 0.0
    %934 = vmatprep.subr.mxu0 0.0
    %935 = vmatpush2.msra.mxu0 0.0
    %936 = vmatprep.subr.mxu0 0.0
    %937 = vmatpush2.msra.mxu0 0.0
    %938 = vmatprep.subr.mxu0 0.0
    %939 = vmatpush2.msra.mxu0 0.0
    %940 = vmatprep.subr.mxu0 0.0
    %941 = vmatpush2.msra.mxu0 0.0
    %942 = vmatprep.subr.mxu0 0.0
    %943 = vmatpush2.msra.mxu0 0.0
    %944 = vmatprep.subr.mxu0 0.0
    %945 = vmatpush2.msra.mxu0 0.0
    %946 = vmatprep.subr.mxu0 0.0
    %947 = vmatpush2.msra.mxu0 0.0
    %948 = vmatprep.subr.mxu0 0.0
    %949 = vmatpush2.msra.mxu0 0.0
    %950 = vmatprep.subr.mxu0 0.0
    %951 = vmatpush2.msra.mxu0 0.0
    %952 = vmatprep.subr.mxu0 0.0
    %953 = vmatpush2.msra.mxu0 0.0
    %954 = vmatprep.subr.mxu0 0.0
    %955 = vmatpush2.msra.mxu0 0.0
    %956 = vmatprep.subr.mxu0 0.0
    %957 = vmatpush2.msra.mxu0 0.0
    %958 = vmatprep.subr.mxu0 0.0
    %959 = vmatpush2.msra.mxu0 0.0
    %960 = vmatprep.mubr.f32.mxu0 0.0
    %v961 = vand.u32 %v479, 4294901760
    %962 = vmatmul.mubr.f32.gmra.mxu0 %v961
    %v963 = vpop.f32.mrf.mxu0
    %v964 = vadd.f32 %v886, %v963
    %v965 = vpop.f32.mrf.mxu0
    %966 = vmatprep.mubr.f32.mxu0 0.0
    %v967 = vand.u32 %v482, 4294901760
    %968 = vmatmul.mubr.f32.gmra.mxu0 %v967
    %v969 = vpop.f32.mrf.mxu0
    %v970 = vadd.f32 %v892, %v969
    %v971 = vpop.f32.mrf.mxu0
    %972 = vdwg.mxu0
    %v973 = vld [vmem:[%s4] sm:$0xff]
    %v974 = vld [vmem:[%s4 + $0x8] sm:$0xff]
    %v976 = vsel %vm477, %v973, 0
    %v979 = vsel %vm477, %v974, 0
    %981 = vmatprep.subr.mxu0 0.0
    %982 = vmatpush1.msra.mxu0 0.0
    %983 = vmatprep.subr.mxu0 0.0
    %984 = vmatpush1.msra.mxu0 0.0
    %985 = vmatprep.subr.mxu0 0.0
    %986 = vmatpush1.msra.mxu0 0.0
    %987 = vmatprep.subr.mxu0 0.0
    %988 = vmatpush1.msra.mxu0 0.0
    %989 = vmatprep.subr.mxu0 0.0
    %990 = vmatpush1.msra.mxu0 0.0
    %991 = vmatprep.subr.mxu0 0.0
    %992 = vmatpush1.msra.mxu0 0.0
    %993 = vmatprep.subr.mxu0 0.0
    %994 = vmatpush1.msra.mxu0 0.0
    %995 = vmatprep.subr.mxu0 0.0
    %996 = vmatpush1.msra.mxu0 0.0
    %997 = vmatprep.subr.mxu0 0.0
    %998 = vmatpush1.msra.mxu0 0.0
    %999 = vmatprep.subr.mxu0 0.0
    %1000 = vmatpush1.msra.mxu0 0.0
    %1001 = vmatprep.subr.mxu0 0.0
    %1002 = vmatpush1.msra.mxu0 0.0
    %1003 = vmatprep.subr.mxu0 0.0
    %1004 = vmatpush1.msra.mxu0 0.0
    %1005 = vmatprep.subr.mxu0 0.0
    %1006 = vmatpush1.msra.mxu0 0.0
    %1007 = vmatprep.subr.mxu0 0.0
    %1008 = vmatpush1.msra.mxu0 0.0
    %1009 = vmatprep.subr.mxu0 0.0
    %1010 = vmatpush1.msra.mxu0 0.0
    %1011 = vmatprep.subr.mxu0 0.0
    %v1012 = vand.u32 %v458, 4294901760
    %1013 = vmatpush1.msra.mxu0 %v1012
    %1014 = vmatprep.subr.mxu0 0.0
    %1015 = vmatpush2.msra.mxu0 0.0
    %1016 = vmatprep.subr.mxu0 0.0
    %1017 = vmatpush2.msra.mxu0 0.0
    %1018 = vmatprep.subr.mxu0 0.0
    %1019 = vmatpush2.msra.mxu0 0.0
    %1020 = vmatprep.subr.mxu0 0.0
    %1021 = vmatpush2.msra.mxu0 0.0
    %1022 = vmatprep.subr.mxu0 0.0
    %1023 = vmatpush2.msra.mxu0 0.0
    %1024 = vmatprep.subr.mxu0 0.0
    %1025 = vmatpush2.msra.mxu0 0.0
    %1026 = vmatprep.subr.mxu0 0.0
    %1027 = vmatpush2.msra.mxu0 0.0
    %1028 = vmatprep.subr.mxu0 0.0
    %1029 = vmatpush2.msra.mxu0 0.0
    %1030 = vmatprep.subr.mxu0 0.0
    %1031 = vmatpush2.msra.mxu0 0.0
    %1032 = vmatprep.subr.mxu0 0.0
    %1033 = vmatpush2.msra.mxu0 0.0
    %1034 = vmatprep.subr.mxu0 0.0
    %1035 = vmatpush2.msra.mxu0 0.0
    %1036 = vmatprep.subr.mxu0 0.0
    %1037 = vmatpush2.msra.mxu0 0.0
    %1038 = vmatprep.subr.mxu0 0.0
    %1039 = vmatpush2.msra.mxu0 0.0
    %1040 = vmatprep.subr.mxu0 0.0
    %1041 = vmatpush2.msra.mxu0 0.0
    %1042 = vmatprep.subr.mxu0 0.0
    %1043 = vmatpush2.msra.mxu0 0.0
    %1044 = vmatprep.subr.mxu0 0.0
    %1045 = vmatpush2.msra.mxu0 0.0
    %1046 = vmatprep.mubr.f32.mxu0 0.0
    %v1047 = vand.u32 %v976, 4294901760
    %v1048 = vsub.f32 %v976, %v1047
    %v1049 = vand.u32 %v1048, 4294901760
    %v1050 = vsub.f32 %v1048, %v1049
    %v1051 = vand.u32 %v1050, 4294901760
    %1052 = vmatmul.mubr.f32.gmra.mxu0 %v1051
    %v1053 = vpop.f32.mrf.mxu0
    %v1054 = vadd.f32 %v470, %v1053
    %v1055 = vpop.f32.mrf.mxu0
    %1056 = vmatprep.mubr.f32.mxu0 0.0
    %v1057 = vand.u32 %v979, 4294901760
    %v1058 = vsub.f32 %v979, %v1057
    %v1059 = vand.u32 %v1058, 4294901760
    %v1060 = vsub.f32 %v1058, %v1059
    %v1061 = vand.u32 %v1060, 4294901760
    %1062 = vmatmul.mubr.f32.gmra.mxu0 %v1061
    %v1063 = vpop.f32.mrf.mxu0
    %v1064 = vadd.f32 %v475, %v1063
    %v1065 = vpop.f32.mrf.mxu0
    %1066 = vdwg.mxu0
    %1067 = vmatprep.subr.mxu0 0.0
    %1068 = vmatpush1.msra.mxu0 0.0
    %1069 = vmatprep.subr.mxu0 0.0
    %1070 = vmatpush1.msra.mxu0 0.0
    %1071 = vmatprep.subr.mxu0 0.0
    %1072 = vmatpush1.msra.mxu0 0.0
    %1073 = vmatprep.subr.mxu0 0.0
    %1074 = vmatpush1.msra.mxu0 0.0
    %1075 = vmatprep.subr.mxu0 0.0
    %1076 = vmatpush1.msra.mxu0 0.0
    %1077 = vmatprep.subr.mxu0 0.0
    %1078 = vmatpush1.msra.mxu0 0.0
    %1079 = vmatprep.subr.mxu0 0.0
    %1080 = vmatpush1.msra.mxu0 0.0
    %1081 = vmatprep.subr.mxu0 0.0
    %1082 = vmatpush1.msra.mxu0 0.0
    %1083 = vmatprep.subr.mxu0 0.0
    %1084 = vmatpush1.msra.mxu0 0.0
    %1085 = vmatprep.subr.mxu0 0.0
    %1086 = vmatpush1.msra.mxu0 0.0
    %1087 = vmatprep.subr.mxu0 0.0
    %1088 = vmatpush1.msra.mxu0 0.0
    %1089 = vmatprep.subr.mxu0 0.0
    %1090 = vmatpush1.msra.mxu0 0.0
    %1091 = vmatprep.subr.mxu0 0.0
    %1092 = vmatpush1.msra.mxu0 0.0
    %1093 = vmatprep.subr.mxu0 0.0
    %1094 = vmatpush1.msra.mxu0 0.0
    %1095 = vmatprep.subr.mxu0 0.0
    %1096 = vmatpush1.msra.mxu0 0.0
    %1097 = vmatprep.subr.mxu0 0.0
    %v1098 = vand.u32 %v458, 4294901760
    %v1099 = vsub.f32 %v458, %v1098
    %v1100 = vand.u32 %v1099, 4294901760
    %v1101 = vsub.f32 %v1099, %v1100
    %v1102 = vand.u32 %v1101, 4294901760
    %1103 = vmatpush1.msra.mxu0 %v1102
    %1104 = vmatprep.subr.mxu0 0.0
    %1105 = vmatpush2.msra.mxu0 0.0
    %1106 = vmatprep.subr.mxu0 0.0
    %1107 = vmatpush2.msra.mxu0 0.0
    %1108 = vmatprep.subr.mxu0 0.0
    %1109 = vmatpush2.msra.mxu0 0.0
    %1110 = vmatprep.subr.mxu0 0.0
    %1111 = vmatpush2.msra.mxu0 0.0
    %1112 = vmatprep.subr.mxu0 0.0
    %1113 = vmatpush2.msra.mxu0 0.0
    %1114 = vmatprep.subr.mxu0 0.0
    %1115 = vmatpush2.msra.mxu0 0.0
    %1116 = vmatprep.subr.mxu0 0.0
    %1117 = vmatpush2.msra.mxu0 0.0
    %1118 = vmatprep.subr.mxu0 0.0
    %1119 = vmatpush2.msra.mxu0 0.0
    %1120 = vmatprep.subr.mxu0 0.0
    %1121 = vmatpush2.msra.mxu0 0.0
    %1122 = vmatprep.subr.mxu0 0.0
    %1123 = vmatpush2.msra.mxu0 0.0
    %1124 = vmatprep.subr.mxu0 0.0
    %1125 = vmatpush2.msra.mxu0 0.0
    %1126 = vmatprep.subr.mxu0 0.0
    %1127 = vmatpush2.msra.mxu0 0.0
    %1128 = vmatprep.subr.mxu0 0.0
    %1129 = vmatpush2.msra.mxu0 0.0
    %1130 = vmatprep.subr.mxu0 0.0
    %1131 = vmatpush2.msra.mxu0 0.0
    %1132 = vmatprep.subr.mxu0 0.0
    %1133 = vmatpush2.msra.mxu0 0.0
    %1134 = vmatprep.subr.mxu0 0.0
    %1135 = vmatpush2.msra.mxu0 0.0
    %1136 = vmatprep.mubr.f32.mxu0 0.0
    %v1137 = vand.u32 %v976, 4294901760
    %1138 = vmatmul.mubr.f32.gmra.mxu0 %v1137
    %v1139 = vpop.f32.mrf.mxu0
    %v1140 = vadd.f32 %v1054, %v1139
    %v1141 = vpop.f32.mrf.mxu0
    %1142 = vmatprep.mubr.f32.mxu0 0.0
    %v1143 = vand.u32 %v979, 4294901760
    %1144 = vmatmul.mubr.f32.gmra.mxu0 %v1143
    %v1145 = vpop.f32.mrf.mxu0
    %v1146 = vadd.f32 %v1064, %v1145
    %v1147 = vpop.f32.mrf.mxu0
    %1148 = vdwg.mxu0
    %1149 = vmatprep.subr.mxu0 0.0
    %1150 = vmatpush1.msra.mxu0 0.0
    %1151 = vmatprep.subr.mxu0 0.0
    %1152 = vmatpush1.msra.mxu0 0.0
    %1153 = vmatprep.subr.mxu0 0.0
    %1154 = vmatpush1.msra.mxu0 0.0
    %1155 = vmatprep.subr.mxu0 0.0
    %1156 = vmatpush1.msra.mxu0 0.0
    %1157 = vmatprep.subr.mxu0 0.0
    %1158 = vmatpush1.msra.mxu0 0.0
    %1159 = vmatprep.subr.mxu0 0.0
    %1160 = vmatpush1.msra.mxu0 0.0
    %1161 = vmatprep.subr.mxu0 0.0
    %1162 = vmatpush1.msra.mxu0 0.0
    %1163 = vmatprep.subr.mxu0 0.0
    %1164 = vmatpush1.msra.mxu0 0.0
    %1165 = vmatprep.subr.mxu0 0.0
    %1166 = vmatpush1.msra.mxu0 0.0
    %1167 = vmatprep.subr.mxu0 0.0
    %1168 = vmatpush1.msra.mxu0 0.0
    %1169 = vmatprep.subr.mxu0 0.0
    %1170 = vmatpush1.msra.mxu0 0.0
    %1171 = vmatprep.subr.mxu0 0.0
    %1172 = vmatpush1.msra.mxu0 0.0
    %1173 = vmatprep.subr.mxu0 0.0
    %1174 = vmatpush1.msra.mxu0 0.0
    %1175 = vmatprep.subr.mxu0 0.0
    %1176 = vmatpush1.msra.mxu0 0.0
    %1177 = vmatprep.subr.mxu0 0.0
    %1178 = vmatpush1.msra.mxu0 0.0
    %1179 = vmatprep.subr.mxu0 0.0
    %v1180 = vand.u32 %v458, 4294901760
    %v1181 = vsub.f32 %v458, %v1180
    %1182 = vmatpush1.msra.mxu0 %v1181
    %1183 = vmatprep.subr.mxu0 0.0
    %1184 = vmatpush2.msra.mxu0 0.0
    %1185 = vmatprep.subr.mxu0 0.0
    %1186 = vmatpush2.msra.mxu0 0.0
    %1187 = vmatprep.subr.mxu0 0.0
    %1188 = vmatpush2.msra.mxu0 0.0
    %1189 = vmatprep.subr.mxu0 0.0
    %1190 = vmatpush2.msra.mxu0 0.0
    %1191 = vmatprep.subr.mxu0 0.0
    %1192 = vmatpush2.msra.mxu0 0.0
    %1193 = vmatprep.subr.mxu0 0.0
    %1194 = vmatpush2.msra.mxu0 0.0
    %1195 = vmatprep.subr.mxu0 0.0
    %1196 = vmatpush2.msra.mxu0 0.0
    %1197 = vmatprep.subr.mxu0 0.0
    %1198 = vmatpush2.msra.mxu0 0.0
    %1199 = vmatprep.subr.mxu0 0.0
    %1200 = vmatpush2.msra.mxu0 0.0
    %1201 = vmatprep.subr.mxu0 0.0
    %1202 = vmatpush2.msra.mxu0 0.0
    %1203 = vmatprep.subr.mxu0 0.0
    %1204 = vmatpush2.msra.mxu0 0.0
    %1205 = vmatprep.subr.mxu0 0.0
    %1206 = vmatpush2.msra.mxu0 0.0
    %1207 = vmatprep.subr.mxu0 0.0
    %1208 = vmatpush2.msra.mxu0 0.0
    %1209 = vmatprep.subr.mxu0 0.0
    %1210 = vmatpush2.msra.mxu0 0.0
    %1211 = vmatprep.subr.mxu0 0.0
    %1212 = vmatpush2.msra.mxu0 0.0
    %1213 = vmatprep.subr.mxu0 0.0
    %1214 = vmatpush2.msra.mxu0 0.0
    %1215 = vmatprep.mubr.f32.mxu0 0.0
    %v1216 = vand.u32 %v976, 4294901760
    %v1217 = vsub.f32 %v976, %v1216
    %1218 = vmatmul.mubr.f32.gmra.mxu0 %v1217
    %v1219 = vpop.f32.mrf.mxu0
    %v1220 = vadd.f32 %v1140, %v1219
    %v1221 = vpop.f32.mrf.mxu0
    %1222 = vmatprep.mubr.f32.mxu0 0.0
    %v1223 = vand.u32 %v979, 4294901760
    %v1224 = vsub.f32 %v979, %v1223
    %1225 = vmatmul.mubr.f32.gmra.mxu0 %v1224
    %v1226 = vpop.f32.mrf.mxu0
    %v1227 = vadd.f32 %v1146, %v1226
    %v1228 = vpop.f32.mrf.mxu0
    %1229 = vdwg.mxu0
    %1230 = vmatprep.subr.mxu0 0.0
    %1231 = vmatpush1.msra.mxu0 0.0
    %1232 = vmatprep.subr.mxu0 0.0
    %1233 = vmatpush1.msra.mxu0 0.0
    %1234 = vmatprep.subr.mxu0 0.0
    %1235 = vmatpush1.msra.mxu0 0.0
    %1236 = vmatprep.subr.mxu0 0.0
    %1237 = vmatpush1.msra.mxu0 0.0
    %1238 = vmatprep.subr.mxu0 0.0
    %1239 = vmatpush1.msra.mxu0 0.0
    %1240 = vmatprep.subr.mxu0 0.0
    %1241 = vmatpush1.msra.mxu0 0.0
    %1242 = vmatprep.subr.mxu0 0.0
    %1243 = vmatpush1.msra.mxu0 0.0
    %1244 = vmatprep.subr.mxu0 0.0
    %1245 = vmatpush1.msra.mxu0 0.0
    %1246 = vmatprep.subr.mxu0 0.0
    %1247 = vmatpush1.msra.mxu0 0.0
    %1248 = vmatprep.subr.mxu0 0.0
    %1249 = vmatpush1.msra.mxu0 0.0
    %1250 = vmatprep.subr.mxu0 0.0
    %1251 = vmatpush1.msra.mxu0 0.0
    %1252 = vmatprep.subr.mxu0 0.0
    %1253 = vmatpush1.msra.mxu0 0.0
    %1254 = vmatprep.subr.mxu0 0.0
    %1255 = vmatpush1.msra.mxu0 0.0
    %1256 = vmatprep.subr.mxu0 0.0
    %1257 = vmatpush1.msra.mxu0 0.0
    %1258 = vmatprep.subr.mxu0 0.0
    %1259 = vmatpush1.msra.mxu0 0.0
    %1260 = vmatprep.subr.mxu0 0.0
    %v1261 = vand.u32 %v458, 4294901760
    %1262 = vmatpush1.msra.mxu0 %v1261
    %1263 = vmatprep.subr.mxu0 0.0
    %1264 = vmatpush2.msra.mxu0 0.0
    %1265 = vmatprep.subr.mxu0 0.0
    %1266 = vmatpush2.msra.mxu0 0.0
    %1267 = vmatprep.subr.mxu0 0.0
    %1268 = vmatpush2.msra.mxu0 0.0
    %1269 = vmatprep.subr.mxu0 0.0
    %1270 = vmatpush2.msra.mxu0 0.0
    %1271 = vmatprep.subr.mxu0 0.0
    %1272 = vmatpush2.msra.mxu0 0.0
    %1273 = vmatprep.subr.mxu0 0.0
    %1274 = vmatpush2.msra.mxu0 0.0
    %1275 = vmatprep.subr.mxu0 0.0
    %1276 = vmatpush2.msra.mxu0 0.0
    %1277 = vmatprep.subr.mxu0 0.0
    %1278 = vmatpush2.msra.mxu0 0.0
    %1279 = vmatprep.subr.mxu0 0.0
    %1280 = vmatpush2.msra.mxu0 0.0
    %1281 = vmatprep.subr.mxu0 0.0
    %1282 = vmatpush2.msra.mxu0 0.0
    %1283 = vmatprep.subr.mxu0 0.0
    %1284 = vmatpush2.msra.mxu0 0.0
    %1285 = vmatprep.subr.mxu0 0.0
    %1286 = vmatpush2.msra.mxu0 0.0
    %1287 = vmatprep.subr.mxu0 0.0
    %1288 = vmatpush2.msra.mxu0 0.0
    %1289 = vmatprep.subr.mxu0 0.0
    %1290 = vmatpush2.msra.mxu0 0.0
    %1291 = vmatprep.subr.mxu0 0.0
    %1292 = vmatpush2.msra.mxu0 0.0
    %1293 = vmatprep.subr.mxu0 0.0
    %1294 = vmatpush2.msra.mxu0 0.0
    %1295 = vmatprep.mubr.f32.mxu0 0.0
    %v1296 = vand.u32 %v976, 4294901760
    %v1297 = vsub.f32 %v976, %v1296
    %v1298 = vand.u32 %v1297, 4294901760
    %1299 = vmatmul.mubr.f32.gmra.mxu0 %v1298
    %v1300 = vpop.f32.mrf.mxu0
    %v1301 = vadd.f32 %v1220, %v1300
    %v1302 = vpop.f32.mrf.mxu0
    %1303 = vmatprep.mubr.f32.mxu0 0.0
    %v1304 = vand.u32 %v979, 4294901760
    %v1305 = vsub.f32 %v979, %v1304
    %v1306 = vand.u32 %v1305, 4294901760
    %1307 = vmatmul.mubr.f32.gmra.mxu0 %v1306
    %v1308 = vpop.f32.mrf.mxu0
    %v1309 = vadd.f32 %v1227, %v1308
    %v1310 = vpop.f32.mrf.mxu0
    %1311 = vdwg.mxu0
    %1312 = vmatprep.subr.mxu0 0.0
    %1313 = vmatpush1.msra.mxu0 0.0
    %1314 = vmatprep.subr.mxu0 0.0
    %1315 = vmatpush1.msra.mxu0 0.0
    %1316 = vmatprep.subr.mxu0 0.0
    %1317 = vmatpush1.msra.mxu0 0.0
    %1318 = vmatprep.subr.mxu0 0.0
    %1319 = vmatpush1.msra.mxu0 0.0
    %1320 = vmatprep.subr.mxu0 0.0
    %1321 = vmatpush1.msra.mxu0 0.0
    %1322 = vmatprep.subr.mxu0 0.0
    %1323 = vmatpush1.msra.mxu0 0.0
    %1324 = vmatprep.subr.mxu0 0.0
    %1325 = vmatpush1.msra.mxu0 0.0
    %1326 = vmatprep.subr.mxu0 0.0
    %1327 = vmatpush1.msra.mxu0 0.0
    %1328 = vmatprep.subr.mxu0 0.0
    %1329 = vmatpush1.msra.mxu0 0.0
    %1330 = vmatprep.subr.mxu0 0.0
    %1331 = vmatpush1.msra.mxu0 0.0
    %1332 = vmatprep.subr.mxu0 0.0
    %1333 = vmatpush1.msra.mxu0 0.0
    %1334 = vmatprep.subr.mxu0 0.0
    %1335 = vmatpush1.msra.mxu0 0.0
    %1336 = vmatprep.subr.mxu0 0.0
    %1337 = vmatpush1.msra.mxu0 0.0
    %1338 = vmatprep.subr.mxu0 0.0
    %1339 = vmatpush1.msra.mxu0 0.0
    %1340 = vmatprep.subr.mxu0 0.0
    %1341 = vmatpush1.msra.mxu0 0.0
    %1342 = vmatprep.subr.mxu0 0.0
    %v1343 = vand.u32 %v458, 4294901760
    %v1344 = vsub.f32 %v458, %v1343
    %v1345 = vand.u32 %v1344, 4294901760
    %1346 = vmatpush1.msra.mxu0 %v1345
    %1347 = vmatprep.subr.mxu0 0.0
    %1348 = vmatpush2.msra.mxu0 0.0
    %1349 = vmatprep.subr.mxu0 0.0
    %1350 = vmatpush2.msra.mxu0 0.0
    %1351 = vmatprep.subr.mxu0 0.0
    %1352 = vmatpush2.msra.mxu0 0.0
    %1353 = vmatprep.subr.mxu0 0.0
    %1354 = vmatpush2.msra.mxu0 0.0
    %1355 = vmatprep.subr.mxu0 0.0
    %1356 = vmatpush2.msra.mxu0 0.0
    %1357 = vmatprep.subr.mxu0 0.0
    %1358 = vmatpush2.msra.mxu0 0.0
    %1359 = vmatprep.subr.mxu0 0.0
    %1360 = vmatpush2.msra.mxu0 0.0
    %1361 = vmatprep.subr.mxu0 0.0
    %1362 = vmatpush2.msra.mxu0 0.0
    %1363 = vmatprep.subr.mxu0 0.0
    %1364 = vmatpush2.msra.mxu0 0.0
    %1365 = vmatprep.subr.mxu0 0.0
    %1366 = vmatpush2.msra.mxu0 0.0
    %1367 = vmatprep.subr.mxu0 0.0
    %1368 = vmatpush2.msra.mxu0 0.0
    %1369 = vmatprep.subr.mxu0 0.0
    %1370 = vmatpush2.msra.mxu0 0.0
    %1371 = vmatprep.subr.mxu0 0.0
    %1372 = vmatpush2.msra.mxu0 0.0
    %1373 = vmatprep.subr.mxu0 0.0
    %1374 = vmatpush2.msra.mxu0 0.0
    %1375 = vmatprep.subr.mxu0 0.0
    %1376 = vmatpush2.msra.mxu0 0.0
    %1377 = vmatprep.subr.mxu0 0.0
    %1378 = vmatpush2.msra.mxu0 0.0
    %1379 = vmatprep.mubr.f32.mxu0 0.0
    %v1380 = vand.u32 %v976, 4294901760
    %1381 = vmatmul.mubr.f32.gmra.mxu0 %v1380
    %v1382 = vpop.f32.mrf.mxu0
    %v1383 = vadd.f32 %v1301, %v1382
    %v1384 = vpop.f32.mrf.mxu0
    %1385 = vmatprep.mubr.f32.mxu0 0.0
    %v1386 = vand.u32 %v979, 4294901760
    %1387 = vmatmul.mubr.f32.gmra.mxu0 %v1386
    %v1388 = vpop.f32.mrf.mxu0
    %v1389 = vadd.f32 %v1309, %v1388
    %v1390 = vpop.f32.mrf.mxu0
    %1391 = vdwg.mxu0
    %1392 = vmatprep.subr.mxu0 0.0
    %1393 = vmatpush1.msra.mxu0 0.0
    %1394 = vmatprep.subr.mxu0 0.0
    %1395 = vmatpush1.msra.mxu0 0.0
    %1396 = vmatprep.subr.mxu0 0.0
    %1397 = vmatpush1.msra.mxu0 0.0
    %1398 = vmatprep.subr.mxu0 0.0
    %1399 = vmatpush1.msra.mxu0 0.0
    %1400 = vmatprep.subr.mxu0 0.0
    %1401 = vmatpush1.msra.mxu0 0.0
    %1402 = vmatprep.subr.mxu0 0.0
    %1403 = vmatpush1.msra.mxu0 0.0
    %1404 = vmatprep.subr.mxu0 0.0
    %1405 = vmatpush1.msra.mxu0 0.0
    %1406 = vmatprep.subr.mxu0 0.0
    %1407 = vmatpush1.msra.mxu0 0.0
    %1408 = vmatprep.subr.mxu0 0.0
    %1409 = vmatpush1.msra.mxu0 0.0
    %1410 = vmatprep.subr.mxu0 0.0
    %1411 = vmatpush1.msra.mxu0 0.0
    %1412 = vmatprep.subr.mxu0 0.0
    %1413 = vmatpush1.msra.mxu0 0.0
    %1414 = vmatprep.subr.mxu0 0.0
    %1415 = vmatpush1.msra.mxu0 0.0
    %1416 = vmatprep.subr.mxu0 0.0
    %1417 = vmatpush1.msra.mxu0 0.0
    %1418 = vmatprep.subr.mxu0 0.0
    %1419 = vmatpush1.msra.mxu0 0.0
    %1420 = vmatprep.subr.mxu0 0.0
    %1421 = vmatpush1.msra.mxu0 0.0
    %1422 = vmatprep.subr.mxu0 0.0
    %v1423 = vand.u32 %v458, 4294901760
    %1424 = vmatpush1.msra.mxu0 %v1423
    %1425 = vmatprep.subr.mxu0 0.0
    %1426 = vmatpush2.msra.mxu0 0.0
    %1427 = vmatprep.subr.mxu0 0.0
    %1428 = vmatpush2.msra.mxu0 0.0
    %1429 = vmatprep.subr.mxu0 0.0
    %1430 = vmatpush2.msra.mxu0 0.0
    %1431 = vmatprep.subr.mxu0 0.0
    %1432 = vmatpush2.msra.mxu0 0.0
    %1433 = vmatprep.subr.mxu0 0.0
    %1434 = vmatpush2.msra.mxu0 0.0
    %1435 = vmatprep.subr.mxu0 0.0
    %1436 = vmatpush2.msra.mxu0 0.0
    %1437 = vmatprep.subr.mxu0 0.0
    %1438 = vmatpush2.msra.mxu0 0.0
    %1439 = vmatprep.subr.mxu0 0.0
    %1440 = vmatpush2.msra.mxu0 0.0
    %1441 = vmatprep.subr.mxu0 0.0
    %1442 = vmatpush2.msra.mxu0 0.0
    %1443 = vmatprep.subr.mxu0 0.0
    %1444 = vmatpush2.msra.mxu0 0.0
    %1445 = vmatprep.subr.mxu0 0.0
    %1446 = vmatpush2.msra.mxu0 0.0
    %1447 = vmatprep.subr.mxu0 0.0
    %1448 = vmatpush2.msra.mxu0 0.0
    %1449 = vmatprep.subr.mxu0 0.0
    %1450 = vmatpush2.msra.mxu0 0.0
    %1451 = vmatprep.subr.mxu0 0.0
    %1452 = vmatpush2.msra.mxu0 0.0
    %1453 = vmatprep.subr.mxu0 0.0
    %1454 = vmatpush2.msra.mxu0 0.0
    %1455 = vmatprep.subr.mxu0 0.0
    %1456 = vmatpush2.msra.mxu0 0.0
    %1457 = vmatprep.mubr.f32.mxu0 0.0
    %v1458 = vand.u32 %v976, 4294901760
    %1459 = vmatmul.mubr.f32.gmra.mxu0 %v1458
    %v1460 = vpop.f32.mrf.mxu0
    %v1461 = vadd.f32 %v1383, %v1460
    %v1462 = vpop.f32.mrf.mxu0
    %1463 = vmatprep.mubr.f32.mxu0 0.0
    %v1464 = vand.u32 %v979, 4294901760
    %1465 = vmatmul.mubr.f32.gmra.mxu0 %v1464
    %v1466 = vpop.f32.mrf.mxu0
    %v1467 = vadd.f32 %v1389, %v1466
    %v1468 = vpop.f32.mrf.mxu0
    %1469 = vdwg.mxu0
    %v1470 = vadd.f32 %v964, 3.0
    %v1471 = vadd.f32 %v970, 3.0
    %v1472 = vmax.f32 %v1470, 0.0
    %v1473 = vmax.f32 %v1471, 0.0
    %v1474 = vmin.f32 %v1472, 6.0
    %v1475 = vmin.f32 %v1473, 6.0
    %v1476 = vmul.f32 %v964, %v1474
    %v1477 = vmul.f32 %v970, %v1475
    %v1478 = vmul.f32 %v1476, 0.16666667
    %v1479 = vmul.f32 %v1477, 0.16666667
    %v1480 = vadd.f32 %v1461, 3.0
    %v1481 = vadd.f32 %v1467, 3.0
    %v1482 = vmax.f32 %v1480, 0.0
    %v1483 = vmax.f32 %v1481, 0.0
    %v1484 = vmin.f32 %v1482, 6.0
    %v1485 = vmin.f32 %v1483, 6.0
    %v1486 = vmul.f32 %v1461, %v1484
    %v1487 = vmul.f32 %v1467, %v1485
    %v1488 = vmul.f32 %v1486, 0.16666667
    %v1489 = vmul.f32 %v1487, 0.16666667
    %v1490 = vld [vmem:[%s6] sm:$0xff]
    %v1491 = vld [vmem:[%s7] sm:$0xff]
    %1493 = vset.pattern.permute.xlu0 0
    %1494 = vperm.xlu0 %1493, %v1491
    %v1495 = vpop.permute.xlu0 %1494
    %vm1497 = vcmask 130048
    %v1499 = vsel %vm1497, %v1490, 0
    %1501 = vmatprep.subr.mxu0 0.0
    %1502 = vmatpush1.msra.mxu0 0.0
    %1503 = vmatprep.subr.mxu0 0.0
    %1504 = vmatpush1.msra.mxu0 0.0
    %1505 = vmatprep.subr.mxu0 0.0
    %1506 = vmatpush1.msra.mxu0 0.0
    %1507 = vmatprep.subr.mxu0 0.0
    %1508 = vmatpush1.msra.mxu0 0.0
    %1509 = vmatprep.subr.mxu0 0.0
    %1510 = vmatpush1.msra.mxu0 0.0
    %1511 = vmatprep.subr.mxu0 0.0
    %1512 = vmatpush1.msra.mxu0 0.0
    %1513 = vmatprep.subr.mxu0 0.0
    %1514 = vmatpush1.msra.mxu0 0.0
    %1515 = vmatprep.subr.mxu0 0.0
    %1516 = vmatpush1.msra.mxu0 0.0
    %1517 = vmatprep.subr.mxu0 0.0
    %1518 = vmatpush1.msra.mxu0 0.0
    %1519 = vmatprep.subr.mxu0 0.0
    %1520 = vmatpush1.msra.mxu0 0.0
    %1521 = vmatprep.subr.mxu0 0.0
    %1522 = vmatpush1.msra.mxu0 0.0
    %1523 = vmatprep.subr.mxu0 0.0
    %1524 = vmatpush1.msra.mxu0 0.0
    %1525 = vmatprep.subr.mxu0 0.0
    %1526 = vmatpush1.msra.mxu0 0.0
    %1527 = vmatprep.subr.mxu0 0.0
    %1528 = vmatpush1.msra.mxu0 0.0
    %1529 = vmatprep.subr.mxu0 0.0
    %v1530 = vand.u32 %v1479, 4294901760
    %1531 = vmatpush1.msra.mxu0 %v1530
    %1532 = vmatprep.subr.mxu0 0.0
    %v1533 = vand.u32 %v1478, 4294901760
    %1534 = vmatpush1.msra.mxu0 %v1533
    %1535 = vmatprep.subr.mxu0 0.0
    %1536 = vmatpush2.msra.mxu0 0.0
    %1537 = vmatprep.subr.mxu0 0.0
    %1538 = vmatpush2.msra.mxu0 0.0
    %1539 = vmatprep.subr.mxu0 0.0
    %1540 = vmatpush2.msra.mxu0 0.0
    %1541 = vmatprep.subr.mxu0 0.0
    %1542 = vmatpush2.msra.mxu0 0.0
    %1543 = vmatprep.subr.mxu0 0.0
    %1544 = vmatpush2.msra.mxu0 0.0
    %1545 = vmatprep.subr.mxu0 0.0
    %1546 = vmatpush2.msra.mxu0 0.0
    %1547 = vmatprep.subr.mxu0 0.0
    %1548 = vmatpush2.msra.mxu0 0.0
    %1549 = vmatprep.subr.mxu0 0.0
    %1550 = vmatpush2.msra.mxu0 0.0
    %1551 = vmatprep.subr.mxu0 0.0
    %1552 = vmatpush2.msra.mxu0 0.0
    %1553 = vmatprep.subr.mxu0 0.0
    %1554 = vmatpush2.msra.mxu0 0.0
    %1555 = vmatprep.subr.mxu0 0.0
    %1556 = vmatpush2.msra.mxu0 0.0
    %1557 = vmatprep.subr.mxu0 0.0
    %1558 = vmatpush2.msra.mxu0 0.0
    %1559 = vmatprep.subr.mxu0 0.0
    %1560 = vmatpush2.msra.mxu0 0.0
    %1561 = vmatprep.subr.mxu0 0.0
    %1562 = vmatpush2.msra.mxu0 0.0
    %1563 = vmatprep.subr.mxu0 0.0
    %1564 = vmatpush2.msra.mxu0 0.0
    %1565 = vmatprep.subr.mxu0 0.0
    %1566 = vmatpush2.msra.mxu0 0.0
    %1567 = vmatprep.mubr.f32.mxu0 0.0
    %v1568 = vand.u32 %v1499, 4294901760
    %v1569 = vsub.f32 %v1499, %v1568
    %v1570 = vand.u32 %v1569, 4294901760
    %v1571 = vsub.f32 %v1569, %v1570
    %v1572 = vand.u32 %v1571, 4294901760
    %1573 = vmatmul.mubr.f32.gmra.mxu0 %v1572
    %v1574 = vpop.f32.mrf.mxu0
    %v1575 = vadd.f32 %v1495, %v1574
    %v1576 = vpop.f32.mrf.mxu0
    %1577 = vdwg.mxu0
    %1578 = vmatprep.subr.mxu0 0.0
    %1579 = vmatpush1.msra.mxu0 0.0
    %1580 = vmatprep.subr.mxu0 0.0
    %1581 = vmatpush1.msra.mxu0 0.0
    %1582 = vmatprep.subr.mxu0 0.0
    %1583 = vmatpush1.msra.mxu0 0.0
    %1584 = vmatprep.subr.mxu0 0.0
    %1585 = vmatpush1.msra.mxu0 0.0
    %1586 = vmatprep.subr.mxu0 0.0
    %1587 = vmatpush1.msra.mxu0 0.0
    %1588 = vmatprep.subr.mxu0 0.0
    %1589 = vmatpush1.msra.mxu0 0.0
    %1590 = vmatprep.subr.mxu0 0.0
    %1591 = vmatpush1.msra.mxu0 0.0
    %1592 = vmatprep.subr.mxu0 0.0
    %1593 = vmatpush1.msra.mxu0 0.0
    %1594 = vmatprep.subr.mxu0 0.0
    %1595 = vmatpush1.msra.mxu0 0.0
    %1596 = vmatprep.subr.mxu0 0.0
    %1597 = vmatpush1.msra.mxu0 0.0
    %1598 = vmatprep.subr.mxu0 0.0
    %1599 = vmatpush1.msra.mxu0 0.0
    %1600 = vmatprep.subr.mxu0 0.0
    %1601 = vmatpush1.msra.mxu0 0.0
    %1602 = vmatprep.subr.mxu0 0.0
    %1603 = vmatpush1.msra.mxu0 0.0
    %1604 = vmatprep.subr.mxu0 0.0
    %1605 = vmatpush1.msra.mxu0 0.0
    %1606 = vmatprep.subr.mxu0 0.0
    %v1607 = vand.u32 %v1479, 4294901760
    %v1608 = vsub.f32 %v1479, %v1607
    %v1609 = vand.u32 %v1608, 4294901760
    %v1610 = vsub.f32 %v1608, %v1609
    %v1611 = vand.u32 %v1610, 4294901760
    %1612 = vmatpush1.msra.mxu0 %v1611
    %1613 = vmatprep.subr.mxu0 0.0
    %v1614 = vand.u32 %v1478, 4294901760
    %v1615 = vsub.f32 %v1478, %v1614
    %v1616 = vand.u32 %v1615, 4294901760
    %v1617 = vsub.f32 %v1615, %v1616
    %v1618 = vand.u32 %v1617, 4294901760
    %1619 = vmatpush1.msra.mxu0 %v1618
    %1620 = vmatprep.subr.mxu0 0.0
    %1621 = vmatpush2.msra.mxu0 0.0
    %1622 = vmatprep.subr.mxu0 0.0
    %1623 = vmatpush2.msra.mxu0 0.0
    %1624 = vmatprep.subr.mxu0 0.0
    %1625 = vmatpush2.msra.mxu0 0.0
    %1626 = vmatprep.subr.mxu0 0.0
    %1627 = vmatpush2.msra.mxu0 0.0
    %1628 = vmatprep.subr.mxu0 0.0
    %1629 = vmatpush2.msra.mxu0 0.0
    %1630 = vmatprep.subr.mxu0 0.0
    %1631 = vmatpush2.msra.mxu0 0.0
    %1632 = vmatprep.subr.mxu0 0.0
    %1633 = vmatpush2.msra.mxu0 0.0
    %1634 = vmatprep.subr.mxu0 0.0
    %1635 = vmatpush2.msra.mxu0 0.0
    %1636 = vmatprep.subr.mxu0 0.0
    %1637 = vmatpush2.msra.mxu0 0.0
    %1638 = vmatprep.subr.mxu0 0.0
    %1639 = vmatpush2.msra.mxu0 0.0
    %1640 = vmatprep.subr.mxu0 0.0
    %1641 = vmatpush2.msra.mxu0 0.0
    %1642 = vmatprep.subr.mxu0 0.0
    %1643 = vmatpush2.msra.mxu0 0.0
    %1644 = vmatprep.subr.mxu0 0.0
    %1645 = vmatpush2.msra.mxu0 0.0
    %1646 = vmatprep.subr.mxu0 0.0
    %1647 = vmatpush2.msra.mxu0 0.0
    %1648 = vmatprep.subr.mxu0 0.0
    %1649 = vmatpush2.msra.mxu0 0.0
    %1650 = vmatprep.subr.mxu0 0.0
    %1651 = vmatpush2.msra.mxu0 0.0
    %1652 = vmatprep.mubr.f32.mxu0 0.0
    %v1653 = vand.u32 %v1499, 4294901760
    %1654 = vmatmul.mubr.f32.gmra.mxu0 %v1653
    %v1655 = vpop.f32.mrf.mxu0
    %v1656 = vadd.f32 %v1575, %v1655
    %v1657 = vpop.f32.mrf.mxu0
    %1658 = vdwg.mxu0
    %1659 = vmatprep.subr.mxu0 0.0
    %1660 = vmatpush1.msra.mxu0 0.0
    %1661 = vmatprep.subr.mxu0 0.0
    %1662 = vmatpush1.msra.mxu0 0.0
    %1663 = vmatprep.subr.mxu0 0.0
    %1664 = vmatpush1.msra.mxu0 0.0
    %1665 = vmatprep.subr.mxu0 0.0
    %1666 = vmatpush1.msra.mxu0 0.0
    %1667 = vmatprep.subr.mxu0 0.0
    %1668 = vmatpush1.msra.mxu0 0.0
    %1669 = vmatprep.subr.mxu0 0.0
    %1670 = vmatpush1.msra.mxu0 0.0
    %1671 = vmatprep.subr.mxu0 0.0
    %1672 = vmatpush1.msra.mxu0 0.0
    %1673 = vmatprep.subr.mxu0 0.0
    %1674 = vmatpush1.msra.mxu0 0.0
    %1675 = vmatprep.subr.mxu0 0.0
    %1676 = vmatpush1.msra.mxu0 0.0
    %1677 = vmatprep.subr.mxu0 0.0
    %1678 = vmatpush1.msra.mxu0 0.0
    %1679 = vmatprep.subr.mxu0 0.0
    %1680 = vmatpush1.msra.mxu0 0.0
    %1681 = vmatprep.subr.mxu0 0.0
    %1682 = vmatpush1.msra.mxu0 0.0
    %1683 = vmatprep.subr.mxu0 0.0
    %1684 = vmatpush1.msra.mxu0 0.0
    %1685 = vmatprep.subr.mxu0 0.0
    %1686 = vmatpush1.msra.mxu0 0.0
    %1687 = vmatprep.subr.mxu0 0.0
    %v1688 = vand.u32 %v1479, 4294901760
    %v1689 = vsub.f32 %v1479, %v1688
    %1690 = vmatpush1.msra.mxu0 %v1689
    %1691 = vmatprep.subr.mxu0 0.0
    %v1692 = vand.u32 %v1478, 4294901760
    %v1693 = vsub.f32 %v1478, %v1692
    %1694 = vmatpush1.msra.mxu0 %v1693
    %1695 = vmatprep.subr.mxu0 0.0
    %1696 = vmatpush2.msra.mxu0 0.0
    %1697 = vmatprep.subr.mxu0 0.0
    %1698 = vmatpush2.msra.mxu0 0.0
    %1699 = vmatprep.subr.mxu0 0.0
    %1700 = vmatpush2.msra.mxu0 0.0
    %1701 = vmatprep.subr.mxu0 0.0
    %1702 = vmatpush2.msra.mxu0 0.0
    %1703 = vmatprep.subr.mxu0 0.0
    %1704 = vmatpush2.msra.mxu0 0.0
    %1705 = vmatprep.subr.mxu0 0.0
    %1706 = vmatpush2.msra.mxu0 0.0
    %1707 = vmatprep.subr.mxu0 0.0
    %1708 = vmatpush2.msra.mxu0 0.0
    %1709 = vmatprep.subr.mxu0 0.0
    %1710 = vmatpush2.msra.mxu0 0.0
    %1711 = vmatprep.subr.mxu0 0.0
    %1712 = vmatpush2.msra.mxu0 0.0
    %1713 = vmatprep.subr.mxu0 0.0
    %1714 = vmatpush2.msra.mxu0 0.0
    %1715 = vmatprep.subr.mxu0 0.0
    %1716 = vmatpush2.msra.mxu0 0.0
    %1717 = vmatprep.subr.mxu0 0.0
    %1718 = vmatpush2.msra.mxu0 0.0
    %1719 = vmatprep.subr.mxu0 0.0
    %1720 = vmatpush2.msra.mxu0 0.0
    %1721 = vmatprep.subr.mxu0 0.0
    %1722 = vmatpush2.msra.mxu0 0.0
    %1723 = vmatprep.subr.mxu0 0.0
    %1724 = vmatpush2.msra.mxu0 0.0
    %1725 = vmatprep.subr.mxu0 0.0
    %1726 = vmatpush2.msra.mxu0 0.0
    %1727 = vmatprep.mubr.f32.mxu0 0.0
    %v1728 = vand.u32 %v1499, 4294901760
    %v1729 = vsub.f32 %v1499, %v1728
    %1730 = vmatmul.mubr.f32.gmra.mxu0 %v1729
    %v1731 = vpop.f32.mrf.mxu0
    %v1732 = vadd.f32 %v1656, %v1731
    %v1733 = vpop.f32.mrf.mxu0
    %1734 = vdwg.mxu0
    %1735 = vmatprep.subr.mxu0 0.0
    %1736 = vmatpush1.msra.mxu0 0.0
    %1737 = vmatprep.subr.mxu0 0.0
    %1738 = vmatpush1.msra.mxu0 0.0
    %1739 = vmatprep.subr.mxu0 0.0
    %1740 = vmatpush1.msra.mxu0 0.0
    %1741 = vmatprep.subr.mxu0 0.0
    %1742 = vmatpush1.msra.mxu0 0.0
    %1743 = vmatprep.subr.mxu0 0.0
    %1744 = vmatpush1.msra.mxu0 0.0
    %1745 = vmatprep.subr.mxu0 0.0
    %1746 = vmatpush1.msra.mxu0 0.0
    %1747 = vmatprep.subr.mxu0 0.0
    %1748 = vmatpush1.msra.mxu0 0.0
    %1749 = vmatprep.subr.mxu0 0.0
    %1750 = vmatpush1.msra.mxu0 0.0
    %1751 = vmatprep.subr.mxu0 0.0
    %1752 = vmatpush1.msra.mxu0 0.0
    %1753 = vmatprep.subr.mxu0 0.0
    %1754 = vmatpush1.msra.mxu0 0.0
    %1755 = vmatprep.subr.mxu0 0.0
    %1756 = vmatpush1.msra.mxu0 0.0
    %1757 = vmatprep.subr.mxu0 0.0
    %1758 = vmatpush1.msra.mxu0 0.0
    %1759 = vmatprep.subr.mxu0 0.0
    %1760 = vmatpush1.msra.mxu0 0.0
    %1761 = vmatprep.subr.mxu0 0.0
    %1762 = vmatpush1.msra.mxu0 0.0
    %1763 = vmatprep.subr.mxu0 0.0
    %v1764 = vand.u32 %v1479, 4294901760
    %1765 = vmatpush1.msra.mxu0 %v1764
    %1766 = vmatprep.subr.mxu0 0.0
    %v1767 = vand.u32 %v1478, 4294901760
    %1768 = vmatpush1.msra.mxu0 %v1767
    %1769 = vmatprep.subr.mxu0 0.0
    %1770 = vmatpush2.msra.mxu0 0.0
    %1771 = vmatprep.subr.mxu0 0.0
    %1772 = vmatpush2.msra.mxu0 0.0
    %1773 = vmatprep.subr.mxu0 0.0
    %1774 = vmatpush2.msra.mxu0 0.0
    %1775 = vmatprep.subr.mxu0 0.0
    %1776 = vmatpush2.msra.mxu0 0.0
    %1777 = vmatprep.subr.mxu0 0.0
    %1778 = vmatpush2.msra.mxu0 0.0
    %1779 = vmatprep.subr.mxu0 0.0
    %1780 = vmatpush2.msra.mxu0 0.0
    %1781 = vmatprep.subr.mxu0 0.0
    %1782 = vmatpush2.msra.mxu0 0.0
    %1783 = vmatprep.subr.mxu0 0.0
    %1784 = vmatpush2.msra.mxu0 0.0
    %1785 = vmatprep.subr.mxu0 0.0
    %1786 = vmatpush2.msra.mxu0 0.0
    %1787 = vmatprep.subr.mxu0 0.0
    %1788 = vmatpush2.msra.mxu0 0.0
    %1789 = vmatprep.subr.mxu0 0.0
    %1790 = vmatpush2.msra.mxu0 0.0
    %1791 = vmatprep.subr.mxu0 0.0
    %1792 = vmatpush2.msra.mxu0 0.0
    %1793 = vmatprep.subr.mxu0 0.0
    %1794 = vmatpush2.msra.mxu0 0.0
    %1795 = vmatprep.subr.mxu0 0.0
    %1796 = vmatpush2.msra.mxu0 0.0
    %1797 = vmatprep.subr.mxu0 0.0
    %1798 = vmatpush2.msra.mxu0 0.0
    %1799 = vmatprep.subr.mxu0 0.0
    %1800 = vmatpush2.msra.mxu0 0.0
    %1801 = vmatprep.mubr.f32.mxu0 0.0
    %v1802 = vand.u32 %v1499, 4294901760
    %v1803 = vsub.f32 %v1499, %v1802
    %v1804 = vand.u32 %v1803, 4294901760
    %1805 = vmatmul.mubr.f32.gmra.mxu0 %v1804
    %v1806 = vpop.f32.mrf.mxu0
    %v1807 = vadd.f32 %v1732, %v1806
    %v1808 = vpop.f32.mrf.mxu0
    %1809 = vdwg.mxu0
    %1810 = vmatprep.subr.mxu0 0.0
    %1811 = vmatpush1.msra.mxu0 0.0
    %1812 = vmatprep.subr.mxu0 0.0
    %1813 = vmatpush1.msra.mxu0 0.0
    %1814 = vmatprep.subr.mxu0 0.0
    %1815 = vmatpush1.msra.mxu0 0.0
    %1816 = vmatprep.subr.mxu0 0.0
    %1817 = vmatpush1.msra.mxu0 0.0
    %1818 = vmatprep.subr.mxu0 0.0
    %1819 = vmatpush1.msra.mxu0 0.0
    %1820 = vmatprep.subr.mxu0 0.0
    %1821 = vmatpush1.msra.mxu0 0.0
    %1822 = vmatprep.subr.mxu0 0.0
    %1823 = vmatpush1.msra.mxu0 0.0
    %1824 = vmatprep.subr.mxu0 0.0
    %1825 = vmatpush1.msra.mxu0 0.0
    %1826 = vmatprep.subr.mxu0 0.0
    %1827 = vmatpush1.msra.mxu0 0.0
    %1828 = vmatprep.subr.mxu0 0.0
    %1829 = vmatpush1.msra.mxu0 0.0
    %1830 = vmatprep.subr.mxu0 0.0
    %1831 = vmatpush1.msra.mxu0 0.0
    %1832 = vmatprep.subr.mxu0 0.0
    %1833 = vmatpush1.msra.mxu0 0.0
    %1834 = vmatprep.subr.mxu0 0.0
    %1835 = vmatpush1.msra.mxu0 0.0
    %1836 = vmatprep.subr.mxu0 0.0
    %1837 = vmatpush1.msra.mxu0 0.0
    %1838 = vmatprep.subr.mxu0 0.0
    %v1839 = vand.u32 %v1479, 4294901760
    %v1840 = vsub.f32 %v1479, %v1839
    %v1841 = vand.u32 %v1840, 4294901760
    %1842 = vmatpush1.msra.mxu0 %v1841
    %1843 = vmatprep.subr.mxu0 0.0
    %v1844 = vand.u32 %v1478, 4294901760
    %v1845 = vsub.f32 %v1478, %v1844
    %v1846 = vand.u32 %v1845, 4294901760
    %1847 = vmatpush1.msra.mxu0 %v1846
    %1848 = vmatprep.subr.mxu0 0.0
    %1849 = vmatpush2.msra.mxu0 0.0
    %1850 = vmatprep.subr.mxu0 0.0
    %1851 = vmatpush2.msra.mxu0 0.0
    %1852 = vmatprep.subr.mxu0 0.0
    %1853 = vmatpush2.msra.mxu0 0.0
    %1854 = vmatprep.subr.mxu0 0.0
    %1855 = vmatpush2.msra.mxu0 0.0
    %1856 = vmatprep.subr.mxu0 0.0
    %1857 = vmatpush2.msra.mxu0 0.0
    %1858 = vmatprep.subr.mxu0 0.0
    %1859 = vmatpush2.msra.mxu0 0.0
    %1860 = vmatprep.subr.mxu0 0.0
    %1861 = vmatpush2.msra.mxu0 0.0
    %1862 = vmatprep.subr.mxu0 0.0
    %1863 = vmatpush2.msra.mxu0 0.0
    %1864 = vmatprep.subr.mxu0 0.0
    %1865 = vmatpush2.msra.mxu0 0.0
    %1866 = vmatprep.subr.mxu0 0.0
    %1867 = vmatpush2.msra.mxu0 0.0
    %1868 = vmatprep.subr.mxu0 0.0
    %1869 = vmatpush2.msra.mxu0 0.0
    %1870 = vmatprep.subr.mxu0 0.0
    %1871 = vmatpush2.msra.mxu0 0.0
    %1872 = vmatprep.subr.mxu0 0.0
    %1873 = vmatpush2.msra.mxu0 0.0
    %1874 = vmatprep.subr.mxu0 0.0
    %1875 = vmatpush2.msra.mxu0 0.0
    %1876 = vmatprep.subr.mxu0 0.0
    %1877 = vmatpush2.msra.mxu0 0.0
    %1878 = vmatprep.subr.mxu0 0.0
    %1879 = vmatpush2.msra.mxu0 0.0
    %1880 = vmatprep.mubr.f32.mxu0 0.0
    %v1881 = vand.u32 %v1499, 4294901760
    %1882 = vmatmul.mubr.f32.gmra.mxu0 %v1881
    %v1883 = vpop.f32.mrf.mxu0
    %v1884 = vadd.f32 %v1807, %v1883
    %v1885 = vpop.f32.mrf.mxu0
    %1886 = vdwg.mxu0
    %1887 = vmatprep.subr.mxu0 0.0
    %1888 = vmatpush1.msra.mxu0 0.0
    %1889 = vmatprep.subr.mxu0 0.0
    %1890 = vmatpush1.msra.mxu0 0.0
    %1891 = vmatprep.subr.mxu0 0.0
    %1892 = vmatpush1.msra.mxu0 0.0
    %1893 = vmatprep.subr.mxu0 0.0
    %1894 = vmatpush1.msra.mxu0 0.0
    %1895 = vmatprep.subr.mxu0 0.0
    %1896 = vmatpush1.msra.mxu0 0.0
    %1897 = vmatprep.subr.mxu0 0.0
    %1898 = vmatpush1.msra.mxu0 0.0
    %1899 = vmatprep.subr.mxu0 0.0
    %1900 = vmatpush1.msra.mxu0 0.0
    %1901 = vmatprep.subr.mxu0 0.0
    %1902 = vmatpush1.msra.mxu0 0.0
    %1903 = vmatprep.subr.mxu0 0.0
    %1904 = vmatpush1.msra.mxu0 0.0
    %1905 = vmatprep.subr.mxu0 0.0
    %1906 = vmatpush1.msra.mxu0 0.0
    %1907 = vmatprep.subr.mxu0 0.0
    %1908 = vmatpush1.msra.mxu0 0.0
    %1909 = vmatprep.subr.mxu0 0.0
    %1910 = vmatpush1.msra.mxu0 0.0
    %1911 = vmatprep.subr.mxu0 0.0
    %1912 = vmatpush1.msra.mxu0 0.0
    %1913 = vmatprep.subr.mxu0 0.0
    %1914 = vmatpush1.msra.mxu0 0.0
    %1915 = vmatprep.subr.mxu0 0.0
    %v1916 = vand.u32 %v1479, 4294901760
    %1917 = vmatpush1.msra.mxu0 %v1916
    %1918 = vmatprep.subr.mxu0 0.0
    %v1919 = vand.u32 %v1478, 4294901760
    %1920 = vmatpush1.msra.mxu0 %v1919
    %1921 = vmatprep.subr.mxu0 0.0
    %1922 = vmatpush2.msra.mxu0 0.0
    %1923 = vmatprep.subr.mxu0 0.0
    %1924 = vmatpush2.msra.mxu0 0.0
    %1925 = vmatprep.subr.mxu0 0.0
    %1926 = vmatpush2.msra.mxu0 0.0
    %1927 = vmatprep.subr.mxu0 0.0
    %1928 = vmatpush2.msra.mxu0 0.0
    %1929 = vmatprep.subr.mxu0 0.0
    %1930 = vmatpush2.msra.mxu0 0.0
    %1931 = vmatprep.subr.mxu0 0.0
    %1932 = vmatpush2.msra.mxu0 0.0
    %1933 = vmatprep.subr.mxu0 0.0
    %1934 = vmatpush2.msra.mxu0 0.0
    %1935 = vmatprep.subr.mxu0 0.0
    %1936 = vmatpush2.msra.mxu0 0.0
    %1937 = vmatprep.subr.mxu0 0.0
    %1938 = vmatpush2.msra.mxu0 0.0
    %1939 = vmatprep.subr.mxu0 0.0
    %1940 = vmatpush2.msra.mxu0 0.0
    %1941 = vmatprep.subr.mxu0 0.0
    %1942 = vmatpush2.msra.mxu0 0.0
    %1943 = vmatprep.subr.mxu0 0.0
    %1944 = vmatpush2.msra.mxu0 0.0
    %1945 = vmatprep.subr.mxu0 0.0
    %1946 = vmatpush2.msra.mxu0 0.0
    %1947 = vmatprep.subr.mxu0 0.0
    %1948 = vmatpush2.msra.mxu0 0.0
    %1949 = vmatprep.subr.mxu0 0.0
    %1950 = vmatpush2.msra.mxu0 0.0
    %1951 = vmatprep.subr.mxu0 0.0
    %1952 = vmatpush2.msra.mxu0 0.0
    %1953 = vmatprep.mubr.f32.mxu0 0.0
    %v1954 = vand.u32 %v1499, 4294901760
    %1955 = vmatmul.mubr.f32.gmra.mxu0 %v1954
    %v1956 = vpop.f32.mrf.mxu0
    %v1957 = vadd.f32 %v1884, %v1956
    %v1958 = vpop.f32.mrf.mxu0
    %1959 = vdwg.mxu0
    %v1960 = vxor.u32 %v1957, 2147483648
    %v1961 = vmul.f32 %v1960, 1.442695
    %v1962 = vpow.pop %v1961
    %v1963 = vadd.f32 %v1962, 1.0
    %v1964 = vrcp.pop %v1963
    %v1965 = vmul.f32 1.0, %v1964
    %v1966 = vld [vmem:[%s8] sm:$0xff]
    %v1967 = vld [vmem:[%s9] sm:$0xff]
    %1969 = vset.pattern.permute.xlu0 0
    %1970 = vperm.xlu0 %1969, %v1967
    %v1971 = vpop.permute.xlu0 %1970
    %v1974 = vsel %vm1497, %v1966, 0
    %1976 = vmatprep.subr.mxu0 0.0
    %1977 = vmatpush1.msra.mxu0 0.0
    %1978 = vmatprep.subr.mxu0 0.0
    %1979 = vmatpush1.msra.mxu0 0.0
    %1980 = vmatprep.subr.mxu0 0.0
    %1981 = vmatpush1.msra.mxu0 0.0
    %1982 = vmatprep.subr.mxu0 0.0
    %1983 = vmatpush1.msra.mxu0 0.0
    %1984 = vmatprep.subr.mxu0 0.0
    %1985 = vmatpush1.msra.mxu0 0.0
    %1986 = vmatprep.subr.mxu0 0.0
    %1987 = vmatpush1.msra.mxu0 0.0
    %1988 = vmatprep.subr.mxu0 0.0
    %1989 = vmatpush1.msra.mxu0 0.0
    %1990 = vmatprep.subr.mxu0 0.0
    %1991 = vmatpush1.msra.mxu0 0.0
    %1992 = vmatprep.subr.mxu0 0.0
    %1993 = vmatpush1.msra.mxu0 0.0
    %1994 = vmatprep.subr.mxu0 0.0
    %1995 = vmatpush1.msra.mxu0 0.0
    %1996 = vmatprep.subr.mxu0 0.0
    %1997 = vmatpush1.msra.mxu0 0.0
    %1998 = vmatprep.subr.mxu0 0.0
    %1999 = vmatpush1.msra.mxu0 0.0
    %2000 = vmatprep.subr.mxu0 0.0
    %2001 = vmatpush1.msra.mxu0 0.0
    %2002 = vmatprep.subr.mxu0 0.0
    %2003 = vmatpush1.msra.mxu0 0.0
    %2004 = vmatprep.subr.mxu0 0.0
    %v2005 = vand.u32 %v1489, 4294901760
    %2006 = vmatpush1.msra.mxu0 %v2005
    %2007 = vmatprep.subr.mxu0 0.0
    %v2008 = vand.u32 %v1488, 4294901760
    %2009 = vmatpush1.msra.mxu0 %v2008
    %2010 = vmatprep.subr.mxu0 0.0
    %2011 = vmatpush2.msra.mxu0 0.0
    %2012 = vmatprep.subr.mxu0 0.0
    %2013 = vmatpush2.msra.mxu0 0.0
    %2014 = vmatprep.subr.mxu0 0.0
    %2015 = vmatpush2.msra.mxu0 0.0
    %2016 = vmatprep.subr.mxu0 0.0
    %2017 = vmatpush2.msra.mxu0 0.0
    %2018 = vmatprep.subr.mxu0 0.0
    %2019 = vmatpush2.msra.mxu0 0.0
    %2020 = vmatprep.subr.mxu0 0.0
    %2021 = vmatpush2.msra.mxu0 0.0
    %2022 = vmatprep.subr.mxu0 0.0
    %2023 = vmatpush2.msra.mxu0 0.0
    %2024 = vmatprep.subr.mxu0 0.0
    %2025 = vmatpush2.msra.mxu0 0.0
    %2026 = vmatprep.subr.mxu0 0.0
    %2027 = vmatpush2.msra.mxu0 0.0
    %2028 = vmatprep.subr.mxu0 0.0
    %2029 = vmatpush2.msra.mxu0 0.0
    %2030 = vmatprep.subr.mxu0 0.0
    %2031 = vmatpush2.msra.mxu0 0.0
    %2032 = vmatprep.subr.mxu0 0.0
    %2033 = vmatpush2.msra.mxu0 0.0
    %2034 = vmatprep.subr.mxu0 0.0
    %2035 = vmatpush2.msra.mxu0 0.0
    %2036 = vmatprep.subr.mxu0 0.0
    %2037 = vmatpush2.msra.mxu0 0.0
    %2038 = vmatprep.subr.mxu0 0.0
    %2039 = vmatpush2.msra.mxu0 0.0
    %2040 = vmatprep.subr.mxu0 0.0
    %2041 = vmatpush2.msra.mxu0 0.0
    %2042 = vmatprep.mubr.f32.mxu0 0.0
    %v2043 = vand.u32 %v1974, 4294901760
    %v2044 = vsub.f32 %v1974, %v2043
    %v2045 = vand.u32 %v2044, 4294901760
    %v2046 = vsub.f32 %v2044, %v2045
    %v2047 = vand.u32 %v2046, 4294901760
    %2048 = vmatmul.mubr.f32.gmra.mxu0 %v2047
    %v2049 = vpop.f32.mrf.mxu0
    %v2050 = vadd.f32 %v1971, %v2049
    %v2051 = vpop.f32.mrf.mxu0
    %2052 = vdwg.mxu0
    %2053 = vmatprep.subr.mxu0 0.0
    %2054 = vmatpush1.msra.mxu0 0.0
    %2055 = vmatprep.subr.mxu0 0.0
    %2056 = vmatpush1.msra.mxu0 0.0
    %2057 = vmatprep.subr.mxu0 0.0
    %2058 = vmatpush1.msra.mxu0 0.0
    %2059 = vmatprep.subr.mxu0 0.0
    %2060 = vmatpush1.msra.mxu0 0.0
    %2061 = vmatprep.subr.mxu0 0.0
    %2062 = vmatpush1.msra.mxu0 0.0
    %2063 = vmatprep.subr.mxu0 0.0
    %2064 = vmatpush1.msra.mxu0 0.0
    %2065 = vmatprep.subr.mxu0 0.0
    %2066 = vmatpush1.msra.mxu0 0.0
    %2067 = vmatprep.subr.mxu0 0.0
    %2068 = vmatpush1.msra.mxu0 0.0
    %2069 = vmatprep.subr.mxu0 0.0
    %2070 = vmatpush1.msra.mxu0 0.0
    %2071 = vmatprep.subr.mxu0 0.0
    %2072 = vmatpush1.msra.mxu0 0.0
    %2073 = vmatprep.subr.mxu0 0.0
    %2074 = vmatpush1.msra.mxu0 0.0
    %2075 = vmatprep.subr.mxu0 0.0
    %2076 = vmatpush1.msra.mxu0 0.0
    %2077 = vmatprep.subr.mxu0 0.0
    %2078 = vmatpush1.msra.mxu0 0.0
    %2079 = vmatprep.subr.mxu0 0.0
    %2080 = vmatpush1.msra.mxu0 0.0
    %2081 = vmatprep.subr.mxu0 0.0
    %v2082 = vand.u32 %v1489, 4294901760
    %v2083 = vsub.f32 %v1489, %v2082
    %v2084 = vand.u32 %v2083, 4294901760
    %v2085 = vsub.f32 %v2083, %v2084
    %v2086 = vand.u32 %v2085, 4294901760
    %2087 = vmatpush1.msra.mxu0 %v2086
    %2088 = vmatprep.subr.mxu0 0.0
    %v2089 = vand.u32 %v1488, 4294901760
    %v2090 = vsub.f32 %v1488, %v2089
    %v2091 = vand.u32 %v2090, 4294901760
    %v2092 = vsub.f32 %v2090, %v2091
    %v2093 = vand.u32 %v2092, 4294901760
    %2094 = vmatpush1.msra.mxu0 %v2093
    %2095 = vmatprep.subr.mxu0 0.0
    %2096 = vmatpush2.msra.mxu0 0.0
    %2097 = vmatprep.subr.mxu0 0.0
    %2098 = vmatpush2.msra.mxu0 0.0
    %2099 = vmatprep.subr.mxu0 0.0
    %2100 = vmatpush2.msra.mxu0 0.0
    %2101 = vmatprep.subr.mxu0 0.0
    %2102 = vmatpush2.msra.mxu0 0.0
    %2103 = vmatprep.subr.mxu0 0.0
    %2104 = vmatpush2.msra.mxu0 0.0
    %2105 = vmatprep.subr.mxu0 0.0
    %2106 = vmatpush2.msra.mxu0 0.0
    %2107 = vmatprep.subr.mxu0 0.0
    %2108 = vmatpush2.msra.mxu0 0.0
    %2109 = vmatprep.subr.mxu0 0.0
    %2110 = vmatpush2.msra.mxu0 0.0
    %2111 = vmatprep.subr.mxu0 0.0
    %2112 = vmatpush2.msra.mxu0 0.0
    %2113 = vmatprep.subr.mxu0 0.0
    %2114 = vmatpush2.msra.mxu0 0.0
    %2115 = vmatprep.subr.mxu0 0.0
    %2116 = vmatpush2.msra.mxu0 0.0
    %2117 = vmatprep.subr.mxu0 0.0
    %2118 = vmatpush2.msra.mxu0 0.0
    %2119 = vmatprep.subr.mxu0 0.0
    %2120 = vmatpush2.msra.mxu0 0.0
    %2121 = vmatprep.subr.mxu0 0.0
    %2122 = vmatpush2.msra.mxu0 0.0
    %2123 = vmatprep.subr.mxu0 0.0
    %2124 = vmatpush2.msra.mxu0 0.0
    %2125 = vmatprep.subr.mxu0 0.0
    %2126 = vmatpush2.msra.mxu0 0.0
    %2127 = vmatprep.mubr.f32.mxu0 0.0
    %v2128 = vand.u32 %v1974, 4294901760
    %2129 = vmatmul.mubr.f32.gmra.mxu0 %v2128
    %v2130 = vpop.f32.mrf.mxu0
    %v2131 = vadd.f32 %v2050, %v2130
    %v2132 = vpop.f32.mrf.mxu0
    %2133 = vdwg.mxu0
    %2134 = vmatprep.subr.mxu0 0.0
    %2135 = vmatpush1.msra.mxu0 0.0
    %2136 = vmatprep.subr.mxu0 0.0
    %2137 = vmatpush1.msra.mxu0 0.0
    %2138 = vmatprep.subr.mxu0 0.0
    %2139 = vmatpush1.msra.mxu0 0.0
    %2140 = vmatprep.subr.mxu0 0.0
    %2141 = vmatpush1.msra.mxu0 0.0
    %2142 = vmatprep.subr.mxu0 0.0
    %2143 = vmatpush1.msra.mxu0 0.0
    %2144 = vmatprep.subr.mxu0 0.0
    %2145 = vmatpush1.msra.mxu0 0.0
    %2146 = vmatprep.subr.mxu0 0.0
    %2147 = vmatpush1.msra.mxu0 0.0
    %2148 = vmatprep.subr.mxu0 0.0
    %2149 = vmatpush1.msra.mxu0 0.0
    %2150 = vmatprep.subr.mxu0 0.0
    %2151 = vmatpush1.msra.mxu0 0.0
    %2152 = vmatprep.subr.mxu0 0.0
    %2153 = vmatpush1.msra.mxu0 0.0
    %2154 = vmatprep.subr.mxu0 0.0
    %2155 = vmatpush1.msra.mxu0 0.0
    %2156 = vmatprep.subr.mxu0 0.0
    %2157 = vmatpush1.msra.mxu0 0.0
    %2158 = vmatprep.subr.mxu0 0.0
    %2159 = vmatpush1.msra.mxu0 0.0
    %2160 = vmatprep.subr.mxu0 0.0
    %2161 = vmatpush1.msra.mxu0 0.0
    %2162 = vmatprep.subr.mxu0 0.0
    %v2163 = vand.u32 %v1489, 4294901760
    %v2164 = vsub.f32 %v1489, %v2163
    %2165 = vmatpush1.msra.mxu0 %v2164
    %2166 = vmatprep.subr.mxu0 0.0
    %v2167 = vand.u32 %v1488, 4294901760
    %v2168 = vsub.f32 %v1488, %v2167
    %2169 = vmatpush1.msra.mxu0 %v2168
    %2170 = vmatprep.subr.mxu0 0.0
    %2171 = vmatpush2.msra.mxu0 0.0
    %2172 = vmatprep.subr.mxu0 0.0
    %2173 = vmatpush2.msra.mxu0 0.0
    %2174 = vmatprep.subr.mxu0 0.0
    %2175 = vmatpush2.msra.mxu0 0.0
    %2176 = vmatprep.subr.mxu0 0.0
    %2177 = vmatpush2.msra.mxu0 0.0
    %2178 = vmatprep.subr.mxu0 0.0
    %2179 = vmatpush2.msra.mxu0 0.0
    %2180 = vmatprep.subr.mxu0 0.0
    %2181 = vmatpush2.msra.mxu0 0.0
    %2182 = vmatprep.subr.mxu0 0.0
    %2183 = vmatpush2.msra.mxu0 0.0
    %2184 = vmatprep.subr.mxu0 0.0
    %2185 = vmatpush2.msra.mxu0 0.0
    %2186 = vmatprep.subr.mxu0 0.0
    %2187 = vmatpush2.msra.mxu0 0.0
    %2188 = vmatprep.subr.mxu0 0.0
    %2189 = vmatpush2.msra.mxu0 0.0
    %2190 = vmatprep.subr.mxu0 0.0
    %2191 = vmatpush2.msra.mxu0 0.0
    %2192 = vmatprep.subr.mxu0 0.0
    %2193 = vmatpush2.msra.mxu0 0.0
    %2194 = vmatprep.subr.mxu0 0.0
    %2195 = vmatpush2.msra.mxu0 0.0
    %2196 = vmatprep.subr.mxu0 0.0
    %2197 = vmatpush2.msra.mxu0 0.0
    %2198 = vmatprep.subr.mxu0 0.0
    %2199 = vmatpush2.msra.mxu0 0.0
    %2200 = vmatprep.subr.mxu0 0.0
    %2201 = vmatpush2.msra.mxu0 0.0
    %2202 = vmatprep.mubr.f32.mxu0 0.0
    %v2203 = vand.u32 %v1974, 4294901760
    %v2204 = vsub.f32 %v1974, %v2203
    %2205 = vmatmul.mubr.f32.gmra.mxu0 %v2204
    %v2206 = vpop.f32.mrf.mxu0
    %v2207 = vadd.f32 %v2131, %v2206
    %v2208 = vpop.f32.mrf.mxu0
    %2209 = vdwg.mxu0
    %2210 = vmatprep.subr.mxu0 0.0
    %2211 = vmatpush1.msra.mxu0 0.0
    %2212 = vmatprep.subr.mxu0 0.0
    %2213 = vmatpush1.msra.mxu0 0.0
    %2214 = vmatprep.subr.mxu0 0.0
    %2215 = vmatpush1.msra.mxu0 0.0
    %2216 = vmatprep.subr.mxu0 0.0
    %2217 = vmatpush1.msra.mxu0 0.0
    %2218 = vmatprep.subr.mxu0 0.0
    %2219 = vmatpush1.msra.mxu0 0.0
    %2220 = vmatprep.subr.mxu0 0.0
    %2221 = vmatpush1.msra.mxu0 0.0
    %2222 = vmatprep.subr.mxu0 0.0
    %2223 = vmatpush1.msra.mxu0 0.0
    %2224 = vmatprep.subr.mxu0 0.0
    %2225 = vmatpush1.msra.mxu0 0.0
    %2226 = vmatprep.subr.mxu0 0.0
    %2227 = vmatpush1.msra.mxu0 0.0
    %2228 = vmatprep.subr.mxu0 0.0
    %2229 = vmatpush1.msra.mxu0 0.0
    %2230 = vmatprep.subr.mxu0 0.0
    %2231 = vmatpush1.msra.mxu0 0.0
    %2232 = vmatprep.subr.mxu0 0.0
    %2233 = vmatpush1.msra.mxu0 0.0
    %2234 = vmatprep.subr.mxu0 0.0
    %2235 = vmatpush1.msra.mxu0 0.0
    %2236 = vmatprep.subr.mxu0 0.0
    %2237 = vmatpush1.msra.mxu0 0.0
    %2238 = vmatprep.subr.mxu0 0.0
    %v2239 = vand.u32 %v1489, 4294901760
    %2240 = vmatpush1.msra.mxu0 %v2239
    %2241 = vmatprep.subr.mxu0 0.0
    %v2242 = vand.u32 %v1488, 4294901760
    %2243 = vmatpush1.msra.mxu0 %v2242
    %2244 = vmatprep.subr.mxu0 0.0
    %2245 = vmatpush2.msra.mxu0 0.0
    %2246 = vmatprep.subr.mxu0 0.0
    %2247 = vmatpush2.msra.mxu0 0.0
    %2248 = vmatprep.subr.mxu0 0.0
    %2249 = vmatpush2.msra.mxu0 0.0
    %2250 = vmatprep.subr.mxu0 0.0
    %2251 = vmatpush2.msra.mxu0 0.0
    %2252 = vmatprep.subr.mxu0 0.0
    %2253 = vmatpush2.msra.mxu0 0.0
    %2254 = vmatprep.subr.mxu0 0.0
    %2255 = vmatpush2.msra.mxu0 0.0
    %2256 = vmatprep.subr.mxu0 0.0
    %2257 = vmatpush2.msra.mxu0 0.0
    %2258 = vmatprep.subr.mxu0 0.0
    %2259 = vmatpush2.msra.mxu0 0.0
    %2260 = vmatprep.subr.mxu0 0.0
    %2261 = vmatpush2.msra.mxu0 0.0
    %2262 = vmatprep.subr.mxu0 0.0
    %2263 = vmatpush2.msra.mxu0 0.0
    %2264 = vmatprep.subr.mxu0 0.0
    %2265 = vmatpush2.msra.mxu0 0.0
    %2266 = vmatprep.subr.mxu0 0.0
    %2267 = vmatpush2.msra.mxu0 0.0
    %2268 = vmatprep.subr.mxu0 0.0
    %2269 = vmatpush2.msra.mxu0 0.0
    %2270 = vmatprep.subr.mxu0 0.0
    %2271 = vmatpush2.msra.mxu0 0.0
    %2272 = vmatprep.subr.mxu0 0.0
    %2273 = vmatpush2.msra.mxu0 0.0
    %2274 = vmatprep.subr.mxu0 0.0
    %2275 = vmatpush2.msra.mxu0 0.0
    %2276 = vmatprep.mubr.f32.mxu0 0.0
    %v2277 = vand.u32 %v1974, 4294901760
    %v2278 = vsub.f32 %v1974, %v2277
    %v2279 = vand.u32 %v2278, 4294901760
    %2280 = vmatmul.mubr.f32.gmra.mxu0 %v2279
    %v2281 = vpop.f32.mrf.mxu0
    %v2282 = vadd.f32 %v2207, %v2281
    %v2283 = vpop.f32.mrf.mxu0
    %2284 = vdwg.mxu0
    %2285 = vmatprep.subr.mxu0 0.0
    %2286 = vmatpush1.msra.mxu0 0.0
    %2287 = vmatprep.subr.mxu0 0.0
    %2288 = vmatpush1.msra.mxu0 0.0
    %2289 = vmatprep.subr.mxu0 0.0
    %2290 = vmatpush1.msra.mxu0 0.0
    %2291 = vmatprep.subr.mxu0 0.0
    %2292 = vmatpush1.msra.mxu0 0.0
    %2293 = vmatprep.subr.mxu0 0.0
    %2294 = vmatpush1.msra.mxu0 0.0
    %2295 = vmatprep.subr.mxu0 0.0
    %2296 = vmatpush1.msra.mxu0 0.0
    %2297 = vmatprep.subr.mxu0 0.0
    %2298 = vmatpush1.msra.mxu0 0.0
    %2299 = vmatprep.subr.mxu0 0.0
    %2300 = vmatpush1.msra.mxu0 0.0
    %2301 = vmatprep.subr.mxu0 0.0
    %2302 = vmatpush1.msra.mxu0 0.0
    %2303 = vmatprep.subr.mxu0 0.0
    %2304 = vmatpush1.msra.mxu0 0.0
    %2305 = vmatprep.subr.mxu0 0.0
    %2306 = vmatpush1.msra.mxu0 0.0
    %2307 = vmatprep.subr.mxu0 0.0
    %2308 = vmatpush1.msra.mxu0 0.0
    %2309 = vmatprep.subr.mxu0 0.0
    %2310 = vmatpush1.msra.mxu0 0.0
    %2311 = vmatprep.subr.mxu0 0.0
    %2312 = vmatpush1.msra.mxu0 0.0
    %2313 = vmatprep.subr.mxu0 0.0
    %v2314 = vand.u32 %v1489, 4294901760
    %v2315 = vsub.f32 %v1489, %v2314
    %v2316 = vand.u32 %v2315, 4294901760
    %2317 = vmatpush1.msra.mxu0 %v2316
    %2318 = vmatprep.subr.mxu0 0.0
    %v2319 = vand.u32 %v1488, 4294901760
    %v2320 = vsub.f32 %v1488, %v2319
    %v2321 = vand.u32 %v2320, 4294901760
    %2322 = vmatpush1.msra.mxu0 %v2321
    %2323 = vmatprep.subr.mxu0 0.0
    %2324 = vmatpush2.msra.mxu0 0.0
    %2325 = vmatprep.subr.mxu0 0.0
    %2326 = vmatpush2.msra.mxu0 0.0
    %2327 = vmatprep.subr.mxu0 0.0
    %2328 = vmatpush2.msra.mxu0 0.0
    %2329 = vmatprep.subr.mxu0 0.0
    %2330 = vmatpush2.msra.mxu0 0.0
    %2331 = vmatprep.subr.mxu0 0.0
    %2332 = vmatpush2.msra.mxu0 0.0
    %2333 = vmatprep.subr.mxu0 0.0
    %2334 = vmatpush2.msra.mxu0 0.0
    %2335 = vmatprep.subr.mxu0 0.0
    %2336 = vmatpush2.msra.mxu0 0.0
    %2337 = vmatprep.subr.mxu0 0.0
    %2338 = vmatpush2.msra.mxu0 0.0
    %2339 = vmatprep.subr.mxu0 0.0
    %2340 = vmatpush2.msra.mxu0 0.0
    %2341 = vmatprep.subr.mxu0 0.0
    %2342 = vmatpush2.msra.mxu0 0.0
    %2343 = vmatprep.subr.mxu0 0.0
    %2344 = vmatpush2.msra.mxu0 0.0
    %2345 = vmatprep.subr.mxu0 0.0
    %2346 = vmatpush2.msra.mxu0 0.0
    %2347 = vmatprep.subr.mxu0 0.0
    %2348 = vmatpush2.msra.mxu0 0.0
    %2349 = vmatprep.subr.mxu0 0.0
    %2350 = vmatpush2.msra.mxu0 0.0
    %2351 = vmatprep.subr.mxu0 0.0
    %2352 = vmatpush2.msra.mxu0 0.0
    %2353 = vmatprep.subr.mxu0 0.0
    %2354 = vmatpush2.msra.mxu0 0.0
    %2355 = vmatprep.mubr.f32.mxu0 0.0
    %v2356 = vand.u32 %v1974, 4294901760
    %2357 = vmatmul.mubr.f32.gmra.mxu0 %v2356
    %v2358 = vpop.f32.mrf.mxu0
    %v2359 = vadd.f32 %v2282, %v2358
    %v2360 = vpop.f32.mrf.mxu0
    %2361 = vdwg.mxu0
    %2362 = vmatprep.subr.mxu0 0.0
    %2363 = vmatpush1.msra.mxu0 0.0
    %2364 = vmatprep.subr.mxu0 0.0
    %2365 = vmatpush1.msra.mxu0 0.0
    %2366 = vmatprep.subr.mxu0 0.0
    %2367 = vmatpush1.msra.mxu0 0.0
    %2368 = vmatprep.subr.mxu0 0.0
    %2369 = vmatpush1.msra.mxu0 0.0
    %2370 = vmatprep.subr.mxu0 0.0
    %2371 = vmatpush1.msra.mxu0 0.0
    %2372 = vmatprep.subr.mxu0 0.0
    %2373 = vmatpush1.msra.mxu0 0.0
    %2374 = vmatprep.subr.mxu0 0.0
    %2375 = vmatpush1.msra.mxu0 0.0
    %2376 = vmatprep.subr.mxu0 0.0
    %2377 = vmatpush1.msra.mxu0 0.0
    %2378 = vmatprep.subr.mxu0 0.0
    %2379 = vmatpush1.msra.mxu0 0.0
    %2380 = vmatprep.subr.mxu0 0.0
    %2381 = vmatpush1.msra.mxu0 0.0
    %2382 = vmatprep.subr.mxu0 0.0
    %2383 = vmatpush1.msra.mxu0 0.0
    %2384 = vmatprep.subr.mxu0 0.0
    %2385 = vmatpush1.msra.mxu0 0.0
    %2386 = vmatprep.subr.mxu0 0.0
    %2387 = vmatpush1.msra.mxu0 0.0
    %2388 = vmatprep.subr.mxu0 0.0
    %2389 = vmatpush1.msra.mxu0 0.0
    %2390 = vmatprep.subr.mxu0 0.0
    %v2391 = vand.u32 %v1489, 4294901760
    %2392 = vmatpush1.msra.mxu0 %v2391
    %2393 = vmatprep.subr.mxu0 0.0
    %v2394 = vand.u32 %v1488, 4294901760
    %2395 = vmatpush1.msra.mxu0 %v2394
    %2396 = vmatprep.subr.mxu0 0.0
    %2397 = vmatpush2.msra.mxu0 0.0
    %2398 = vmatprep.subr.mxu0 0.0
    %2399 = vmatpush2.msra.mxu0 0.0
    %2400 = vmatprep.subr.mxu0 0.0
    %2401 = vmatpush2.msra.mxu0 0.0
    %2402 = vmatprep.subr.mxu0 0.0
    %2403 = vmatpush2.msra.mxu0 0.0
    %2404 = vmatprep.subr.mxu0 0.0
    %2405 = vmatpush2.msra.mxu0 0.0
    %2406 = vmatprep.subr.mxu0 0.0
    %2407 = vmatpush2.msra.mxu0 0.0
    %2408 = vmatprep.subr.mxu0 0.0
    %2409 = vmatpush2.msra.mxu0 0.0
    %2410 = vmatprep.subr.mxu0 0.0
    %2411 = vmatpush2.msra.mxu0 0.0
    %2412 = vmatprep.subr.mxu0 0.0
    %2413 = vmatpush2.msra.mxu0 0.0
    %2414 = vmatprep.subr.mxu0 0.0
    %2415 = vmatpush2.msra.mxu0 0.0
    %2416 = vmatprep.subr.mxu0 0.0
    %2417 = vmatpush2.msra.mxu0 0.0
    %2418 = vmatprep.subr.mxu0 0.0
    %2419 = vmatpush2.msra.mxu0 0.0
    %2420 = vmatprep.subr.mxu0 0.0
    %2421 = vmatpush2.msra.mxu0 0.0
    %2422 = vmatprep.subr.mxu0 0.0
    %2423 = vmatpush2.msra.mxu0 0.0
    %2424 = vmatprep.subr.mxu0 0.0
    %2425 = vmatpush2.msra.mxu0 0.0
    %2426 = vmatprep.subr.mxu0 0.0
    %2427 = vmatpush2.msra.mxu0 0.0
    %2428 = vmatprep.mubr.f32.mxu0 0.0
    %v2429 = vand.u32 %v1974, 4294901760
    %2430 = vmatmul.mubr.f32.gmra.mxu0 %v2429
    %v2431 = vpop.f32.mrf.mxu0
    %v2432 = vadd.f32 %v2359, %v2431
    %v2433 = vpop.f32.mrf.mxu0
    %2434 = vdwg.mxu0
    %v2435 = vxor.u32 %v2432, 2147483648
    %v2436 = vmul.f32 %v2435, 1.442695
    %v2437 = vpow.pop %v2436
    %v2438 = vadd.f32 %v2437, 1.0
    %v2439 = vrcp.pop %v2438
    %v2440 = vmul.f32 1.0, %v2439
    %v2441 = vpack.c.bf16 %v2440, %v2440
    %v2442 = vunpack.c.l.bf16 %v2441
    %v2443 = vsub.f32 %v2440, %v2442
    %v2444 = vpack.c.bf16 %v2443, %v2443
    %v2446 = vsel %vm1497, %v2444, 0
    %v2449 = vsel %vm1497, %v351, 0
    %v2452 = vsel %vm1497, %v352, 0
    %v2455 = vsel %vm1497, %v353, 0
    %v2458 = vsel %vm1497, %v354, 0
    %v2461 = vsel %vm1497, %v355, 0
    %v2464 = vsel %vm1497, %v356, 0
    %v2467 = vsel %vm1497, %v357, 0
    %v2470 = vsel %vm1497, %v358, 0
    %v2473 = vsel %vm1497, %v359, 0
    %v2476 = vsel %vm1497, %v360, 0
    %v2479 = vsel %vm1497, %v361, 0
    %v2482 = vsel %vm1497, %v362, 0
    %v2485 = vsel %vm1497, %v363, 0
    %v2488 = vsel %vm1497, %v364, 0
    %v2491 = vsel %vm1497, %v365, 0
    %v2494 = vsel %vm1497, %v366, 0
    %2496 = vmatprep.subr.bf16.mxu0 0
    %2497 = vmatpush1.bf16.xpose.msra.mxu0 %v2470
    %2498 = vmatprep.subr.bf16.mxu0 0
    %2499 = vmatpush1.bf16.xpose.msra.mxu0 %v2467
    %2500 = vmatprep.subr.bf16.mxu0 0
    %2501 = vmatpush1.bf16.xpose.msra.mxu0 %v2464
    %2502 = vmatprep.subr.bf16.mxu0 0
    %2503 = vmatpush1.bf16.xpose.msra.mxu0 %v2461
    %2504 = vmatprep.subr.bf16.mxu0 0
    %2505 = vmatpush1.bf16.xpose.msra.mxu0 %v2458
    %2506 = vmatprep.subr.bf16.mxu0 0
    %2507 = vmatpush1.bf16.xpose.msra.mxu0 %v2455
    %2508 = vmatprep.subr.bf16.mxu0 0
    %2509 = vmatpush1.bf16.xpose.msra.mxu0 %v2452
    %2510 = vmatprep.subr.bf16.mxu0 0
    %2511 = vmatpush1.bf16.xpose.msra.mxu0 %v2449
    %2512 = vmatprep.subr.bf16.mxu0 0
    %2513 = vmatpush2.bf16.xpose.msra.mxu0 %v2494
    %2514 = vmatprep.subr.bf16.mxu0 0
    %2515 = vmatpush2.bf16.xpose.msra.mxu0 %v2491
    %2516 = vmatprep.subr.bf16.mxu0 0
    %2517 = vmatpush2.bf16.xpose.msra.mxu0 %v2488
    %2518 = vmatprep.subr.bf16.mxu0 0
    %2519 = vmatpush2.bf16.xpose.msra.mxu0 %v2485
    %2520 = vmatprep.subr.bf16.mxu0 0
    %2521 = vmatpush2.bf16.xpose.msra.mxu0 %v2482
    %2522 = vmatprep.subr.bf16.mxu0 0
    %2523 = vmatpush2.bf16.xpose.msra.mxu0 %v2479
    %2524 = vmatprep.subr.bf16.mxu0 0
    %2525 = vmatpush2.bf16.xpose.msra.mxu0 %v2476
    %2526 = vmatprep.subr.bf16.mxu0 0
    %2527 = vmatpush2.bf16.xpose.msra.mxu0 %v2473
    %2528 = vmatprep.mubr.bf16.mxu0 0
    %2529 = vmatmul.mubr.bf16.gmra.mxu0 %v2446
    %v2530 = vpop.f32.mrf.mxu0
    %v2531 = vadd.f32 0.0, %v2530
    %v2532 = vpop.f32.mrf.mxu0
    %v2533 = vadd.f32 0.0, %v2532
    %v2534 = vpop.f32.mrf.mxu0
    %v2535 = vpop.f32.mrf.mxu0
    %2536 = vdwg.mxu0
    %v2538 = vsel %vm1497, %v2441, 0
    %2540 = vmatprep.subr.bf16.mxu0 0
    %2541 = vmatpush1.bf16.xpose.msra.mxu0 %v2470
    %2542 = vmatprep.subr.bf16.mxu0 0
    %2543 = vmatpush1.bf16.xpose.msra.mxu0 %v2467
    %2544 = vmatprep.subr.bf16.mxu0 0
    %2545 = vmatpush1.bf16.xpose.msra.mxu0 %v2464
    %2546 = vmatprep.subr.bf16.mxu0 0
    %2547 = vmatpush1.bf16.xpose.msra.mxu0 %v2461
    %2548 = vmatprep.subr.bf16.mxu0 0
    %2549 = vmatpush1.bf16.xpose.msra.mxu0 %v2458
    %2550 = vmatprep.subr.bf16.mxu0 0
    %2551 = vmatpush1.bf16.xpose.msra.mxu0 %v2455
    %2552 = vmatprep.subr.bf16.mxu0 0
    %2553 = vmatpush1.bf16.xpose.msra.mxu0 %v2452
    %2554 = vmatprep.subr.bf16.mxu0 0
    %2555 = vmatpush1.bf16.xpose.msra.mxu0 %v2449
    %2556 = vmatprep.subr.bf16.mxu0 0
    %2557 = vmatpush2.bf16.xpose.msra.mxu0 %v2494
    %2558 = vmatprep.subr.bf16.mxu0 0
    %2559 = vmatpush2.bf16.xpose.msra.mxu0 %v2491
    %2560 = vmatprep.subr.bf16.mxu0 0
    %2561 = vmatpush2.bf16.xpose.msra.mxu0 %v2488
    %2562 = vmatprep.subr.bf16.mxu0 0
    %2563 = vmatpush2.bf16.xpose.msra.mxu0 %v2485
    %2564 = vmatprep.subr.bf16.mxu0 0
    %2565 = vmatpush2.bf16.xpose.msra.mxu0 %v2482
    %2566 = vmatprep.subr.bf16.mxu0 0
    %2567 = vmatpush2.bf16.xpose.msra.mxu0 %v2479
    %2568 = vmatprep.subr.bf16.mxu0 0
    %2569 = vmatpush2.bf16.xpose.msra.mxu0 %v2476
    %2570 = vmatprep.subr.bf16.mxu0 0
    %2571 = vmatpush2.bf16.xpose.msra.mxu0 %v2473
    %2572 = vmatprep.mubr.bf16.mxu0 0
    %2573 = vmatmul.mubr.bf16.gmra.mxu0 %v2538
    %v2574 = vpop.f32.mrf.mxu0
    %v2575 = vadd.f32 %v2531, %v2574
    %v2576 = vpop.f32.mrf.mxu0
    %v2577 = vadd.f32 %v2533, %v2576
    %v2578 = vpop.f32.mrf.mxu0
    %v2579 = vpop.f32.mrf.mxu0
    %2580 = vdwg.mxu0
    %v2581 = vmul.f32 %v37, %v2575
    %v2582 = vmul.f32 %v38, %v2577
    %v2583 = vpack.c.bf16 %v1965, %v1965
    %v2584 = vunpack.c.l.bf16 %v2583
    %v2585 = vsub.f32 %v1965, %v2584
    %v2586 = vpack.c.bf16 %v2585, %v2585
    %v2588 = vsel %vm1497, %v2586, 0
    %v2591 = vsel %vm1497, %v175, 0
    %v2594 = vsel %vm1497, %v176, 0
    %v2597 = vsel %vm1497, %v177, 0
    %v2600 = vsel %vm1497, %v178, 0
    %v2603 = vsel %vm1497, %v179, 0
    %v2606 = vsel %vm1497, %v180, 0
    %v2609 = vsel %vm1497, %v181, 0
    %v2612 = vsel %vm1497, %v182, 0
    %v2615 = vsel %vm1497, %v183, 0
    %v2618 = vsel %vm1497, %v184, 0
    %v2621 = vsel %vm1497, %v185, 0
    %v2624 = vsel %vm1497, %v186, 0
    %v2627 = vsel %vm1497, %v187, 0
    %v2630 = vsel %vm1497, %v188, 0
    %v2633 = vsel %vm1497, %v189, 0
    %v2636 = vsel %vm1497, %v190, 0
    %2638 = vmatprep.subr.bf16.mxu0 0
    %2639 = vmatpush1.bf16.xpose.msra.mxu0 %v2612
    %2640 = vmatprep.subr.bf16.mxu0 0
    %2641 = vmatpush1.bf16.xpose.msra.mxu0 %v2609
    %2642 = vmatprep.subr.bf16.mxu0 0
    %2643 = vmatpush1.bf16.xpose.msra.mxu0 %v2606
    %2644 = vmatprep.subr.bf16.mxu0 0
    %2645 = vmatpush1.bf16.xpose.msra.mxu0 %v2603
    %2646 = vmatprep.subr.bf16.mxu0 0
    %2647 = vmatpush1.bf16.xpose.msra.mxu0 %v2600
    %2648 = vmatprep.subr.bf16.mxu0 0
    %2649 = vmatpush1.bf16.xpose.msra.mxu0 %v2597
    %2650 = vmatprep.subr.bf16.mxu0 0
    %2651 = vmatpush1.bf16.xpose.msra.mxu0 %v2594
    %2652 = vmatprep.subr.bf16.mxu0 0
    %2653 = vmatpush1.bf16.xpose.msra.mxu0 %v2591
    %2654 = vmatprep.subr.bf16.mxu0 0
    %2655 = vmatpush2.bf16.xpose.msra.mxu0 %v2636
    %2656 = vmatprep.subr.bf16.mxu0 0
    %2657 = vmatpush2.bf16.xpose.msra.mxu0 %v2633
    %2658 = vmatprep.subr.bf16.mxu0 0
    %2659 = vmatpush2.bf16.xpose.msra.mxu0 %v2630
    %2660 = vmatprep.subr.bf16.mxu0 0
    %2661 = vmatpush2.bf16.xpose.msra.mxu0 %v2627
    %2662 = vmatprep.subr.bf16.mxu0 0
    %2663 = vmatpush2.bf16.xpose.msra.mxu0 %v2624
    %2664 = vmatprep.subr.bf16.mxu0 0
    %2665 = vmatpush2.bf16.xpose.msra.mxu0 %v2621
    %2666 = vmatprep.subr.bf16.mxu0 0
    %2667 = vmatpush2.bf16.xpose.msra.mxu0 %v2618
    %2668 = vmatprep.subr.bf16.mxu0 0
    %2669 = vmatpush2.bf16.xpose.msra.mxu0 %v2615
    %2670 = vmatprep.mubr.bf16.mxu0 0
    %2671 = vmatmul.mubr.bf16.gmra.mxu0 %v2588
    %v2672 = vpop.f32.mrf.mxu0
    %v2673 = vadd.f32 0.0, %v2672
    %v2674 = vpop.f32.mrf.mxu0
    %v2675 = vadd.f32 0.0, %v2674
    %v2676 = vpop.f32.mrf.mxu0
    %v2677 = vpop.f32.mrf.mxu0
    %2678 = vdwg.mxu0
    %v2680 = vsel %vm1497, %v2583, 0
    %2682 = vmatprep.subr.bf16.mxu0 0
    %2683 = vmatpush1.bf16.xpose.msra.mxu0 %v2612
    %2684 = vmatprep.subr.bf16.mxu0 0
    %2685 = vmatpush1.bf16.xpose.msra.mxu0 %v2609
    %2686 = vmatprep.subr.bf16.mxu0 0
    %2687 = vmatpush1.bf16.xpose.msra.mxu0 %v2606
    %2688 = vmatprep.subr.bf16.mxu0 0
    %2689 = vmatpush1.bf16.xpose.msra.mxu0 %v2603
    %2690 = vmatprep.subr.bf16.mxu0 0
    %2691 = vmatpush1.bf16.xpose.msra.mxu0 %v2600
    %2692 = vmatprep.subr.bf16.mxu0 0
    %2693 = vmatpush1.bf16.xpose.msra.mxu0 %v2597
    %2694 = vmatprep.subr.bf16.mxu0 0
    %2695 = vmatpush1.bf16.xpose.msra.mxu0 %v2594
    %2696 = vmatprep.subr.bf16.mxu0 0
    %2697 = vmatpush1.bf16.xpose.msra.mxu0 %v2591
    %2698 = vmatprep.subr.bf16.mxu0 0
    %2699 = vmatpush2.bf16.xpose.msra.mxu0 %v2636
    %2700 = vmatprep.subr.bf16.mxu0 0
    %2701 = vmatpush2.bf16.xpose.msra.mxu0 %v2633
    %2702 = vmatprep.subr.bf16.mxu0 0
    %2703 = vmatpush2.bf16.xpose.msra.mxu0 %v2630
    %2704 = vmatprep.subr.bf16.mxu0 0
    %2705 = vmatpush2.bf16.xpose.msra.mxu0 %v2627
    %2706 = vmatprep.subr.bf16.mxu0 0
    %2707 = vmatpush2.bf16.xpose.msra.mxu0 %v2624
    %2708 = vmatprep.subr.bf16.mxu0 0
    %2709 = vmatpush2.bf16.xpose.msra.mxu0 %v2621
    %2710 = vmatprep.subr.bf16.mxu0 0
    %2711 = vmatpush2.bf16.xpose.msra.mxu0 %v2618
    %2712 = vmatprep.subr.bf16.mxu0 0
    %2713 = vmatpush2.bf16.xpose.msra.mxu0 %v2615
    %2714 = vmatprep.mubr.bf16.mxu0 0
    %2715 = vmatmul.mubr.bf16.gmra.mxu0 %v2680
    %v2716 = vpop.f32.mrf.mxu0
    %v2717 = vadd.f32 %v2673, %v2716
    %v2718 = vpop.f32.mrf.mxu0
    %v2719 = vadd.f32 %v2675, %v2718
    %v2720 = vpop.f32.mrf.mxu0
    %v2721 = vpop.f32.mrf.mxu0
    %2722 = vdwg.mxu0
    %v2723 = vmul.f32 %v2581, %v2717
    %v2724 = vmul.f32 %v2582, %v2719
    %2725 = vst [vmem:[#allocation2] sm:$0xff] %v2723
    %2726 = vst [vmem:[#allocation2 + $0x8] sm:$0xff] %v2724
    // Predicated region
    $region42: #{tpu_custom_call.1} parent=1 // pred_check
      _
    $region43: #{tpu_custom_call.1} parent=1 // pred_check_branch
      %2728 = sbr.rel (0) target = $region45
    $region44: #{tpu_custom_call.1} parent=1 // pred_region
      %s2730 = ssub.s32 256, 256
      %2731 = vsyncadd [#allocation3], %s2730
      %s2733 = sshll.u32 [#allocation2], 4
      %s2734 = int_to_ptr.vmem [resolvable:$true] %s2733
      %2736 = dma.vmem_to_hbm [thread:$0]  %s2734, 256, %s10, [#allocation3]
    $region45: #{tpu_custom_call.1} parent=1 // pred_fallthru
      _
    // Predicated region
    $region46: #{tpu_custom_call.1} parent=1 // pred_check
      _
    $region47: #{tpu_custom_call.1} parent=1 // pred_check_branch
      %2738 = sbr.rel (0) target = $region49
    $region48: #{tpu_custom_call.1} parent=1 // pred_region
      %2739 = dma.done [#allocation3], 256
    $region49: #{tpu_custom_call.1} parent=1 // pred_fallthru
      _
    %2740 = vsyncpa [#allocation3], 1

// kernel: tpu_custom_call.1
$region0: #{tpu_custom_call.1}
  #allocation0 [shape = 'u32[]', space=smem, size = 0x4, offset = 0x4, fixed_abs, tag = 'smem constant byte address 0x4 - core index']
  #allocation1 [shape = 'u32[144,128]{1,0:T(1,128)}', space=vmem, size = 0x12000, scoped, tag = 'internal scratch']
  %s0 = inlined_call_operand.vmem [shape: f32[1,8,256], index: 0, kind: input, shape index: {}]
  %s1 = inlined_call_operand.vmem [shape: bf16[256,16], index: 1, kind: input, shape index: {}]
  %s2 = inlined_call_operand.vmem [shape: bf16[256,16], index: 2, kind: input, shape index: {}]
  %s3 = inlined_call_operand.vmem [shape: f32[16,8], index: 3, kind: input, shape index: {}]
  %s4 = inlined_call_operand.vmem [shape: f32[16,8], index: 4, kind: input, shape index: {}]
  %s5 = inlined_call_operand.vmem [shape: f32[16,1], index: 5, kind: input, shape index: {}]
  %s6 = inlined_call_operand.vmem [shape: f32[8,16], index: 6, kind: input, shape index: {}]
  %s7 = inlined_call_operand.vmem [shape: f32[8,1], index: 7, kind: input, shape index: {}]
  %s8 = inlined_call_operand.vmem [shape: f32[8,16], index: 8, kind: input, shape index: {}]
  %s9 = inlined_call_operand.vmem [shape: f32[8,1], index: 9, kind: input, shape index: {}]
  %s10 = inlined_call_operand.hbm [shape: f32[1,8,256], index: 10, kind: output, shape index: {}]
  %s11 = sld [smem:[#allocation0]]
  $region50: #{tpu_custom_call.1} parent=0
    _
  %s13 = ssub.s32 1, %s11
  %s14 = scalar_select 0, %s13, %s11
  $region1: #{tpu_custom_call.1} parent=0
    #allocation2 [shape = 'u8[8192]{0}', space=vmem, size = 0x2000, scoped, tag = 'output window, operand 0, single buffered']
    #allocation3 [shape = 's32[1]{0}', space=sflag, size = 0x4, scoped, tag = 'scoped memory for tpu_custom_call.1']
    %15 = vsyncpa [#allocation3], 0
    // Predicated region
    $region2: #{tpu_custom_call.1} parent=1 // pred_check
      _
    $region3: #{tpu_custom_call.1} parent=1 // pred_check_branch
      %17 = sbr.rel (0) target = $region5
    $region4: #{tpu_custom_call.1} parent=1 // pred_region
      _
    $region5: #{tpu_custom_call.1} parent=1 // pred_fallthru
      _
    // Predicated region
    $region6: #{tpu_custom_call.1} parent=1 // pred_check
      _
    $region7: #{tpu_custom_call.1} parent=1 // pred_check_branch
      %19 = sbr.rel (0) target = $region9
    $region8: #{tpu_custom_call.1} parent=1 // pred_region
      _
    $region9: #{tpu_custom_call.1} parent=1 // pred_fallthru
      _
    // Predicated region
    $region10: #{tpu_custom_call.1} parent=1 // pred_check
      _
    $region11: #{tpu_custom_call.1} parent=1 // pred_check_branch
      %21 = sbr.rel (0) target = $region13
    $region12: #{tpu_custom_call.1} parent=1 // pred_region
      _
    $region13: #{tpu_custom_call.1} parent=1 // pred_fallthru
      _
    // Predicated region
    $region14: #{tpu_custom_call.1} parent=1 // pred_check
      _
    $region15: #{tpu_custom_call.1} parent=1 // pred_check_branch
      %23 = sbr.rel (0) target = $region17
    $region16: #{tpu_custom_call.1} parent=1 // pred_region
      _
    $region17: #{tpu_custom_call.1} parent=1 // pred_fallthru
      _
    // Predicated region
    $region18: #{tpu_custom_call.1} parent=1 // pred_check
      _
    $region19: #{tpu_custom_call.1} parent=1 // pred_check_branch
      %25 = sbr.rel (0) target = $region21
    $region20: #{tpu_custom_call.1} parent=1 // pred_region
      _
    $region21: #{tpu_custom_call.1} parent=1 // pred_fallthru
      _
    // Predicated region
    $region22: #{tpu_custom_call.1} parent=1 // pred_check
      _
    $region23: #{tpu_custom_call.1} parent=1 // pred_check_branch
      %27 = sbr.rel (0) target = $region25
    $region24: #{tpu_custom_call.1} parent=1 // pred_region
      _
    $region25: #{tpu_custom_call.1} parent=1 // pred_fallthru
      _
    // Predicated region
    $region26: #{tpu_custom_call.1} parent=1 // pred_check
      _
    $region27: #{tpu_custom_call.1} parent=1 // pred_check_branch
      %29 = sbr.rel (0) target = $region29
    $region28: #{tpu_custom_call.1} parent=1 // pred_region
      _
    $region29: #{tpu_custom_call.1} parent=1 // pred_fallthru
      _
    // Predicated region
    $region30: #{tpu_custom_call.1} parent=1 // pred_check
      _
    $region31: #{tpu_custom_call.1} parent=1 // pred_check_branch
      %31 = sbr.rel (0) target = $region33
    $region32: #{tpu_custom_call.1} parent=1 // pred_region
      _
    $region33: #{tpu_custom_call.1} parent=1 // pred_fallthru
      _
    // Predicated region
    $region34: #{tpu_custom_call.1} parent=1 // pred_check
      _
    $region35: #{tpu_custom_call.1} parent=1 // pred_check_branch
      %33 = sbr.rel (0) target = $region37
    $region36: #{tpu_custom_call.1} parent=1 // pred_region
      _
    $region37: #{tpu_custom_call.1} parent=1 // pred_fallthru
      _
    // Predicated region
    $region38: #{tpu_custom_call.1} parent=1 // pred_check
      _
    $region39: #{tpu_custom_call.1} parent=1 // pred_check_branch
      %35 = sbr.rel (0) target = $region41
    $region40: #{tpu_custom_call.1} parent=1 // pred_region
      _
    $region41: #{tpu_custom_call.1} parent=1 // pred_fallthru
      _
    %v37 = vld [vmem:[%s0] sm:$0xff]
    %v38 = vld [vmem:[%s0 + $0x8] sm:$0xff]
    %v39 = vld [vmem:[%s1] sm:$0xf]
    %v40 = vld [vmem:[%s1 + $0x4] sm:$0xf]
    %v41 = vld [vmem:[%s1 + $0x8] sm:$0xf]
    %v42 = vld [vmem:[%s1 + $0xc] sm:$0xf]
    %v43 = vld [vmem:[%s1 + $0x10] sm:$0xf]
    %v44 = vld [vmem:[%s1 + $0x14] sm:$0xf]
    %v45 = vld [vmem:[%s1 + $0x18] sm:$0xf]
    %v46 = vld [vmem:[%s1 + $0x1c] sm:$0xf]
    %v47 = vld [vmem:[%s1 + $0x20] sm:$0xf]
    %v48 = vld [vmem:[%s1 + $0x24] sm:$0xf]
    %v49 = vld [vmem:[%s1 + $0x28] sm:$0xf]
    %v50 = vld [vmem:[%s1 + $0x2c] sm:$0xf]
    %v51 = vld [vmem:[%s1 + $0x30] sm:$0xf]
    %v52 = vld [vmem:[%s1 + $0x34] sm:$0xf]
    %v53 = vld [vmem:[%s1 + $0x38] sm:$0xf]
    %v54 = vld [vmem:[%s1 + $0x3c] sm:$0xf]
    %v55 = vld [vmem:[%s1 + $0x40] sm:$0xf]
    %v56 = vld [vmem:[%s1 + $0x44] sm:$0xf]
    %v57 = vld [vmem:[%s1 + $0x48] sm:$0xf]
    %v58 = vld [vmem:[%s1 + $0x4c] sm:$0xf]
    %v59 = vld [vmem:[%s1 + $0x50] sm:$0xf]
    %v60 = vld [vmem:[%s1 + $0x54] sm:$0xf]
    %v61 = vld [vmem:[%s1 + $0x58] sm:$0xf]
    %v62 = vld [vmem:[%s1 + $0x5c] sm:$0xf]
    %v63 = vld [vmem:[%s1 + $0x60] sm:$0xf]
    %v64 = vld [vmem:[%s1 + $0x64] sm:$0xf]
    %v65 = vld [vmem:[%s1 + $0x68] sm:$0xf]
    %v66 = vld [vmem:[%s1 + $0x6c] sm:$0xf]
    %v67 = vld [vmem:[%s1 + $0x70] sm:$0xf]
    %v68 = vld [vmem:[%s1 + $0x74] sm:$0xf]
    %v69 = vld [vmem:[%s1 + $0x78] sm:$0xf]
    %v70 = vld [vmem:[%s1 + $0x7c] sm:$0xf]
    %v71 = vld [vmem:[%s2] sm:$0xf]
    %v72 = vld [vmem:[%s2 + $0x4] sm:$0xf]
    %v73 = vld [vmem:[%s2 + $0x8] sm:$0xf]
    %v74 = vld [vmem:[%s2 + $0xc] sm:$0xf]
    %v75 = vld [vmem:[%s2 + $0x10] sm:$0xf]
    %v76 = vld [vmem:[%s2 + $0x14] sm:$0xf]
    %v77 = vld [vmem:[%s2 + $0x18] sm:$0xf]
    %v78 = vld [vmem:[%s2 + $0x1c] sm:$0xf]
    %v79 = vld [vmem:[%s2 + $0x20] sm:$0xf]
    %v80 = vld [vmem:[%s2 + $0x24] sm:$0xf]
    %v81 = vld [vmem:[%s2 + $0x28] sm:$0xf]
    %v82 = vld [vmem:[%s2 + $0x2c] sm:$0xf]
    %v83 = vld [vmem:[%s2 + $0x30] sm:$0xf]
    %v84 = vld [vmem:[%s2 + $0x34] sm:$0xf]
    %v85 = vld [vmem:[%s2 + $0x38] sm:$0xf]
    %v86 = vld [vmem:[%s2 + $0x3c] sm:$0xf]
    %v87 = vld [vmem:[%s2 + $0x40] sm:$0xf]
    %v88 = vld [vmem:[%s2 + $0x44] sm:$0xf]
    %v89 = vld [vmem:[%s2 + $0x48] sm:$0xf]
    %v90 = vld [vmem:[%s2 + $0x4c] sm:$0xf]
    %v91 = vld [vmem:[%s2 + $0x50] sm:$0xf]
    %v92 = vld [vmem:[%s2 + $0x54] sm:$0xf]
    %v93 = vld [vmem:[%s2 + $0x58] sm:$0xf]
    %v94 = vld [vmem:[%s2 + $0x5c] sm:$0xf]
    %v95 = vld [vmem:[%s2 + $0x60] sm:$0xf]
    %v96 = vld [vmem:[%s2 + $0x64] sm:$0xf]
    %v97 = vld [vmem:[%s2 + $0x68] sm:$0xf]
    %v98 = vld [vmem:[%s2 + $0x6c] sm:$0xf]
    %v99 = vld [vmem:[%s2 + $0x70] sm:$0xf]
    %v100 = vld [vmem:[%s2 + $0x74] sm:$0xf]
    %v101 = vld [vmem:[%s2 + $0x78] sm:$0xf]
    %v102 = vld [vmem:[%s2 + $0x7c] sm:$0xf]
    %v103 = vpack.c.bf16 %v37, %v37
    %v104 = vpack.c.bf16 %v38, %v38
    %v105 = vunpack.c.l.bf16 %v103
    %v106 = vunpack.c.l.bf16 %v104
    %v107 = vsub.f32 %v37, %v105
    %v108 = vsub.f32 %v38, %v106
    %v109 = vpack.c.bf16 %v107, %v107
    %v110 = vpack.c.bf16 %v108, %v108
    %v143 = vunpack.c.l.b16 %v39
    %v144 = vunpack.c.l.b16 %v40
    %v145 = vunpack.c.l.b16 %v41
    %v146 = vunpack.c.l.b16 %v42
    %v147 = vunpack.c.l.b16 %v43
    %v148 = vunpack.c.l.b16 %v44
    %v149 = vunpack.c.l.b16 %v45
    %v150 = vunpack.c.l.b16 %v46
    %v151 = vunpack.c.l.b16 %v47
    %v152 = vunpack.c.l.b16 %v48
    %v153 = vunpack.c.l.b16 %v49
    %v154 = vunpack.c.l.b16 %v50
    %v155 = vunpack.c.l.b16 %v51
    %v156 = vunpack.c.l.b16 %v52
    %v157 = vunpack.c.l.b16 %v53
    %v158 = vunpack.c.l.b16 %v54
    %v159 = vunpack.c.l.b16 %v55
    %v160 = vunpack.c.l.b16 %v56
    %v161 = vunpack.c.l.b16 %v57
    %v162 = vunpack.c.l.b16 %v58
    %v163 = vunpack.c.l.b16 %v59
    %v164 = vunpack.c.l.b16 %v60
    %v165 = vunpack.c.l.b16 %v61
    %v166 = vunpack.c.l.b16 %v62
    %v167 = vunpack.c.l.b16 %v63
    %v168 = vunpack.c.l.b16 %v64
    %v169 = vunpack.c.l.b16 %v65
    %v170 = vunpack.c.l.b16 %v66
    %v171 = vunpack.c.l.b16 %v67
    %v172 = vunpack.c.l.b16 %v68
    %v173 = vunpack.c.l.b16 %v69
    %v174 = vunpack.c.l.b16 %v70
    %v175 = vpack.c.b16 %v144, %v143
    %v176 = vpack.c.b16 %v146, %v145
    %v177 = vpack.c.b16 %v148, %v147
    %v178 = vpack.c.b16 %v150, %v149
    %v179 = vpack.c.b16 %v152, %v151
    %v180 = vpack.c.b16 %v154, %v153
    %v181 = vpack.c.b16 %v156, %v155
    %v182 = vpack.c.b16 %v158, %v157
    %v183 = vpack.c.b16 %v160, %v159
    %v184 = vpack.c.b16 %v162, %v161
    %v185 = vpack.c.b16 %v164, %v163
    %v186 = vpack.c.b16 %v166, %v165
    %v187 = vpack.c.b16 %v168, %v167
    %v188 = vpack.c.b16 %v170, %v169
    %v189 = vpack.c.b16 %v172, %v171
    %v190 = vpack.c.b16 %v174, %v173
    %207 = vmatprep.subr.bf16.mxu0 0
    %208 = vmatpush1.bf16.msra.mxu0 %v182
    %209 = vmatprep.subr.bf16.mxu0 0
    %210 = vmatpush1.bf16.msra.mxu0 %v181
    %211 = vmatprep.subr.bf16.mxu0 0
    %212 = vmatpush1.bf16.msra.mxu0 %v180
    %213 = vmatprep.subr.bf16.mxu0 0
    %214 = vmatpush1.bf16.msra.mxu0 %v179
    %215 = vmatprep.subr.bf16.mxu0 0
    %216 = vmatpush1.bf16.msra.mxu0 %v178
    %217 = vmatprep.subr.bf16.mxu0 0
    %218 = vmatpush1.bf16.msra.mxu0 %v177
    %219 = vmatprep.subr.bf16.mxu0 0
    %220 = vmatpush1.bf16.msra.mxu0 %v176
    %221 = vmatprep.subr.bf16.mxu0 0
    %222 = vmatpush1.bf16.msra.mxu0 %v175
    %223 = vmatprep.subr.bf16.mxu0 0
    %224 = vmatpush2.bf16.msra.mxu0 %v190
    %225 = vmatprep.subr.bf16.mxu0 0
    %226 = vmatpush2.bf16.msra.mxu0 %v189
    %227 = vmatprep.subr.bf16.mxu0 0
    %228 = vmatpush2.bf16.msra.mxu0 %v188
    %229 = vmatprep.subr.bf16.mxu0 0
    %230 = vmatpush2.bf16.msra.mxu0 %v187
    %231 = vmatprep.subr.bf16.mxu0 0
    %232 = vmatpush2.bf16.msra.mxu0 %v186
    %233 = vmatprep.subr.bf16.mxu0 0
    %234 = vmatpush2.bf16.msra.mxu0 %v185
    %235 = vmatprep.subr.bf16.mxu0 0
    %236 = vmatpush2.bf16.msra.mxu0 %v184
    %237 = vmatprep.subr.bf16.mxu0 0
    %238 = vmatpush2.bf16.msra.mxu0 %v183
    %239 = vmatprep.mubr.bf16.mxu0 %v110
    %240 = vmatmul.mubr.bf16.gmra.mxu0 %v109
    %v241 = vpop.f32.mrf.mxu0
    %v242 = vadd.f32 0.0, %v241
    %v243 = vpop.f32.mrf.mxu0
    %v244 = vpop.f32.mrf.mxu0
    %v245 = vpop.f32.mrf.mxu0
    %246 = vdwg.mxu0
    %247 = vmatprep.subr.bf16.mxu0 0
    %248 = vmatpush1.bf16.msra.mxu0 %v182
    %249 = vmatprep.subr.bf16.mxu0 0
    %250 = vmatpush1.bf16.msra.mxu0 %v181
    %251 = vmatprep.subr.bf16.mxu0 0
    %252 = vmatpush1.bf16.msra.mxu0 %v180
    %253 = vmatprep.subr.bf16.mxu0 0
    %254 = vmatpush1.bf16.msra.mxu0 %v179
    %255 = vmatprep.subr.bf16.mxu0 0
    %256 = vmatpush1.bf16.msra.mxu0 %v178
    %257 = vmatprep.subr.bf16.mxu0 0
    %258 = vmatpush1.bf16.msra.mxu0 %v177
    %259 = vmatprep.subr.bf16.mxu0 0
    %260 = vmatpush1.bf16.msra.mxu0 %v176
    %261 = vmatprep.subr.bf16.mxu0 0
    %262 = vmatpush1.bf16.msra.mxu0 %v175
    %263 = vmatprep.subr.bf16.mxu0 0
    %264 = vmatpush2.bf16.msra.mxu0 %v190
    %265 = vmatprep.subr.bf16.mxu0 0
    %266 = vmatpush2.bf16.msra.mxu0 %v189
    %267 = vmatprep.subr.bf16.mxu0 0
    %268 = vmatpush2.bf16.msra.mxu0 %v188
    %269 = vmatprep.subr.bf16.mxu0 0
    %270 = vmatpush2.bf16.msra.mxu0 %v187
    %271 = vmatprep.subr.bf16.mxu0 0
    %272 = vmatpush2.bf16.msra.mxu0 %v186
    %273 = vmatprep.subr.bf16.mxu0 0
    %274 = vmatpush2.bf16.msra.mxu0 %v185
    %275 = vmatprep.subr.bf16.mxu0 0
    %276 = vmatpush2.bf16.msra.mxu0 %v184
    %277 = vmatprep.subr.bf16.mxu0 0
    %278 = vmatpush2.bf16.msra.mxu0 %v183
    %279 = vmatprep.mubr.bf16.mxu0 %v104
    %280 = vmatmul.mubr.bf16.gmra.mxu0 %v103
    %v281 = vpop.f32.mrf.mxu0
    %v282 = vadd.f32 %v242, %v281
    %v283 = vpop.f32.mrf.mxu0
    %v284 = vpop.f32.mrf.mxu0
    %v285 = vpop.f32.mrf.mxu0
    %286 = vdwg.mxu0
    %v319 = vunpack.c.l.b16 %v71
    %v320 = vunpack.c.l.b16 %v72
    %v321 = vunpack.c.l.b16 %v73
    %v322 = vunpack.c.l.b16 %v74
    %v323 = vunpack.c.l.b16 %v75
    %v324 = vunpack.c.l.b16 %v76
    %v325 = vunpack.c.l.b16 %v77
    %v326 = vunpack.c.l.b16 %v78
    %v327 = vunpack.c.l.b16 %v79
    %v328 = vunpack.c.l.b16 %v80
    %v329 = vunpack.c.l.b16 %v81
    %v330 = vunpack.c.l.b16 %v82
    %v331 = vunpack.c.l.b16 %v83
    %v332 = vunpack.c.l.b16 %v84
    %v333 = vunpack.c.l.b16 %v85
    %v334 = vunpack.c.l.b16 %v86
    %v335 = vunpack.c.l.b16 %v87
    %v336 = vunpack.c.l.b16 %v88
    %v337 = vunpack.c.l.b16 %v89
    %v338 = vunpack.c.l.b16 %v90
    %v339 = vunpack.c.l.b16 %v91
    %v340 = vunpack.c.l.b16 %v92
    %v341 = vunpack.c.l.b16 %v93
    %v342 = vunpack.c.l.b16 %v94
    %v343 = vunpack.c.l.b16 %v95
    %v344 = vunpack.c.l.b16 %v96
    %v345 = vunpack.c.l.b16 %v97
    %v346 = vunpack.c.l.b16 %v98
    %v347 = vunpack.c.l.b16 %v99
    %v348 = vunpack.c.l.b16 %v100
    %v349 = vunpack.c.l.b16 %v101
    %v350 = vunpack.c.l.b16 %v102
    %v351 = vpack.c.b16 %v320, %v319
    %v352 = vpack.c.b16 %v322, %v321
    %v353 = vpack.c.b16 %v324, %v323
    %v354 = vpack.c.b16 %v326, %v325
    %v355 = vpack.c.b16 %v328, %v327
    %v356 = vpack.c.b16 %v330, %v329
    %v357 = vpack.c.b16 %v332, %v331
    %v358 = vpack.c.b16 %v334, %v333
    %v359 = vpack.c.b16 %v336, %v335
    %v360 = vpack.c.b16 %v338, %v337
    %v361 = vpack.c.b16 %v340, %v339
    %v362 = vpack.c.b16 %v342, %v341
    %v363 = vpack.c.b16 %v344, %v343
    %v364 = vpack.c.b16 %v346, %v345
    %v365 = vpack.c.b16 %v348, %v347
    %v366 = vpack.c.b16 %v350, %v349
    %383 = vmatprep.subr.bf16.mxu0 0
    %384 = vmatpush1.bf16.msra.mxu0 %v358
    %385 = vmatprep.subr.bf16.mxu0 0
    %386 = vmatpush1.bf16.msra.mxu0 %v357
    %387 = vmatprep.subr.bf16.mxu0 0
    %388 = vmatpush1.bf16.msra.mxu0 %v356
    %389 = vmatprep.subr.bf16.mxu0 0
    %390 = vmatpush1.bf16.msra.mxu0 %v355
    %391 = vmatprep.subr.bf16.mxu0 0
    %392 = vmatpush1.bf16.msra.mxu0 %v354
    %393 = vmatprep.subr.bf16.mxu0 0
    %394 = vmatpush1.bf16.msra.mxu0 %v353
    %395 = vmatprep.subr.bf16.mxu0 0
    %396 = vmatpush1.bf16.msra.mxu0 %v352
    %397 = vmatprep.subr.bf16.mxu0 0
    %398 = vmatpush1.bf16.msra.mxu0 %v351
    %399 = vmatprep.subr.bf16.mxu0 0
    %400 = vmatpush2.bf16.msra.mxu0 %v366
    %401 = vmatprep.subr.bf16.mxu0 0
    %402 = vmatpush2.bf16.msra.mxu0 %v365
    %403 = vmatprep.subr.bf16.mxu0 0
    %404 = vmatpush2.bf16.msra.mxu0 %v364
    %405 = vmatprep.subr.bf16.mxu0 0
    %406 = vmatpush2.bf16.msra.mxu0 %v363
    %407 = vmatprep.subr.bf16.mxu0 0
    %408 = vmatpush2.bf16.msra.mxu0 %v362
    %409 = vmatprep.subr.bf16.mxu0 0
    %410 = vmatpush2.bf16.msra.mxu0 %v361
    %411 = vmatprep.subr.bf16.mxu0 0
    %412 = vmatpush2.bf16.msra.mxu0 %v360
    %413 = vmatprep.subr.bf16.mxu0 0
    %414 = vmatpush2.bf16.msra.mxu0 %v359
    %415 = vmatprep.mubr.bf16.mxu0 %v110
    %416 = vmatmul.mubr.bf16.gmra.mxu0 %v109
    %v417 = vpop.f32.mrf.mxu0
    %v418 = vadd.f32 0.0, %v417
    %v419 = vpop.f32.mrf.mxu0
    %v420 = vpop.f32.mrf.mxu0
    %v421 = vpop.f32.mrf.mxu0
    %422 = vdwg.mxu0
    %423 = vmatprep.subr.bf16.mxu0 0
    %424 = vmatpush1.bf16.msra.mxu0 %v358
    %425 = vmatprep.subr.bf16.mxu0 0
    %426 = vmatpush1.bf16.msra.mxu0 %v357
    %427 = vmatprep.subr.bf16.mxu0 0
    %428 = vmatpush1.bf16.msra.mxu0 %v356
    %429 = vmatprep.subr.bf16.mxu0 0
    %430 = vmatpush1.bf16.msra.mxu0 %v355
    %431 = vmatprep.subr.bf16.mxu0 0
    %432 = vmatpush1.bf16.msra.mxu0 %v354
    %433 = vmatprep.subr.bf16.mxu0 0
    %434 = vmatpush1.bf16.msra.mxu0 %v353
    %435 = vmatprep.subr.bf16.mxu0 0
    %436 = vmatpush1.bf16.msra.mxu0 %v352
    %437 = vmatprep.subr.bf16.mxu0 0
    %438 = vmatpush1.bf16.msra.mxu0 %v351
    %439 = vmatprep.subr.bf16.mxu0 0
    %440 = vmatpush2.bf16.msra.mxu0 %v366
    %441 = vmatprep.subr.bf16.mxu0 0
    %442 = vmatpush2.bf16.msra.mxu0 %v365
    %443 = vmatprep.subr.bf16.mxu0 0
    %444 = vmatpush2.bf16.msra.mxu0 %v364
    %445 = vmatprep.subr.bf16.mxu0 0
    %446 = vmatpush2.bf16.msra.mxu0 %v363
    %447 = vmatprep.subr.bf16.mxu0 0
    %448 = vmatpush2.bf16.msra.mxu0 %v362
    %449 = vmatprep.subr.bf16.mxu0 0
    %450 = vmatpush2.bf16.msra.mxu0 %v361
    %451 = vmatprep.subr.bf16.mxu0 0
    %452 = vmatpush2.bf16.msra.mxu0 %v360
    %453 = vmatprep.subr.bf16.mxu0 0
    %454 = vmatpush2.bf16.msra.mxu0 %v359
    %455 = vmatprep.mubr.bf16.mxu0 %v104
    %456 = vmatmul.mubr.bf16.gmra.mxu0 %v103
    %v457 = vpop.f32.mrf.mxu0
    %v458 = vadd.f32 %v418, %v457
    %v459 = vpop.f32.mrf.mxu0
    %v460 = vpop.f32.mrf.mxu0
    %v461 = vpop.f32.mrf.mxu0
    %462 = vdwg.mxu0
    %v463 = vld [vmem:[%s3] sm:$0xff]
    %v464 = vld [vmem:[%s3 + $0x8] sm:$0xff]
    %v465 = vld [vmem:[%s5] sm:$0xff]
    %v466 = vld [vmem:[%s5 + $0x8] sm:$0xff]
    %468 = vset.pattern.permute.xlu0 0
    %469 = vperm.xlu0 %468, %v465
    %v470 = vpop.permute.xlu0 %469
    %473 = vset.pattern.permute.xlu0 0
    %474 = vperm.xlu0 %473, %v466
    %v475 = vpop.permute.xlu0 %474
    %vm477 = vcmask 64512
    %v479 = vsel %vm477, %v463, 0
    %v482 = vsel %vm477, %v464, 0
    %484 = vmatprep.subr.mxu0 0.0
    %485 = vmatpush1.msra.mxu0 0.0
    %486 = vmatprep.subr.mxu0 0.0
    %487 = vmatpush1.msra.mxu0 0.0
    %488 = vmatprep.subr.mxu0 0.0
    %489 = vmatpush1.msra.mxu0 0.0
    %490 = vmatprep.subr.mxu0 0.0
    %491 = vmatpush1.msra.mxu0 0.0
    %492 = vmatprep.subr.mxu0 0.0
    %493 = vmatpush1.msra.mxu0 0.0
    %494 = vmatprep.subr.mxu0 0.0
    %495 = vmatpush1.msra.mxu0 0.0
    %496 = vmatprep.subr.mxu0 0.0
    %497 = vmatpush1.msra.mxu0 0.0
    %498 = vmatprep.subr.mxu0 0.0
    %499 = vmatpush1.msra.mxu0 0.0
    %500 = vmatprep.subr.mxu0 0.0
    %501 = vmatpush1.msra.mxu0 0.0
    %502 = vmatprep.subr.mxu0 0.0
    %503 = vmatpush1.msra.mxu0 0.0
    %504 = vmatprep.subr.mxu0 0.0
    %505 = vmatpush1.msra.mxu0 0.0
    %506 = vmatprep.subr.mxu0 0.0
    %507 = vmatpush1.msra.mxu0 0.0
    %508 = vmatprep.subr.mxu0 0.0
    %509 = vmatpush1.msra.mxu0 0.0
    %510 = vmatprep.subr.mxu0 0.0
    %511 = vmatpush1.msra.mxu0 0.0
    %512 = vmatprep.subr.mxu0 0.0
    %513 = vmatpush1.msra.mxu0 0.0
    %514 = vmatprep.subr.mxu0 0.0
    %v515 = vand.u32 %v282, 4294901760
    %516 = vmatpush1.msra.mxu0 %v515
    %517 = vmatprep.subr.mxu0 0.0
    %518 = vmatpush2.msra.mxu0 0.0
    %519 = vmatprep.subr.mxu0 0.0
    %520 = vmatpush2.msra.mxu0 0.0
    %521 = vmatprep.subr.mxu0 0.0
    %522 = vmatpush2.msra.mxu0 0.0
    %523 = vmatprep.subr.mxu0 0.0
    %524 = vmatpush2.msra.mxu0 0.0
    %525 = vmatprep.subr.mxu0 0.0
    %526 = vmatpush2.msra.mxu0 0.0
    %527 = vmatprep.subr.mxu0 0.0
    %528 = vmatpush2.msra.mxu0 0.0
    %529 = vmatprep.subr.mxu0 0.0
    %530 = vmatpush2.msra.mxu0 0.0
    %531 = vmatprep.subr.mxu0 0.0
    %532 = vmatpush2.msra.mxu0 0.0
    %533 = vmatprep.subr.mxu0 0.0
    %534 = vmatpush2.msra.mxu0 0.0
    %535 = vmatprep.subr.mxu0 0.0
    %536 = vmatpush2.msra.mxu0 0.0
    %537 = vmatprep.subr.mxu0 0.0
    %538 = vmatpush2.msra.mxu0 0.0
    %539 = vmatprep.subr.mxu0 0.0
    %540 = vmatpush2.msra.mxu0 0.0
    %541 = vmatprep.subr.mxu0 0.0
    %542 = vmatpush2.msra.mxu0 0.0
    %543 = vmatprep.subr.mxu0 0.0
    %544 = vmatpush2.msra.mxu0 0.0
    %545 = vmatprep.subr.mxu0 0.0
    %546 = vmatpush2.msra.mxu0 0.0
    %547 = vmatprep.subr.mxu0 0.0
    %548 = vmatpush2.msra.mxu0 0.0
    %549 = vmatprep.mubr.f32.mxu0 0.0
    %v550 = vand.u32 %v479, 4294901760
    %v551 = vsub.f32 %v479, %v550
    %v552 = vand.u32 %v551, 4294901760
    %v553 = vsub.f32 %v551, %v552
    %v554 = vand.u32 %v553, 4294901760
    %555 = vmatmul.mubr.f32.gmra.mxu0 %v554
    %v556 = vpop.f32.mrf.mxu0
    %v557 = vadd.f32 %v470, %v556
    %v558 = vpop.f32.mrf.mxu0
    %559 = vmatprep.mubr.f32.mxu0 0.0
    %v560 = vand.u32 %v482, 4294901760
    %v561 = vsub.f32 %v482, %v560
    %v562 = vand.u32 %v561, 4294901760
    %v563 = vsub.f32 %v561, %v562
    %v564 = vand.u32 %v563, 4294901760
    %565 = vmatmul.mubr.f32.gmra.mxu0 %v564
    %v566 = vpop.f32.mrf.mxu0
    %v567 = vadd.f32 %v475, %v566
    %v568 = vpop.f32.mrf.mxu0
    %569 = vdwg.mxu0
    %570 = vmatprep.subr.mxu0 0.0
    %571 = vmatpush1.msra.mxu0 0.0
    %572 = vmatprep.subr.mxu0 0.0
    %573 = vmatpush1.msra.mxu0 0.0
    %574 = vmatprep.subr.mxu0 0.0
    %575 = vmatpush1.msra.mxu0 0.0
    %576 = vmatprep.subr.mxu0 0.0
    %577 = vmatpush1.msra.mxu0 0.0
    %578 = vmatprep.subr.mxu0 0.0
    %579 = vmatpush1.msra.mxu0 0.0
    %580 = vmatprep.subr.mxu0 0.0
    %581 = vmatpush1.msra.mxu0 0.0
    %582 = vmatprep.subr.mxu0 0.0
    %583 = vmatpush1.msra.mxu0 0.0
    %584 = vmatprep.subr.mxu0 0.0
    %585 = vmatpush1.msra.mxu0 0.0
    %586 = vmatprep.subr.mxu0 0.0
    %587 = vmatpush1.msra.mxu0 0.0
    %588 = vmatprep.subr.mxu0 0.0
    %589 = vmatpush1.msra.mxu0 0.0
    %590 = vmatprep.subr.mxu0 0.0
    %591 = vmatpush1.msra.mxu0 0.0
    %592 = vmatprep.subr.mxu0 0.0
    %593 = vmatpush1.msra.mxu0 0.0
    %594 = vmatprep.subr.mxu0 0.0
    %595 = vmatpush1.msra.mxu0 0.0
    %596 = vmatprep.subr.mxu0 0.0
    %597 = vmatpush1.msra.mxu0 0.0
    %598 = vmatprep.subr.mxu0 0.0
    %599 = vmatpush1.msra.mxu0 0.0
    %600 = vmatprep.subr.mxu0 0.0
    %v601 = vand.u32 %v282, 4294901760
    %v602 = vsub.f32 %v282, %v601
    %v603 = vand.u32 %v602, 4294901760
    %v604 = vsub.f32 %v602, %v603
    %v605 = vand.u32 %v604, 4294901760
    %606 = vmatpush1.msra.mxu0 %v605
    %607 = vmatprep.subr.mxu0 0.0
    %608 = vmatpush2.msra.mxu0 0.0
    %609 = vmatprep.subr.mxu0 0.0
    %610 = vmatpush2.msra.mxu0 0.0
    %611 = vmatprep.subr.mxu0 0.0
    %612 = vmatpush2.msra.mxu0 0.0
    %613 = vmatprep.subr.mxu0 0.0
    %614 = vmatpush2.msra.mxu0 0.0
    %615 = vmatprep.subr.mxu0 0.0
    %616 = vmatpush2.msra.mxu0 0.0
    %617 = vmatprep.subr.mxu0 0.0
    %618 = vmatpush2.msra.mxu0 0.0
    %619 = vmatprep.subr.mxu0 0.0
    %620 = vmatpush2.msra.mxu0 0.0
    %621 = vmatprep.subr.mxu0 0.0
    %622 = vmatpush2.msra.mxu0 0.0
    %623 = vmatprep.subr.mxu0 0.0
    %624 = vmatpush2.msra.mxu0 0.0
    %625 = vmatprep.subr.mxu0 0.0
    %626 = vmatpush2.msra.mxu0 0.0
    %627 = vmatprep.subr.mxu0 0.0
    %628 = vmatpush2.msra.mxu0 0.0
    %629 = vmatprep.subr.mxu0 0.0
    %630 = vmatpush2.msra.mxu0 0.0
    %631 = vmatprep.subr.mxu0 0.0
    %632 = vmatpush2.msra.mxu0 0.0
    %633 = vmatprep.subr.mxu0 0.0
    %634 = vmatpush2.msra.mxu0 0.0
    %635 = vmatprep.subr.mxu0 0.0
    %636 = vmatpush2.msra.mxu0 0.0
    %637 = vmatprep.subr.mxu0 0.0
    %638 = vmatpush2.msra.mxu0 0.0
    %639 = vmatprep.mubr.f32.mxu0 0.0
    %v640 = vand.u32 %v479, 4294901760
    %641 = vmatmul.mubr.f32.gmra.mxu0 %v640
    %v642 = vpop.f32.mrf.mxu0
    %v643 = vadd.f32 %v557, %v642
    %v644 = vpop.f32.mrf.mxu0
    %645 = vmatprep.mubr.f32.mxu0 0.0
    %v646 = vand.u32 %v482, 4294901760
    %647 = vmatmul.mubr.f32.gmra.mxu0 %v646
    %v648 = vpop.f32.mrf.mxu0
    %v649 = vadd.f32 %v567, %v648
    %v650 = vpop.f32.mrf.mxu0
    %651 = vdwg.mxu0
    %652 = vmatprep.subr.mxu0 0.0
    %653 = vmatpush1.msra.mxu0 0.0
    %654 = vmatprep.subr.mxu0 0.0
    %655 = vmatpush1.msra.mxu0 0.0
    %656 = vmatprep.subr.mxu0 0.0
    %657 = vmatpush1.msra.mxu0 0.0
    %658 = vmatprep.subr.mxu0 0.0
    %659 = vmatpush1.msra.mxu0 0.0
    %660 = vmatprep.subr.mxu0 0.0
    %661 = vmatpush1.msra.mxu0 0.0
    %662 = vmatprep.subr.mxu0 0.0
    %663 = vmatpush1.msra.mxu0 0.0
    %664 = vmatprep.subr.mxu0 0.0
    %665 = vmatpush1.msra.mxu0 0.0
    %666 = vmatprep.subr.mxu0 0.0
    %667 = vmatpush1.msra.mxu0 0.0
    %668 = vmatprep.subr.mxu0 0.0
    %669 = vmatpush1.msra.mxu0 0.0
    %670 = vmatprep.subr.mxu0 0.0
    %671 = vmatpush1.msra.mxu0 0.0
    %672 = vmatprep.subr.mxu0 0.0
    %673 = vmatpush1.msra.mxu0 0.0
    %674 = vmatprep.subr.mxu0 0.0
    %675 = vmatpush1.msra.mxu0 0.0
    %676 = vmatprep.subr.mxu0 0.0
    %677 = vmatpush1.msra.mxu0 0.0
    %678 = vmatprep.subr.mxu0 0.0
    %679 = vmatpush1.msra.mxu0 0.0
    %680 = vmatprep.subr.mxu0 0.0
    %681 = vmatpush1.msra.mxu0 0.0
    %682 = vmatprep.subr.mxu0 0.0
    %v683 = vand.u32 %v282, 4294901760
    %v684 = vsub.f32 %v282, %v683
    %685 = vmatpush1.msra.mxu0 %v684
    %686 = vmatprep.subr.mxu0 0.0
    %687 = vmatpush2.msra.mxu0 0.0
    %688 = vmatprep.subr.mxu0 0.0
    %689 = vmatpush2.msra.mxu0 0.0
    %690 = vmatprep.subr.mxu0 0.0
    %691 = vmatpush2.msra.mxu0 0.0
    %692 = vmatprep.subr.mxu0 0.0
    %693 = vmatpush2.msra.mxu0 0.0
    %694 = vmatprep.subr.mxu0 0.0
    %695 = vmatpush2.msra.mxu0 0.0
    %696 = vmatprep.subr.mxu0 0.0
    %697 = vmatpush2.msra.mxu0 0.0
    %698 = vmatprep.subr.mxu0 0.0
    %699 = vmatpush2.msra.mxu0 0.0
    %700 = vmatprep.subr.mxu0 0.0
    %701 = vmatpush2.msra.mxu0 0.0
    %702 = vmatprep.subr.mxu0 0.0
    %703 = vmatpush2.msra.mxu0 0.0
    %704 = vmatprep.subr.mxu0 0.0
    %705 = vmatpush2.msra.mxu0 0.0
    %706 = vmatprep.subr.mxu0 0.0
    %707 = vmatpush2.msra.mxu0 0.0
    %708 = vmatprep.subr.mxu0 0.0
    %709 = vmatpush2.msra.mxu0 0.0
    %710 = vmatprep.subr.mxu0 0.0
    %711 = vmatpush2.msra.mxu0 0.0
    %712 = vmatprep.subr.mxu0 0.0
    %713 = vmatpush2.msra.mxu0 0.0
    %714 = vmatprep.subr.mxu0 0.0
    %715 = vmatpush2.msra.mxu0 0.0
    %716 = vmatprep.subr.mxu0 0.0
    %717 = vmatpush2.msra.mxu0 0.0
    %718 = vmatprep.mubr.f32.mxu0 0.0
    %v719 = vand.u32 %v479, 4294901760
    %v720 = vsub.f32 %v479, %v719
    %721 = vmatmul.mubr.f32.gmra.mxu0 %v720
    %v722 = vpop.f32.mrf.mxu0
    %v723 = vadd.f32 %v643, %v722
    %v724 = vpop.f32.mrf.mxu0
    %725 = vmatprep.mubr.f32.mxu0 0.0
    %v726 = vand.u32 %v482, 4294901760
    %v727 = vsub.f32 %v482, %v726
    %728 = vmatmul.mubr.f32.gmra.mxu0 %v727
    %v729 = vpop.f32.mrf.mxu0
    %v730 = vadd.f32 %v649, %v729
    %v731 = vpop.f32.mrf.mxu0
    %732 = vdwg.mxu0
    %733 = vmatprep.subr.mxu0 0.0
    %734 = vmatpush1.msra.mxu0 0.0
    %735 = vmatprep.subr.mxu0 0.0
    %736 = vmatpush1.msra.mxu0 0.0
    %737 = vmatprep.subr.mxu0 0.0
    %738 = vmatpush1.msra.mxu0 0.0
    %739 = vmatprep.subr.mxu0 0.0
    %740 = vmatpush1.msra.mxu0 0.0
    %741 = vmatprep.subr.mxu0 0.0
    %742 = vmatpush1.msra.mxu0 0.0
    %743 = vmatprep.subr.mxu0 0.0
    %744 = vmatpush1.msra.mxu0 0.0
    %745 = vmatprep.subr.mxu0 0.0
    %746 = vmatpush1.msra.mxu0 0.0
    %747 = vmatprep.subr.mxu0 0.0
    %748 = vmatpush1.msra.mxu0 0.0
    %749 = vmatprep.subr.mxu0 0.0
    %750 = vmatpush1.msra.mxu0 0.0
    %751 = vmatprep.subr.mxu0 0.0
    %752 = vmatpush1.msra.mxu0 0.0
    %753 = vmatprep.subr.mxu0 0.0
    %754 = vmatpush1.msra.mxu0 0.0
    %755 = vmatprep.subr.mxu0 0.0
    %756 = vmatpush1.msra.mxu0 0.0
    %757 = vmatprep.subr.mxu0 0.0
    %758 = vmatpush1.msra.mxu0 0.0
    %759 = vmatprep.subr.mxu0 0.0
    %760 = vmatpush1.msra.mxu0 0.0
    %761 = vmatprep.subr.mxu0 0.0
    %762 = vmatpush1.msra.mxu0 0.0
    %763 = vmatprep.subr.mxu0 0.0
    %v764 = vand.u32 %v282, 4294901760
    %765 = vmatpush1.msra.mxu0 %v764
    %766 = vmatprep.subr.mxu0 0.0
    %767 = vmatpush2.msra.mxu0 0.0
    %768 = vmatprep.subr.mxu0 0.0
    %769 = vmatpush2.msra.mxu0 0.0
    %770 = vmatprep.subr.mxu0 0.0
    %771 = vmatpush2.msra.mxu0 0.0
    %772 = vmatprep.subr.mxu0 0.0
    %773 = vmatpush2.msra.mxu0 0.0
    %774 = vmatprep.subr.mxu0 0.0
    %775 = vmatpush2.msra.mxu0 0.0
    %776 = vmatprep.subr.mxu0 0.0
    %777 = vmatpush2.msra.mxu0 0.0
    %778 = vmatprep.subr.mxu0 0.0
    %779 = vmatpush2.msra.mxu0 0.0
    %780 = vmatprep.subr.mxu0 0.0
    %781 = vmatpush2.msra.mxu0 0.0
    %782 = vmatprep.subr.mxu0 0.0
    %783 = vmatpush2.msra.mxu0 0.0
    %784 = vmatprep.subr.mxu0 0.0
    %785 = vmatpush2.msra.mxu0 0.0
    %786 = vmatprep.subr.mxu0 0.0
    %787 = vmatpush2.msra.mxu0 0.0
    %788 = vmatprep.subr.mxu0 0.0
    %789 = vmatpush2.msra.mxu0 0.0
    %790 = vmatprep.subr.mxu0 0.0
    %791 = vmatpush2.msra.mxu0 0.0
    %792 = vmatprep.subr.mxu0 0.0
    %793 = vmatpush2.msra.mxu0 0.0
    %794 = vmatprep.subr.mxu0 0.0
    %795 = vmatpush2.msra.mxu0 0.0
    %796 = vmatprep.subr.mxu0 0.0
    %797 = vmatpush2.msra.mxu0 0.0
    %798 = vmatprep.mubr.f32.mxu0 0.0
    %v799 = vand.u32 %v479, 4294901760
    %v800 = vsub.f32 %v479, %v799
    %v801 = vand.u32 %v800, 4294901760
    %802 = vmatmul.mubr.f32.gmra.mxu0 %v801
    %v803 = vpop.f32.mrf.mxu0
    %v804 = vadd.f32 %v723, %v803
    %v805 = vpop.f32.mrf.mxu0
    %806 = vmatprep.mubr.f32.mxu0 0.0
    %v807 = vand.u32 %v482, 4294901760
    %v808 = vsub.f32 %v482, %v807
    %v809 = vand.u32 %v808, 4294901760
    %810 = vmatmul.mubr.f32.gmra.mxu0 %v809
    %v811 = vpop.f32.mrf.mxu0
    %v812 = vadd.f32 %v730, %v811
    %v813 = vpop.f32.mrf.mxu0
    %814 = vdwg.mxu0
    %815 = vmatprep.subr.mxu0 0.0
    %816 = vmatpush1.msra.mxu0 0.0
    %817 = vmatprep.subr.mxu0 0.0
    %818 = vmatpush1.msra.mxu0 0.0
    %819 = vmatprep.subr.mxu0 0.0
    %820 = vmatpush1.msra.mxu0 0.0
    %821 = vmatprep.subr.mxu0 0.0
    %822 = vmatpush1.msra.mxu0 0.0
    %823 = vmatprep.subr.mxu0 0.0
    %824 = vmatpush1.msra.mxu0 0.0
    %825 = vmatprep.subr.mxu0 0.0
    %826 = vmatpush1.msra.mxu0 0.0
    %827 = vmatprep.subr.mxu0 0.0
    %828 = vmatpush1.msra.mxu0 0.0
    %829 = vmatprep.subr.mxu0 0.0
    %830 = vmatpush1.msra.mxu0 0.0
    %831 = vmatprep.subr.mxu0 0.0
    %832 = vmatpush1.msra.mxu0 0.0
    %833 = vmatprep.subr.mxu0 0.0
    %834 = vmatpush1.msra.mxu0 0.0
    %835 = vmatprep.subr.mxu0 0.0
    %836 = vmatpush1.msra.mxu0 0.0
    %837 = vmatprep.subr.mxu0 0.0
    %838 = vmatpush1.msra.mxu0 0.0
    %839 = vmatprep.subr.mxu0 0.0
    %840 = vmatpush1.msra.mxu0 0.0
    %841 = vmatprep.subr.mxu0 0.0
    %842 = vmatpush1.msra.mxu0 0.0
    %843 = vmatprep.subr.mxu0 0.0
    %844 = vmatpush1.msra.mxu0 0.0
    %845 = vmatprep.subr.mxu0 0.0
    %v846 = vand.u32 %v282, 4294901760
    %v847 = vsub.f32 %v282, %v846
    %v848 = vand.u32 %v847, 4294901760
    %849 = vmatpush1.msra.mxu0 %v848
    %850 = vmatprep.subr.mxu0 0.0
    %851 = vmatpush2.msra.mxu0 0.0
    %852 = vmatprep.subr.mxu0 0.0
    %853 = vmatpush2.msra.mxu0 0.0
    %854 = vmatprep.subr.mxu0 0.0
    %855 = vmatpush2.msra.mxu0 0.0
    %856 = vmatprep.subr.mxu0 0.0
    %857 = vmatpush2.msra.mxu0 0.0
    %858 = vmatprep.subr.mxu0 0.0
    %859 = vmatpush2.msra.mxu0 0.0
    %860 = vmatprep.subr.mxu0 0.0
    %861 = vmatpush2.msra.mxu0 0.0
    %862 = vmatprep.subr.mxu0 0.0
    %863 = vmatpush2.msra.mxu0 0.0
    %864 = vmatprep.subr.mxu0 0.0
    %865 = vmatpush2.msra.mxu0 0.0
    %866 = vmatprep.subr.mxu0 0.0
    %867 = vmatpush2.msra.mxu0 0.0
    %868 = vmatprep.subr.mxu0 0.0
    %869 = vmatpush2.msra.mxu0 0.0
    %870 = vmatprep.subr.mxu0 0.0
    %871 = vmatpush2.msra.mxu0 0.0
    %872 = vmatprep.subr.mxu0 0.0
    %873 = vmatpush2.msra.mxu0 0.0
    %874 = vmatprep.subr.mxu0 0.0
    %875 = vmatpush2.msra.mxu0 0.0
    %876 = vmatprep.subr.mxu0 0.0
    %877 = vmatpush2.msra.mxu0 0.0
    %878 = vmatprep.subr.mxu0 0.0
    %879 = vmatpush2.msra.mxu0 0.0
    %880 = vmatprep.subr.mxu0 0.0
    %881 = vmatpush2.msra.mxu0 0.0
    %882 = vmatprep.mubr.f32.mxu0 0.0
    %v883 = vand.u32 %v479, 4294901760
    %884 = vmatmul.mubr.f32.gmra.mxu0 %v883
    %v885 = vpop.f32.mrf.mxu0
    %v886 = vadd.f32 %v804, %v885
    %v887 = vpop.f32.mrf.mxu0
    %888 = vmatprep.mubr.f32.mxu0 0.0
    %v889 = vand.u32 %v482, 4294901760
    %890 = vmatmul.mubr.f32.gmra.mxu0 %v889
    %v891 = vpop.f32.mrf.mxu0
    %v892 = vadd.f32 %v812, %v891
    %v893 = vpop.f32.mrf.mxu0
    %894 = vdwg.mxu0
    %895 = vmatprep.subr.mxu0 0.0
    %896 = vmatpush1.msra.mxu0 0.0
    %897 = vmatprep.subr.mxu0 0.0
    %898 = vmatpush1.msra.mxu0 0.0
    %899 = vmatprep.subr.mxu0 0.0
    %900 = vmatpush1.msra.mxu0 0.0
    %901 = vmatprep.subr.mxu0 0.0
    %902 = vmatpush1.msra.mxu0 0.0
    %903 = vmatprep.subr.mxu0 0.0
    %904 = vmatpush1.msra.mxu0 0.0
    %905 = vmatprep.subr.mxu0 0.0
    %906 = vmatpush1.msra.mxu0 0.0
    %907 = vmatprep.subr.mxu0 0.0
    %908 = vmatpush1.msra.mxu0 0.0
    %909 = vmatprep.subr.mxu0 0.0
    %910 = vmatpush1.msra.mxu0 0.0
    %911 = vmatprep.subr.mxu0 0.0
    %912 = vmatpush1.msra.mxu0 0.0
    %913 = vmatprep.subr.mxu0 0.0
    %914 = vmatpush1.msra.mxu0 0.0
    %915 = vmatprep.subr.mxu0 0.0
    %916 = vmatpush1.msra.mxu0 0.0
    %917 = vmatprep.subr.mxu0 0.0
    %918 = vmatpush1.msra.mxu0 0.0
    %919 = vmatprep.subr.mxu0 0.0
    %920 = vmatpush1.msra.mxu0 0.0
    %921 = vmatprep.subr.mxu0 0.0
    %922 = vmatpush1.msra.mxu0 0.0
    %923 = vmatprep.subr.mxu0 0.0
    %924 = vmatpush1.msra.mxu0 0.0
    %925 = vmatprep.subr.mxu0 0.0
    %v926 = vand.u32 %v282, 4294901760
    %927 = vmatpush1.msra.mxu0 %v926
    %928 = vmatprep.subr.mxu0 0.0
    %929 = vmatpush2.msra.mxu0 0.0
    %930 = vmatprep.subr.mxu0 0.0
    %931 = vmatpush2.msra.mxu0 0.0
    %932 = vmatprep.subr.mxu0 0.0
    %933 = vmatpush2.msra.mxu0 0.0
    %934 = vmatprep.subr.mxu0 0.0
    %935 = vmatpush2.msra.mxu0 0.0
    %936 = vmatprep.subr.mxu0 0.0
    %937 = vmatpush2.msra.mxu0 0.0
    %938 = vmatprep.subr.mxu0 0.0
    %939 = vmatpush2.msra.mxu0 0.0
    %940 = vmatprep.subr.mxu0 0.0
    %941 = vmatpush2.msra.mxu0 0.0
    %942 = vmatprep.subr.mxu0 0.0
    %943 = vmatpush2.msra.mxu0 0.0
    %944 = vmatprep.subr.mxu0 0.0
    %945 = vmatpush2.msra.mxu0 0.0
    %946 = vmatprep.subr.mxu0 0.0
    %947 = vmatpush2.msra.mxu0 0.0
    %948 = vmatprep.subr.mxu0 0.0
    %949 = vmatpush2.msra.mxu0 0.0
    %950 = vmatprep.subr.mxu0 0.0
    %951 = vmatpush2.msra.mxu0 0.0
    %952 = vmatprep.subr.mxu0 0.0
    %953 = vmatpush2.msra.mxu0 0.0
    %954 = vmatprep.subr.mxu0 0.0
    %955 = vmatpush2.msra.mxu0 0.0
    %956 = vmatprep.subr.mxu0 0.0
    %957 = vmatpush2.msra.mxu0 0.0
    %958 = vmatprep.subr.mxu0 0.0
    %959 = vmatpush2.msra.mxu0 0.0
    %960 = vmatprep.mubr.f32.mxu0 0.0
    %v961 = vand.u32 %v479, 4294901760
    %962 = vmatmul.mubr.f32.gmra.mxu0 %v961
    %v963 = vpop.f32.mrf.mxu0
    %v964 = vadd.f32 %v886, %v963
    %v965 = vpop.f32.mrf.mxu0
    %966 = vmatprep.mubr.f32.mxu0 0.0
    %v967 = vand.u32 %v482, 4294901760
    %968 = vmatmul.mubr.f32.gmra.mxu0 %v967
    %v969 = vpop.f32.mrf.mxu0
    %v970 = vadd.f32 %v892, %v969
    %v971 = vpop.f32.mrf.mxu0
    %972 = vdwg.mxu0
    %v973 = vld [vmem:[%s4] sm:$0xff]
    %v974 = vld [vmem:[%s4 + $0x8] sm:$0xff]
    %v976 = vsel %vm477, %v973, 0
    %v979 = vsel %vm477, %v974, 0
    %981 = vmatprep.subr.mxu0 0.0
    %982 = vmatpush1.msra.mxu0 0.0
    %983 = vmatprep.subr.mxu0 0.0
    %984 = vmatpush1.msra.mxu0 0.0
    %985 = vmatprep.subr.mxu0 0.0
    %986 = vmatpush1.msra.mxu0 0.0
    %987 = vmatprep.subr.mxu0 0.0
    %988 = vmatpush1.msra.mxu0 0.0
    %989 = vmatprep.subr.mxu0 0.0
    %990 = vmatpush1.msra.mxu0 0.0
    %991 = vmatprep.subr.mxu0 0.0
    %992 = vmatpush1.msra.mxu0 0.0
    %993 = vmatprep.subr.mxu0 0.0
    %994 = vmatpush1.msra.mxu0 0.0
    %995 = vmatprep.subr.mxu0 0.0
    %996 = vmatpush1.msra.mxu0 0.0
    %997 = vmatprep.subr.mxu0 0.0
    %998 = vmatpush1.msra.mxu0 0.0
    %999 = vmatprep.subr.mxu0 0.0
    %1000 = vmatpush1.msra.mxu0 0.0
    %1001 = vmatprep.subr.mxu0 0.0
    %1002 = vmatpush1.msra.mxu0 0.0
    %1003 = vmatprep.subr.mxu0 0.0
    %1004 = vmatpush1.msra.mxu0 0.0
    %1005 = vmatprep.subr.mxu0 0.0
    %1006 = vmatpush1.msra.mxu0 0.0
    %1007 = vmatprep.subr.mxu0 0.0
    %1008 = vmatpush1.msra.mxu0 0.0
    %1009 = vmatprep.subr.mxu0 0.0
    %1010 = vmatpush1.msra.mxu0 0.0
    %1011 = vmatprep.subr.mxu0 0.0
    %v1012 = vand.u32 %v458, 4294901760
    %1013 = vmatpush1.msra.mxu0 %v1012
    %1014 = vmatprep.subr.mxu0 0.0
    %1015 = vmatpush2.msra.mxu0 0.0
    %1016 = vmatprep.subr.mxu0 0.0
    %1017 = vmatpush2.msra.mxu0 0.0
    %1018 = vmatprep.subr.mxu0 0.0
    %1019 = vmatpush2.msra.mxu0 0.0
    %1020 = vmatprep.subr.mxu0 0.0
    %1021 = vmatpush2.msra.mxu0 0.0
    %1022 = vmatprep.subr.mxu0 0.0
    %1023 = vmatpush2.msra.mxu0 0.0
    %1024 = vmatprep.subr.mxu0 0.0
    %1025 = vmatpush2.msra.mxu0 0.0
    %1026 = vmatprep.subr.mxu0 0.0
    %1027 = vmatpush2.msra.mxu0 0.0
    %1028 = vmatprep.subr.mxu0 0.0
    %1029 = vmatpush2.msra.mxu0 0.0
    %1030 = vmatprep.subr.mxu0 0.0
    %1031 = vmatpush2.msra.mxu0 0.0
    %1032 = vmatprep.subr.mxu0 0.0
    %1033 = vmatpush2.msra.mxu0 0.0
    %1034 = vmatprep.subr.mxu0 0.0
    %1035 = vmatpush2.msra.mxu0 0.0
    %1036 = vmatprep.subr.mxu0 0.0
    %1037 = vmatpush2.msra.mxu0 0.0
    %1038 = vmatprep.subr.mxu0 0.0
    %1039 = vmatpush2.msra.mxu0 0.0
    %1040 = vmatprep.subr.mxu0 0.0
    %1041 = vmatpush2.msra.mxu0 0.0
    %1042 = vmatprep.subr.mxu0 0.0
    %1043 = vmatpush2.msra.mxu0 0.0
    %1044 = vmatprep.subr.mxu0 0.0
    %1045 = vmatpush2.msra.mxu0 0.0
    %1046 = vmatprep.mubr.f32.mxu0 0.0
    %v1047 = vand.u32 %v976, 4294901760
    %v1048 = vsub.f32 %v976, %v1047
    %v1049 = vand.u32 %v1048, 4294901760
    %v1050 = vsub.f32 %v1048, %v1049
    %v1051 = vand.u32 %v1050, 4294901760
    %1052 = vmatmul.mubr.f32.gmra.mxu0 %v1051
    %v1053 = vpop.f32.mrf.mxu0
    %v1054 = vadd.f32 %v470, %v1053
    %v1055 = vpop.f32.mrf.mxu0
    %1056 = vmatprep.mubr.f32.mxu0 0.0
    %v1057 = vand.u32 %v979, 4294901760
    %v1058 = vsub.f32 %v979, %v1057
    %v1059 = vand.u32 %v1058, 4294901760
    %v1060 = vsub.f32 %v1058, %v1059
    %v1061 = vand.u32 %v1060, 4294901760
    %1062 = vmatmul.mubr.f32.gmra.mxu0 %v1061
    %v1063 = vpop.f32.mrf.mxu0
    %v1064 = vadd.f32 %v475, %v1063
    %v1065 = vpop.f32.mrf.mxu0
    %1066 = vdwg.mxu0
    %1067 = vmatprep.subr.mxu0 0.0
    %1068 = vmatpush1.msra.mxu0 0.0
    %1069 = vmatprep.subr.mxu0 0.0
    %1070 = vmatpush1.msra.mxu0 0.0
    %1071 = vmatprep.subr.mxu0 0.0
    %1072 = vmatpush1.msra.mxu0 0.0
    %1073 = vmatprep.subr.mxu0 0.0
    %1074 = vmatpush1.msra.mxu0 0.0
    %1075 = vmatprep.subr.mxu0 0.0
    %1076 = vmatpush1.msra.mxu0 0.0
    %1077 = vmatprep.subr.mxu0 0.0
    %1078 = vmatpush1.msra.mxu0 0.0
    %1079 = vmatprep.subr.mxu0 0.0
    %1080 = vmatpush1.msra.mxu0 0.0
    %1081 = vmatprep.subr.mxu0 0.0
    %1082 = vmatpush1.msra.mxu0 0.0
    %1083 = vmatprep.subr.mxu0 0.0
    %1084 = vmatpush1.msra.mxu0 0.0
    %1085 = vmatprep.subr.mxu0 0.0
    %1086 = vmatpush1.msra.mxu0 0.0
    %1087 = vmatprep.subr.mxu0 0.0
    %1088 = vmatpush1.msra.mxu0 0.0
    %1089 = vmatprep.subr.mxu0 0.0
    %1090 = vmatpush1.msra.mxu0 0.0
    %1091 = vmatprep.subr.mxu0 0.0
    %1092 = vmatpush1.msra.mxu0 0.0
    %1093 = vmatprep.subr.mxu0 0.0
    %1094 = vmatpush1.msra.mxu0 0.0
    %1095 = vmatprep.subr.mxu0 0.0
    %1096 = vmatpush1.msra.mxu0 0.0
    %1097 = vmatprep.subr.mxu0 0.0
    %v1098 = vand.u32 %v458, 4294901760
    %v1099 = vsub.f32 %v458, %v1098
    %v1100 = vand.u32 %v1099, 4294901760
    %v1101 = vsub.f32 %v1099, %v1100
    %v1102 = vand.u32 %v1101, 4294901760
    %1103 = vmatpush1.msra.mxu0 %v1102
    %1104 = vmatprep.subr.mxu0 0.0
    %1105 = vmatpush2.msra.mxu0 0.0
    %1106 = vmatprep.subr.mxu0 0.0
    %1107 = vmatpush2.msra.mxu0 0.0
    %1108 = vmatprep.subr.mxu0 0.0
    %1109 = vmatpush2.msra.mxu0 0.0
    %1110 = vmatprep.subr.mxu0 0.0
    %1111 = vmatpush2.msra.mxu0 0.0
    %1112 = vmatprep.subr.mxu0 0.0
    %1113 = vmatpush2.msra.mxu0 0.0
    %1114 = vmatprep.subr.mxu0 0.0
    %1115 = vmatpush2.msra.mxu0 0.0
    %1116 = vmatprep.subr.mxu0 0.0
    %1117 = vmatpush2.msra.mxu0 0.0
    %1118 = vmatprep.subr.mxu0 0.0
    %1119 = vmatpush2.msra.mxu0 0.0
    %1120 = vmatprep.subr.mxu0 0.0
    %1121 = vmatpush2.msra.mxu0 0.0
    %1122 = vmatprep.subr.mxu0 0.0
    %1123 = vmatpush2.msra.mxu0 0.0
    %1124 = vmatprep.subr.mxu0 0.0
    %1125 = vmatpush2.msra.mxu0 0.0
    %1126 = vmatprep.subr.mxu0 0.0
    %1127 = vmatpush2.msra.mxu0 0.0
    %1128 = vmatprep.subr.mxu0 0.0
    %1129 = vmatpush2.msra.mxu0 0.0
    %1130 = vmatprep.subr.mxu0 0.0
    %1131 = vmatpush2.msra.mxu0 0.0
    %1132 = vmatprep.subr.mxu0 0.0
    %1133 = vmatpush2.msra.mxu0 0.0
    %1134 = vmatprep.subr.mxu0 0.0
    %1135 = vmatpush2.msra.mxu0 0.0
    %1136 = vmatprep.mubr.f32.mxu0 0.0
    %v1137 = vand.u32 %v976, 4294901760
    %1138 = vmatmul.mubr.f32.gmra.mxu0 %v1137
    %v1139 = vpop.f32.mrf.mxu0
    %v1140 = vadd.f32 %v1054, %v1139
    %v1141 = vpop.f32.mrf.mxu0
    %1142 = vmatprep.mubr.f32.mxu0 0.0
    %v1143 = vand.u32 %v979, 4294901760
    %1144 = vmatmul.mubr.f32.gmra.mxu0 %v1143
    %v1145 = vpop.f32.mrf.mxu0
    %v1146 = vadd.f32 %v1064, %v1145
    %v1147 = vpop.f32.mrf.mxu0
    %1148 = vdwg.mxu0
    %1149 = vmatprep.subr.mxu0 0.0
    %1150 = vmatpush1.msra.mxu0 0.0
    %1151 = vmatprep.subr.mxu0 0.0
    %1152 = vmatpush1.msra.mxu0 0.0
    %1153 = vmatprep.subr.mxu0 0.0
    %1154 = vmatpush1.msra.mxu0 0.0
    %1155 = vmatprep.subr.mxu0 0.0
    %1156 = vmatpush1.msra.mxu0 0.0
    %1157 = vmatprep.subr.mxu0 0.0
    %1158 = vmatpush1.msra.mxu0 0.0
    %1159 = vmatprep.subr.mxu0 0.0
    %1160 = vmatpush1.msra.mxu0 0.0
    %1161 = vmatprep.subr.mxu0 0.0
    %1162 = vmatpush1.msra.mxu0 0.0
    %1163 = vmatprep.subr.mxu0 0.0
    %1164 = vmatpush1.msra.mxu0 0.0
    %1165 = vmatprep.subr.mxu0 0.0
    %1166 = vmatpush1.msra.mxu0 0.0
    %1167 = vmatprep.subr.mxu0 0.0
    %1168 = vmatpush1.msra.mxu0 0.0
    %1169 = vmatprep.subr.mxu0 0.0
    %1170 = vmatpush1.msra.mxu0 0.0
    %1171 = vmatprep.subr.mxu0 0.0
    %1172 = vmatpush1.msra.mxu0 0.0
    %1173 = vmatprep.subr.mxu0 0.0
    %1174 = vmatpush1.msra.mxu0 0.0
    %1175 = vmatprep.subr.mxu0 0.0
    %1176 = vmatpush1.msra.mxu0 0.0
    %1177 = vmatprep.subr.mxu0 0.0
    %1178 = vmatpush1.msra.mxu0 0.0
    %1179 = vmatprep.subr.mxu0 0.0
    %v1180 = vand.u32 %v458, 4294901760
    %v1181 = vsub.f32 %v458, %v1180
    %1182 = vmatpush1.msra.mxu0 %v1181
    %1183 = vmatprep.subr.mxu0 0.0
    %1184 = vmatpush2.msra.mxu0 0.0
    %1185 = vmatprep.subr.mxu0 0.0
    %1186 = vmatpush2.msra.mxu0 0.0
    %1187 = vmatprep.subr.mxu0 0.0
    %1188 = vmatpush2.msra.mxu0 0.0
    %1189 = vmatprep.subr.mxu0 0.0
    %1190 = vmatpush2.msra.mxu0 0.0
    %1191 = vmatprep.subr.mxu0 0.0
    %1192 = vmatpush2.msra.mxu0 0.0
    %1193 = vmatprep.subr.mxu0 0.0
    %1194 = vmatpush2.msra.mxu0 0.0
    %1195 = vmatprep.subr.mxu0 0.0
    %1196 = vmatpush2.msra.mxu0 0.0
    %1197 = vmatprep.subr.mxu0 0.0
    %1198 = vmatpush2.msra.mxu0 0.0
    %1199 = vmatprep.subr.mxu0 0.0
    %1200 = vmatpush2.msra.mxu0 0.0
    %1201 = vmatprep.subr.mxu0 0.0
    %1202 = vmatpush2.msra.mxu0 0.0
    %1203 = vmatprep.subr.mxu0 0.0
    %1204 = vmatpush2.msra.mxu0 0.0
    %1205 = vmatprep.subr.mxu0 0.0
    %1206 = vmatpush2.msra.mxu0 0.0
    %1207 = vmatprep.subr.mxu0 0.0
    %1208 = vmatpush2.msra.mxu0 0.0
    %1209 = vmatprep.subr.mxu0 0.0
    %1210 = vmatpush2.msra.mxu0 0.0
    %1211 = vmatprep.subr.mxu0 0.0
    %1212 = vmatpush2.msra.mxu0 0.0
    %1213 = vmatprep.subr.mxu0 0.0
    %1214 = vmatpush2.msra.mxu0 0.0
    %1215 = vmatprep.mubr.f32.mxu0 0.0
    %v1216 = vand.u32 %v976, 4294901760
    %v1217 = vsub.f32 %v976, %v1216
    %1218 = vmatmul.mubr.f32.gmra.mxu0 %v1217
    %v1219 = vpop.f32.mrf.mxu0
    %v1220 = vadd.f32 %v1140, %v1219
    %v1221 = vpop.f32.mrf.mxu0
    %1222 = vmatprep.mubr.f32.mxu0 0.0
    %v1223 = vand.u32 %v979, 4294901760
    %v1224 = vsub.f32 %v979, %v1223
    %1225 = vmatmul.mubr.f32.gmra.mxu0 %v1224
    %v1226 = vpop.f32.mrf.mxu0
    %v1227 = vadd.f32 %v1146, %v1226
    %v1228 = vpop.f32.mrf.mxu0
    %1229 = vdwg.mxu0
    %1230 = vmatprep.subr.mxu0 0.0
    %1231 = vmatpush1.msra.mxu0 0.0
    %1232 = vmatprep.subr.mxu0 0.0
    %1233 = vmatpush1.msra.mxu0 0.0
    %1234 = vmatprep.subr.mxu0 0.0
    %1235 = vmatpush1.msra.mxu0 0.0
    %1236 = vmatprep.subr.mxu0 0.0
    %1237 = vmatpush1.msra.mxu0 0.0
    %1238 = vmatprep.subr.mxu0 0.0
    %1239 = vmatpush1.msra.mxu0 0.0
    %1240 = vmatprep.subr.mxu0 0.0
    %1241 = vmatpush1.msra.mxu0 0.0
    %1242 = vmatprep.subr.mxu0 0.0
    %1243 = vmatpush1.msra.mxu0 0.0
    %1244 = vmatprep.subr.mxu0 0.0
    %1245 = vmatpush1.msra.mxu0 0.0
    %1246 = vmatprep.subr.mxu0 0.0
    %1247 = vmatpush1.msra.mxu0 0.0
    %1248 = vmatprep.subr.mxu0 0.0
    %1249 = vmatpush1.msra.mxu0 0.0
    %1250 = vmatprep.subr.mxu0 0.0
    %1251 = vmatpush1.msra.mxu0 0.0
    %1252 = vmatprep.subr.mxu0 0.0
    %1253 = vmatpush1.msra.mxu0 0.0
    %1254 = vmatprep.subr.mxu0 0.0
    %1255 = vmatpush1.msra.mxu0 0.0
    %1256 = vmatprep.subr.mxu0 0.0
    %1257 = vmatpush1.msra.mxu0 0.0
    %1258 = vmatprep.subr.mxu0 0.0
    %1259 = vmatpush1.msra.mxu0 0.0
    %1260 = vmatprep.subr.mxu0 0.0
    %v1261 = vand.u32 %v458, 4294901760
    %1262 = vmatpush1.msra.mxu0 %v1261
    %1263 = vmatprep.subr.mxu0 0.0
    %1264 = vmatpush2.msra.mxu0 0.0
    %1265 = vmatprep.subr.mxu0 0.0
    %1266 = vmatpush2.msra.mxu0 0.0
    %1267 = vmatprep.subr.mxu0 0.0
    %1268 = vmatpush2.msra.mxu0 0.0
    %1269 = vmatprep.subr.mxu0 0.0
    %1270 = vmatpush2.msra.mxu0 0.0
    %1271 = vmatprep.subr.mxu0 0.0
    %1272 = vmatpush2.msra.mxu0 0.0
    %1273 = vmatprep.subr.mxu0 0.0
    %1274 = vmatpush2.msra.mxu0 0.0
    %1275 = vmatprep.subr.mxu0 0.0
    %1276 = vmatpush2.msra.mxu0 0.0
    %1277 = vmatprep.subr.mxu0 0.0
    %1278 = vmatpush2.msra.mxu0 0.0
    %1279 = vmatprep.subr.mxu0 0.0
    %1280 = vmatpush2.msra.mxu0 0.0
    %1281 = vmatprep.subr.mxu0 0.0
    %1282 = vmatpush2.msra.mxu0 0.0
    %1283 = vmatprep.subr.mxu0 0.0
    %1284 = vmatpush2.msra.mxu0 0.0
    %1285 = vmatprep.subr.mxu0 0.0
    %1286 = vmatpush2.msra.mxu0 0.0
    %1287 = vmatprep.subr.mxu0 0.0
    %1288 = vmatpush2.msra.mxu0 0.0
    %1289 = vmatprep.subr.mxu0 0.0
    %1290 = vmatpush2.msra.mxu0 0.0
    %1291 = vmatprep.subr.mxu0 0.0
    %1292 = vmatpush2.msra.mxu0 0.0
    %1293 = vmatprep.subr.mxu0 0.0
    %1294 = vmatpush2.msra.mxu0 0.0
    %1295 = vmatprep.mubr.f32.mxu0 0.0
    %v1296 = vand.u32 %v976, 4294901760
    %v1297 = vsub.f32 %v976, %v1296
    %v1298 = vand.u32 %v1297, 4294901760
    %1299 = vmatmul.mubr.f32.gmra.mxu0 %v1298
    %v1300 = vpop.f32.mrf.mxu0
    %v1301 = vadd.f32 %v1220, %v1300
    %v1302 = vpop.f32.mrf.mxu0
    %1303 = vmatprep.mubr.f32.mxu0 0.0
    %v1304 = vand.u32 %v979, 4294901760
    %v1305 = vsub.f32 %v979, %v1304
    %v1306 = vand.u32 %v1305, 4294901760
    %1307 = vmatmul.mubr.f32.gmra.mxu0 %v1306
    %v1308 = vpop.f32.mrf.mxu0
    %v1309 = vadd.f32 %v1227, %v1308
    %v1310 = vpop.f32.mrf.mxu0
    %1311 = vdwg.mxu0
    %1312 = vmatprep.subr.mxu0 0.0
    %1313 = vmatpush1.msra.mxu0 0.0
    %1314 = vmatprep.subr.mxu0 0.0
    %1315 = vmatpush1.msra.mxu0 0.0
    %1316 = vmatprep.subr.mxu0 0.0
    %1317 = vmatpush1.msra.mxu0 0.0
    %1318 = vmatprep.subr.mxu0 0.0
    %1319 = vmatpush1.msra.mxu0 0.0
    %1320 = vmatprep.subr.mxu0 0.0
    %1321 = vmatpush1.msra.mxu0 0.0
    %1322 = vmatprep.subr.mxu0 0.0
    %1323 = vmatpush1.msra.mxu0 0.0
    %1324 = vmatprep.subr.mxu0 0.0
    %1325 = vmatpush1.msra.mxu0 0.0
    %1326 = vmatprep.subr.mxu0 0.0
    %1327 = vmatpush1.msra.mxu0 0.0
    %1328 = vmatprep.subr.mxu0 0.0
    %1329 = vmatpush1.msra.mxu0 0.0
    %1330 = vmatprep.subr.mxu0 0.0
    %1331 = vmatpush1.msra.mxu0 0.0
    %1332 = vmatprep.subr.mxu0 0.0
    %1333 = vmatpush1.msra.mxu0 0.0
    %1334 = vmatprep.subr.mxu0 0.0
    %1335 = vmatpush1.msra.mxu0 0.0
    %1336 = vmatprep.subr.mxu0 0.0
    %1337 = vmatpush1.msra.mxu0 0.0
    %1338 = vmatprep.subr.mxu0 0.0
    %1339 = vmatpush1.msra.mxu0 0.0
    %1340 = vmatprep.subr.mxu0 0.0
    %1341 = vmatpush1.msra.mxu0 0.0
    %1342 = vmatprep.subr.mxu0 0.0
    %v1343 = vand.u32 %v458, 4294901760
    %v1344 = vsub.f32 %v458, %v1343
    %v1345 = vand.u32 %v1344, 4294901760
    %1346 = vmatpush1.msra.mxu0 %v1345
    %1347 = vmatprep.subr.mxu0 0.0
    %1348 = vmatpush2.msra.mxu0 0.0
    %1349 = vmatprep.subr.mxu0 0.0
    %1350 = vmatpush2.msra.mxu0 0.0
    %1351 = vmatprep.subr.mxu0 0.0
    %1352 = vmatpush2.msra.mxu0 0.0
    %1353 = vmatprep.subr.mxu0 0.0
    %1354 = vmatpush2.msra.mxu0 0.0
    %1355 = vmatprep.subr.mxu0 0.0
    %1356 = vmatpush2.msra.mxu0 0.0
    %1357 = vmatprep.subr.mxu0 0.0
    %1358 = vmatpush2.msra.mxu0 0.0
    %1359 = vmatprep.subr.mxu0 0.0
    %1360 = vmatpush2.msra.mxu0 0.0
    %1361 = vmatprep.subr.mxu0 0.0
    %1362 = vmatpush2.msra.mxu0 0.0
    %1363 = vmatprep.subr.mxu0 0.0
    %1364 = vmatpush2.msra.mxu0 0.0
    %1365 = vmatprep.subr.mxu0 0.0
    %1366 = vmatpush2.msra.mxu0 0.0
    %1367 = vmatprep.subr.mxu0 0.0
    %1368 = vmatpush2.msra.mxu0 0.0
    %1369 = vmatprep.subr.mxu0 0.0
    %1370 = vmatpush2.msra.mxu0 0.0
    %1371 = vmatprep.subr.mxu0 0.0
    %1372 = vmatpush2.msra.mxu0 0.0
    %1373 = vmatprep.subr.mxu0 0.0
    %1374 = vmatpush2.msra.mxu0 0.0
    %1375 = vmatprep.subr.mxu0 0.0
    %1376 = vmatpush2.msra.mxu0 0.0
    %1377 = vmatprep.subr.mxu0 0.0
    %1378 = vmatpush2.msra.mxu0 0.0
    %1379 = vmatprep.mubr.f32.mxu0 0.0
    %v1380 = vand.u32 %v976, 4294901760
    %1381 = vmatmul.mubr.f32.gmra.mxu0 %v1380
    %v1382 = vpop.f32.mrf.mxu0
    %v1383 = vadd.f32 %v1301, %v1382
    %v1384 = vpop.f32.mrf.mxu0
    %1385 = vmatprep.mubr.f32.mxu0 0.0
    %v1386 = vand.u32 %v979, 4294901760
    %1387 = vmatmul.mubr.f32.gmra.mxu0 %v1386
    %v1388 = vpop.f32.mrf.mxu0
    %v1389 = vadd.f32 %v1309, %v1388
    %v1390 = vpop.f32.mrf.mxu0
    %1391 = vdwg.mxu0
    %1392 = vmatprep.subr.mxu0 0.0
    %1393 = vmatpush1.msra.mxu0 0.0
    %1394 = vmatprep.subr.mxu0 0.0
    %1395 = vmatpush1.msra.mxu0 0.0
    %1396 = vmatprep.subr.mxu0 0.0
    %1397 = vmatpush1.msra.mxu0 0.0
    %1398 = vmatprep.subr.mxu0 0.0
    %1399 = vmatpush1.msra.mxu0 0.0
    %1400 = vmatprep.subr.mxu0 0.0
    %1401 = vmatpush1.msra.mxu0 0.0
    %1402 = vmatprep.subr.mxu0 0.0
    %1403 = vmatpush1.msra.mxu0 0.0
    %1404 = vmatprep.subr.mxu0 0.0
    %1405 = vmatpush1.msra.mxu0 0.0
    %1406 = vmatprep.subr.mxu0 0.0
    %1407 = vmatpush1.msra.mxu0 0.0
    %1408 = vmatprep.subr.mxu0 0.0
    %1409 = vmatpush1.msra.mxu0 0.0
    %1410 = vmatprep.subr.mxu0 0.0
    %1411 = vmatpush1.msra.mxu0 0.0
    %1412 = vmatprep.subr.mxu0 0.0
    %1413 = vmatpush1.msra.mxu0 0.0
    %1414 = vmatprep.subr.mxu0 0.0
    %1415 = vmatpush1.msra.mxu0 0.0
    %1416 = vmatprep.subr.mxu0 0.0
    %1417 = vmatpush1.msra.mxu0 0.0
    %1418 = vmatprep.subr.mxu0 0.0
    %1419 = vmatpush1.msra.mxu0 0.0
    %1420 = vmatprep.subr.mxu0 0.0
    %1421 = vmatpush1.msra.mxu0 0.0
    %1422 = vmatprep.subr.mxu0 0.0
    %v1423 = vand.u32 %v458, 4294901760
    %1424 = vmatpush1.msra.mxu0 %v1423
    %1425 = vmatprep.subr.mxu0 0.0
    %1426 = vmatpush2.msra.mxu0 0.0
    %1427 = vmatprep.subr.mxu0 0.0
    %1428 = vmatpush2.msra.mxu0 0.0
    %1429 = vmatprep.subr.mxu0 0.0
    %1430 = vmatpush2.msra.mxu0 0.0
    %1431 = vmatprep.subr.mxu0 0.0
    %1432 = vmatpush2.msra.mxu0 0.0
    %1433 = vmatprep.subr.mxu0 0.0
    %1434 = vmatpush2.msra.mxu0 0.0
    %1435 = vmatprep.subr.mxu0 0.0
    %1436 = vmatpush2.msra.mxu0 0.0
    %1437 = vmatprep.subr.mxu0 0.0
    %1438 = vmatpush2.msra.mxu0 0.0
    %1439 = vmatprep.subr.mxu0 0.0
    %1440 = vmatpush2.msra.mxu0 0.0
    %1441 = vmatprep.subr.mxu0 0.0
    %1442 = vmatpush2.msra.mxu0 0.0
    %1443 = vmatprep.subr.mxu0 0.0
    %1444 = vmatpush2.msra.mxu0 0.0
    %1445 = vmatprep.subr.mxu0 0.0
    %1446 = vmatpush2.msra.mxu0 0.0
    %1447 = vmatprep.subr.mxu0 0.0
    %1448 = vmatpush2.msra.mxu0 0.0
    %1449 = vmatprep.subr.mxu0 0.0
    %1450 = vmatpush2.msra.mxu0 0.0
    %1451 = vmatprep.subr.mxu0 0.0
    %1452 = vmatpush2.msra.mxu0 0.0
    %1453 = vmatprep.subr.mxu0 0.0
    %1454 = vmatpush2.msra.mxu0 0.0
    %1455 = vmatprep.subr.mxu0 0.0
    %1456 = vmatpush2.msra.mxu0 0.0
    %1457 = vmatprep.mubr.f32.mxu0 0.0
    %v1458 = vand.u32 %v976, 4294901760
    %1459 = vmatmul.mubr.f32.gmra.mxu0 %v1458
    %v1460 = vpop.f32.mrf.mxu0
    %v1461 = vadd.f32 %v1383, %v1460
    %v1462 = vpop.f32.mrf.mxu0
    %1463 = vmatprep.mubr.f32.mxu0 0.0
    %v1464 = vand.u32 %v979, 4294901760
    %1465 = vmatmul.mubr.f32.gmra.mxu0 %v1464
    %v1466 = vpop.f32.mrf.mxu0
    %v1467 = vadd.f32 %v1389, %v1466
    %v1468 = vpop.f32.mrf.mxu0
    %1469 = vdwg.mxu0
    %v1470 = vadd.f32 %v964, 3.0
    %v1471 = vadd.f32 %v970, 3.0
    %v1472 = vmax.f32 %v1470, 0.0
    %v1473 = vmax.f32 %v1471, 0.0
    %v1474 = vmin.f32 %v1472, 6.0
    %v1475 = vmin.f32 %v1473, 6.0
    %v1476 = vmul.f32 %v964, %v1474
    %v1477 = vmul.f32 %v970, %v1475
    %v1478 = vmul.f32 %v1476, 0.16666667
    %v1479 = vmul.f32 %v1477, 0.16666667
    %v1480 = vadd.f32 %v1461, 3.0
    %v1481 = vadd.f32 %v1467, 3.0
    %v1482 = vmax.f32 %v1480, 0.0
    %v1483 = vmax.f32 %v1481, 0.0
    %v1484 = vmin.f32 %v1482, 6.0
    %v1485 = vmin.f32 %v1483, 6.0
    %v1486 = vmul.f32 %v1461, %v1484
    %v1487 = vmul.f32 %v1467, %v1485
    %v1488 = vmul.f32 %v1486, 0.16666667
    %v1489 = vmul.f32 %v1487, 0.16666667
    %v1490 = vld [vmem:[%s6] sm:$0xff]
    %v1491 = vld [vmem:[%s7] sm:$0xff]
    %1493 = vset.pattern.permute.xlu0 0
    %1494 = vperm.xlu0 %1493, %v1491
    %v1495 = vpop.permute.xlu0 %1494
    %vm1497 = vcmask 130048
    %v1499 = vsel %vm1497, %v1490, 0
    %1501 = vmatprep.subr.mxu0 0.0
    %1502 = vmatpush1.msra.mxu0 0.0
    %1503 = vmatprep.subr.mxu0 0.0
    %1504 = vmatpush1.msra.mxu0 0.0
    %1505 = vmatprep.subr.mxu0 0.0
    %1506 = vmatpush1.msra.mxu0 0.0
    %1507 = vmatprep.subr.mxu0 0.0
    %1508 = vmatpush1.msra.mxu0 0.0
    %1509 = vmatprep.subr.mxu0 0.0
    %1510 = vmatpush1.msra.mxu0 0.0
    %1511 = vmatprep.subr.mxu0 0.0
    %1512 = vmatpush1.msra.mxu0 0.0
    %1513 = vmatprep.subr.mxu0 0.0
    %1514 = vmatpush1.msra.mxu0 0.0
    %1515 = vmatprep.subr.mxu0 0.0
    %1516 = vmatpush1.msra.mxu0 0.0
    %1517 = vmatprep.subr.mxu0 0.0
    %1518 = vmatpush1.msra.mxu0 0.0
    %1519 = vmatprep.subr.mxu0 0.0
    %1520 = vmatpush1.msra.mxu0 0.0
    %1521 = vmatprep.subr.mxu0 0.0
    %1522 = vmatpush1.msra.mxu0 0.0
    %1523 = vmatprep.subr.mxu0 0.0
    %1524 = vmatpush1.msra.mxu0 0.0
    %1525 = vmatprep.subr.mxu0 0.0
    %1526 = vmatpush1.msra.mxu0 0.0
    %1527 = vmatprep.subr.mxu0 0.0
    %1528 = vmatpush1.msra.mxu0 0.0
    %1529 = vmatprep.subr.mxu0 0.0
    %v1530 = vand.u32 %v1479, 4294901760
    %1531 = vmatpush1.msra.mxu0 %v1530
    %1532 = vmatprep.subr.mxu0 0.0
    %v1533 = vand.u32 %v1478, 4294901760
    %1534 = vmatpush1.msra.mxu0 %v1533
    %1535 = vmatprep.subr.mxu0 0.0
    %1536 = vmatpush2.msra.mxu0 0.0
    %1537 = vmatprep.subr.mxu0 0.0
    %1538 = vmatpush2.msra.mxu0 0.0
    %1539 = vmatprep.subr.mxu0 0.0
    %1540 = vmatpush2.msra.mxu0 0.0
    %1541 = vmatprep.subr.mxu0 0.0
    %1542 = vmatpush2.msra.mxu0 0.0
    %1543 = vmatprep.subr.mxu0 0.0
    %1544 = vmatpush2.msra.mxu0 0.0
    %1545 = vmatprep.subr.mxu0 0.0
    %1546 = vmatpush2.msra.mxu0 0.0
    %1547 = vmatprep.subr.mxu0 0.0
    %1548 = vmatpush2.msra.mxu0 0.0
    %1549 = vmatprep.subr.mxu0 0.0
    %1550 = vmatpush2.msra.mxu0 0.0
    %1551 = vmatprep.subr.mxu0 0.0
    %1552 = vmatpush2.msra.mxu0 0.0
    %1553 = vmatprep.subr.mxu0 0.0
    %1554 = vmatpush2.msra.mxu0 0.0
    %1555 = vmatprep.subr.mxu0 0.0
    %1556 = vmatpush2.msra.mxu0 0.0
    %1557 = vmatprep.subr.mxu0 0.0
    %1558 = vmatpush2.msra.mxu0 0.0
    %1559 = vmatprep.subr.mxu0 0.0
    %1560 = vmatpush2.msra.mxu0 0.0
    %1561 = vmatprep.subr.mxu0 0.0
    %1562 = vmatpush2.msra.mxu0 0.0
    %1563 = vmatprep.subr.mxu0 0.0
    %1564 = vmatpush2.msra.mxu0 0.0
    %1565 = vmatprep.subr.mxu0 0.0
    %1566 = vmatpush2.msra.mxu0 0.0
    %1567 = vmatprep.mubr.f32.mxu0 0.0
    %v1568 = vand.u32 %v1499, 4294901760
    %v1569 = vsub.f32 %v1499, %v1568
    %v1570 = vand.u32 %v1569, 4294901760
    %v1571 = vsub.f32 %v1569, %v1570
    %v1572 = vand.u32 %v1571, 4294901760
    %1573 = vmatmul.mubr.f32.gmra.mxu0 %v1572
    %v1574 = vpop.f32.mrf.mxu0
    %v1575 = vadd.f32 %v1495, %v1574
    %v1576 = vpop.f32.mrf.mxu0
    %1577 = vdwg.mxu0
    %1578 = vmatprep.subr.mxu0 0.0
    %1579 = vmatpush1.msra.mxu0 0.0
    %1580 = vmatprep.subr.mxu0 0.0
    %1581 = vmatpush1.msra.mxu0 0.0
    %1582 = vmatprep.subr.mxu0 0.0
    %1583 = vmatpush1.msra.mxu0 0.0
    %1584 = vmatprep.subr.mxu0 0.0
    %1585 = vmatpush1.msra.mxu0 0.0
    %1586 = vmatprep.subr.mxu0 0.0
    %1587 = vmatpush1.msra.mxu0 0.0
    %1588 = vmatprep.subr.mxu0 0.0
    %1589 = vmatpush1.msra.mxu0 0.0
    %1590 = vmatprep.subr.mxu0 0.0
    %1591 = vmatpush1.msra.mxu0 0.0
    %1592 = vmatprep.subr.mxu0 0.0
    %1593 = vmatpush1.msra.mxu0 0.0
    %1594 = vmatprep.subr.mxu0 0.0
    %1595 = vmatpush1.msra.mxu0 0.0
    %1596 = vmatprep.subr.mxu0 0.0
    %1597 = vmatpush1.msra.mxu0 0.0
    %1598 = vmatprep.subr.mxu0 0.0
    %1599 = vmatpush1.msra.mxu0 0.0
    %1600 = vmatprep.subr.mxu0 0.0
    %1601 = vmatpush1.msra.mxu0 0.0
    %1602 = vmatprep.subr.mxu0 0.0
    %1603 = vmatpush1.msra.mxu0 0.0
    %1604 = vmatprep.subr.mxu0 0.0
    %1605 = vmatpush1.msra.mxu0 0.0
    %1606 = vmatprep.subr.mxu0 0.0
    %v1607 = vand.u32 %v1479, 4294901760
    %v1608 = vsub.f32 %v1479, %v1607
    %v1609 = vand.u32 %v1608, 4294901760
    %v1610 = vsub.f32 %v1608, %v1609
    %v1611 = vand.u32 %v1610, 4294901760
    %1612 = vmatpush1.msra.mxu0 %v1611
    %1613 = vmatprep.subr.mxu0 0.0
    %v1614 = vand.u32 %v1478, 4294901760
    %v1615 = vsub.f32 %v1478, %v1614
    %v1616 = vand.u32 %v1615, 4294901760
    %v1617 = vsub.f32 %v1615, %v1616
    %v1618 = vand.u32 %v1617, 4294901760
    %1619 = vmatpush1.msra.mxu0 %v1618
    %1620 = vmatprep.subr.mxu0 0.0
    %1621 = vmatpush2.msra.mxu0 0.0
    %1622 = vmatprep.subr.mxu0 0.0
    %1623 = vmatpush2.msra.mxu0 0.0
    %1624 = vmatprep.subr.mxu0 0.0
    %1625 = vmatpush2.msra.mxu0 0.0
    %1626 = vmatprep.subr.mxu0 0.0
    %1627 = vmatpush2.msra.mxu0 0.0
    %1628 = vmatprep.subr.mxu0 0.0
    %1629 = vmatpush2.msra.mxu0 0.0
    %1630 = vmatprep.subr.mxu0 0.0
    %1631 = vmatpush2.msra.mxu0 0.0
    %1632 = vmatprep.subr.mxu0 0.0
    %1633 = vmatpush2.msra.mxu0 0.0
    %1634 = vmatprep.subr.mxu0 0.0
    %1635 = vmatpush2.msra.mxu0 0.0
    %1636 = vmatprep.subr.mxu0 0.0
    %1637 = vmatpush2.msra.mxu0 0.0
    %1638 = vmatprep.subr.mxu0 0.0
    %1639 = vmatpush2.msra.mxu0 0.0
    %1640 = vmatprep.subr.mxu0 0.0
    %1641 = vmatpush2.msra.mxu0 0.0
    %1642 = vmatprep.subr.mxu0 0.0
    %1643 = vmatpush2.msra.mxu0 0.0
    %1644 = vmatprep.subr.mxu0 0.0
    %1645 = vmatpush2.msra.mxu0 0.0
    %1646 = vmatprep.subr.mxu0 0.0
    %1647 = vmatpush2.msra.mxu0 0.0
    %1648 = vmatprep.subr.mxu0 0.0
    %1649 = vmatpush2.msra.mxu0 0.0
    %1650 = vmatprep.subr.mxu0 0.0
    %1651 = vmatpush2.msra.mxu0 0.0
    %1652 = vmatprep.mubr.f32.mxu0 0.0
    %v1653 = vand.u32 %v1499, 4294901760
    %1654 = vmatmul.mubr.f32.gmra.mxu0 %v1653
    %v1655 = vpop.f32.mrf.mxu0
    %v1656 = vadd.f32 %v1575, %v1655
    %v1657 = vpop.f32.mrf.mxu0
    %1658 = vdwg.mxu0
    %1659 = vmatprep.subr.mxu0 0.0
    %1660 = vmatpush1.msra.mxu0 0.0
    %1661 = vmatprep.subr.mxu0 0.0
    %1662 = vmatpush1.msra.mxu0 0.0
    %1663 = vmatprep.subr.mxu0 0.0
    %1664 = vmatpush1.msra.mxu0 0.0
    %1665 = vmatprep.subr.mxu0 0.0
    %1666 = vmatpush1.msra.mxu0 0.0
    %1667 = vmatprep.subr.mxu0 0.0
    %1668 = vmatpush1.msra.mxu0 0.0
    %1669 = vmatprep.subr.mxu0 0.0
    %1670 = vmatpush1.msra.mxu0 0.0
    %1671 = vmatprep.subr.mxu0 0.0
    %1672 = vmatpush1.msra.mxu0 0.0
    %1673 = vmatprep.subr.mxu0 0.0
    %1674 = vmatpush1.msra.mxu0 0.0
    %1675 = vmatprep.subr.mxu0 0.0
    %1676 = vmatpush1.msra.mxu0 0.0
    %1677 = vmatprep.subr.mxu0 0.0
    %1678 = vmatpush1.msra.mxu0 0.0
    %1679 = vmatprep.subr.mxu0 0.0
    %1680 = vmatpush1.msra.mxu0 0.0
    %1681 = vmatprep.subr.mxu0 0.0
    %1682 = vmatpush1.msra.mxu0 0.0
    %1683 = vmatprep.subr.mxu0 0.0
    %1684 = vmatpush1.msra.mxu0 0.0
    %1685 = vmatprep.subr.mxu0 0.0
    %1686 = vmatpush1.msra.mxu0 0.0
    %1687 = vmatprep.subr.mxu0 0.0
    %v1688 = vand.u32 %v1479, 4294901760
    %v1689 = vsub.f32 %v1479, %v1688
    %1690 = vmatpush1.msra.mxu0 %v1689
    %1691 = vmatprep.subr.mxu0 0.0
    %v1692 = vand.u32 %v1478, 4294901760
    %v1693 = vsub.f32 %v1478, %v1692
    %1694 = vmatpush1.msra.mxu0 %v1693
    %1695 = vmatprep.subr.mxu0 0.0
    %1696 = vmatpush2.msra.mxu0 0.0
    %1697 = vmatprep.subr.mxu0 0.0
    %1698 = vmatpush2.msra.mxu0 0.0
    %1699 = vmatprep.subr.mxu0 0.0
    %1700 = vmatpush2.msra.mxu0 0.0
    %1701 = vmatprep.subr.mxu0 0.0
    %1702 = vmatpush2.msra.mxu0 0.0
    %1703 = vmatprep.subr.mxu0 0.0
    %1704 = vmatpush2.msra.mxu0 0.0
    %1705 = vmatprep.subr.mxu0 0.0
    %1706 = vmatpush2.msra.mxu0 0.0
    %1707 = vmatprep.subr.mxu0 0.0
    %1708 = vmatpush2.msra.mxu0 0.0
    %1709 = vmatprep.subr.mxu0 0.0
    %1710 = vmatpush2.msra.mxu0 0.0
    %1711 = vmatprep.subr.mxu0 0.0
    %1712 = vmatpush2.msra.mxu0 0.0
    %1713 = vmatprep.subr.mxu0 0.0
    %1714 = vmatpush2.msra.mxu0 0.0
    %1715 = vmatprep.subr.mxu0 0.0
    %1716 = vmatpush2.msra.mxu0 0.0
    %1717 = vmatprep.subr.mxu0 0.0
    %1718 = vmatpush2.msra.mxu0 0.0
    %1719 = vmatprep.subr.mxu0 0.0
    %1720 = vmatpush2.msra.mxu0 0.0
    %1721 = vmatprep.subr.mxu0 0.0
    %1722 = vmatpush2.msra.mxu0 0.0
    %1723 = vmatprep.subr.mxu0 0.0
    %1724 = vmatpush2.msra.mxu0 0.0
    %1725 = vmatprep.subr.mxu0 0.0
    %1726 = vmatpush2.msra.mxu0 0.0
    %1727 = vmatprep.mubr.f32.mxu0 0.0
    %v1728 = vand.u32 %v1499, 4294901760
    %v1729 = vsub.f32 %v1499, %v1728
    %1730 = vmatmul.mubr.f32.gmra.mxu0 %v1729
    %v1731 = vpop.f32.mrf.mxu0
    %v1732 = vadd.f32 %v1656, %v1731
    %v1733 = vpop.f32.mrf.mxu0
    %1734 = vdwg.mxu0
    %1735 = vmatprep.subr.mxu0 0.0
    %1736 = vmatpush1.msra.mxu0 0.0
    %1737 = vmatprep.subr.mxu0 0.0
    %1738 = vmatpush1.msra.mxu0 0.0
    %1739 = vmatprep.subr.mxu0 0.0
    %1740 = vmatpush1.msra.mxu0 0.0
    %1741 = vmatprep.subr.mxu0 0.0
    %1742 = vmatpush1.msra.mxu0 0.0
    %1743 = vmatprep.subr.mxu0 0.0
    %1744 = vmatpush1.msra.mxu0 0.0
    %1745 = vmatprep.subr.mxu0 0.0
    %1746 = vmatpush1.msra.mxu0 0.0
    %1747 = vmatprep.subr.mxu0 0.0
    %1748 = vmatpush1.msra.mxu0 0.0
    %1749 = vmatprep.subr.mxu0 0.0
    %1750 = vmatpush1.msra.mxu0 0.0
    %1751 = vmatprep.subr.mxu0 0.0
    %1752 = vmatpush1.msra.mxu0 0.0
    %1753 = vmatprep.subr.mxu0 0.0
    %1754 = vmatpush1.msra.mxu0 0.0
    %1755 = vmatprep.subr.mxu0 0.0
    %1756 = vmatpush1.msra.mxu0 0.0
    %1757 = vmatprep.subr.mxu0 0.0
    %1758 = vmatpush1.msra.mxu0 0.0
    %1759 = vmatprep.subr.mxu0 0.0
    %1760 = vmatpush1.msra.mxu0 0.0
    %1761 = vmatprep.subr.mxu0 0.0
    %1762 = vmatpush1.msra.mxu0 0.0
    %1763 = vmatprep.subr.mxu0 0.0
    %v1764 = vand.u32 %v1479, 4294901760
    %1765 = vmatpush1.msra.mxu0 %v1764
    %1766 = vmatprep.subr.mxu0 0.0
    %v1767 = vand.u32 %v1478, 4294901760
    %1768 = vmatpush1.msra.mxu0 %v1767
    %1769 = vmatprep.subr.mxu0 0.0
    %1770 = vmatpush2.msra.mxu0 0.0
    %1771 = vmatprep.subr.mxu0 0.0
    %1772 = vmatpush2.msra.mxu0 0.0
    %1773 = vmatprep.subr.mxu0 0.0
    %1774 = vmatpush2.msra.mxu0 0.0
    %1775 = vmatprep.subr.mxu0 0.0
    %1776 = vmatpush2.msra.mxu0 0.0
    %1777 = vmatprep.subr.mxu0 0.0
    %1778 = vmatpush2.msra.mxu0 0.0
    %1779 = vmatprep.subr.mxu0 0.0
    %1780 = vmatpush2.msra.mxu0 0.0
    %1781 = vmatprep.subr.mxu0 0.0
    %1782 = vmatpush2.msra.mxu0 0.0
    %1783 = vmatprep.subr.mxu0 0.0
    %1784 = vmatpush2.msra.mxu0 0.0
    %1785 = vmatprep.subr.mxu0 0.0
    %1786 = vmatpush2.msra.mxu0 0.0
    %1787 = vmatprep.subr.mxu0 0.0
    %1788 = vmatpush2.msra.mxu0 0.0
    %1789 = vmatprep.subr.mxu0 0.0
    %1790 = vmatpush2.msra.mxu0 0.0
    %1791 = vmatprep.subr.mxu0 0.0
    %1792 = vmatpush2.msra.mxu0 0.0
    %1793 = vmatprep.subr.mxu0 0.0
    %1794 = vmatpush2.msra.mxu0 0.0
    %1795 = vmatprep.subr.mxu0 0.0
    %1796 = vmatpush2.msra.mxu0 0.0
    %1797 = vmatprep.subr.mxu0 0.0
    %1798 = vmatpush2.msra.mxu0 0.0
    %1799 = vmatprep.subr.mxu0 0.0
    %1800 = vmatpush2.msra.mxu0 0.0
    %1801 = vmatprep.mubr.f32.mxu0 0.0
    %v1802 = vand.u32 %v1499, 4294901760
    %v1803 = vsub.f32 %v1499, %v1802
    %v1804 = vand.u32 %v1803, 4294901760
    %1805 = vmatmul.mubr.f32.gmra.mxu0 %v1804
    %v1806 = vpop.f32.mrf.mxu0
    %v1807 = vadd.f32 %v1732, %v1806
    %v1808 = vpop.f32.mrf.mxu0
    %1809 = vdwg.mxu0
    %1810 = vmatprep.subr.mxu0 0.0
    %1811 = vmatpush1.msra.mxu0 0.0
    %1812 = vmatprep.subr.mxu0 0.0
    %1813 = vmatpush1.msra.mxu0 0.0
    %1814 = vmatprep.subr.mxu0 0.0
    %1815 = vmatpush1.msra.mxu0 0.0
    %1816 = vmatprep.subr.mxu0 0.0
    %1817 = vmatpush1.msra.mxu0 0.0
    %1818 = vmatprep.subr.mxu0 0.0
    %1819 = vmatpush1.msra.mxu0 0.0
    %1820 = vmatprep.subr.mxu0 0.0
    %1821 = vmatpush1.msra.mxu0 0.0
    %1822 = vmatprep.subr.mxu0 0.0
    %1823 = vmatpush1.msra.mxu0 0.0
    %1824 = vmatprep.subr.mxu0 0.0
    %1825 = vmatpush1.msra.mxu0 0.0
    %1826 = vmatprep.subr.mxu0 0.0
    %1827 = vmatpush1.msra.mxu0 0.0
    %1828 = vmatprep.subr.mxu0 0.0
    %1829 = vmatpush1.msra.mxu0 0.0
    %1830 = vmatprep.subr.mxu0 0.0
    %1831 = vmatpush1.msra.mxu0 0.0
    %1832 = vmatprep.subr.mxu0 0.0
    %1833 = vmatpush1.msra.mxu0 0.0
    %1834 = vmatprep.subr.mxu0 0.0
    %1835 = vmatpush1.msra.mxu0 0.0
    %1836 = vmatprep.subr.mxu0 0.0
    %1837 = vmatpush1.msra.mxu0 0.0
    %1838 = vmatprep.subr.mxu0 0.0
    %v1839 = vand.u32 %v1479, 4294901760
    %v1840 = vsub.f32 %v1479, %v1839
    %v1841 = vand.u32 %v1840, 4294901760
    %1842 = vmatpush1.msra.mxu0 %v1841
    %1843 = vmatprep.subr.mxu0 0.0
    %v1844 = vand.u32 %v1478, 4294901760
    %v1845 = vsub.f32 %v1478, %v1844
    %v1846 = vand.u32 %v1845, 4294901760
    %1847 = vmatpush1.msra.mxu0 %v1846
    %1848 = vmatprep.subr.mxu0 0.0
    %1849 = vmatpush2.msra.mxu0 0.0
    %1850 = vmatprep.subr.mxu0 0.0
    %1851 = vmatpush2.msra.mxu0 0.0
    %1852 = vmatprep.subr.mxu0 0.0
    %1853 = vmatpush2.msra.mxu0 0.0
    %1854 = vmatprep.subr.mxu0 0.0
    %1855 = vmatpush2.msra.mxu0 0.0
    %1856 = vmatprep.subr.mxu0 0.0
    %1857 = vmatpush2.msra.mxu0 0.0
    %1858 = vmatprep.subr.mxu0 0.0
    %1859 = vmatpush2.msra.mxu0 0.0
    %1860 = vmatprep.subr.mxu0 0.0
    %1861 = vmatpush2.msra.mxu0 0.0
    %1862 = vmatprep.subr.mxu0 0.0
    %1863 = vmatpush2.msra.mxu0 0.0
    %1864 = vmatprep.subr.mxu0 0.0
    %1865 = vmatpush2.msra.mxu0 0.0
    %1866 = vmatprep.subr.mxu0 0.0
    %1867 = vmatpush2.msra.mxu0 0.0
    %1868 = vmatprep.subr.mxu0 0.0
    %1869 = vmatpush2.msra.mxu0 0.0
    %1870 = vmatprep.subr.mxu0 0.0
    %1871 = vmatpush2.msra.mxu0 0.0
    %1872 = vmatprep.subr.mxu0 0.0
    %1873 = vmatpush2.msra.mxu0 0.0
    %1874 = vmatprep.subr.mxu0 0.0
    %1875 = vmatpush2.msra.mxu0 0.0
    %1876 = vmatprep.subr.mxu0 0.0
    %1877 = vmatpush2.msra.mxu0 0.0
    %1878 = vmatprep.subr.mxu0 0.0
    %1879 = vmatpush2.msra.mxu0 0.0
    %1880 = vmatprep.mubr.f32.mxu0 0.0
    %v1881 = vand.u32 %v1499, 4294901760
    %1882 = vmatmul.mubr.f32.gmra.mxu0 %v1881
    %v1883 = vpop.f32.mrf.mxu0
    %v1884 = vadd.f32 %v1807, %v1883
    %v1885 = vpop.f32.mrf.mxu0
    %1886 = vdwg.mxu0
    %1887 = vmatprep.subr.mxu0 0.0
    %1888 = vmatpush1.msra.mxu0 0.0
    %1889 = vmatprep.subr.mxu0 0.0
    %1890 = vmatpush1.msra.mxu0 0.0
    %1891 = vmatprep.subr.mxu0 0.0
    %1892 = vmatpush1.msra.mxu0 0.0
    %1893 = vmatprep.subr.mxu0 0.0
    %1894 = vmatpush1.msra.mxu0 0.0
    %1895 = vmatprep.subr.mxu0 0.0
    %1896 = vmatpush1.msra.mxu0 0.0
    %1897 = vmatprep.subr.mxu0 0.0
    %1898 = vmatpush1.msra.mxu0 0.0
    %1899 = vmatprep.subr.mxu0 0.0
    %1900 = vmatpush1.msra.mxu0 0.0
    %1901 = vmatprep.subr.mxu0 0.0
    %1902 = vmatpush1.msra.mxu0 0.0
    %1903 = vmatprep.subr.mxu0 0.0
    %1904 = vmatpush1.msra.mxu0 0.0
    %1905 = vmatprep.subr.mxu0 0.0
    %1906 = vmatpush1.msra.mxu0 0.0
    %1907 = vmatprep.subr.mxu0 0.0
    %1908 = vmatpush1.msra.mxu0 0.0
    %1909 = vmatprep.subr.mxu0 0.0
    %1910 = vmatpush1.msra.mxu0 0.0
    %1911 = vmatprep.subr.mxu0 0.0
    %1912 = vmatpush1.msra.mxu0 0.0
    %1913 = vmatprep.subr.mxu0 0.0
    %1914 = vmatpush1.msra.mxu0 0.0
    %1915 = vmatprep.subr.mxu0 0.0
    %v1916 = vand.u32 %v1479, 4294901760
    %1917 = vmatpush1.msra.mxu0 %v1916
    %1918 = vmatprep.subr.mxu0 0.0
    %v1919 = vand.u32 %v1478, 4294901760
    %1920 = vmatpush1.msra.mxu0 %v1919
    %1921 = vmatprep.subr.mxu0 0.0
    %1922 = vmatpush2.msra.mxu0 0.0
    %1923 = vmatprep.subr.mxu0 0.0
    %1924 = vmatpush2.msra.mxu0 0.0
    %1925 = vmatprep.subr.mxu0 0.0
    %1926 = vmatpush2.msra.mxu0 0.0
    %1927 = vmatprep.subr.mxu0 0.0
    %1928 = vmatpush2.msra.mxu0 0.0
    %1929 = vmatprep.subr.mxu0 0.0
    %1930 = vmatpush2.msra.mxu0 0.0
    %1931 = vmatprep.subr.mxu0 0.0
    %1932 = vmatpush2.msra.mxu0 0.0
    %1933 = vmatprep.subr.mxu0 0.0
    %1934 = vmatpush2.msra.mxu0 0.0
    %1935 = vmatprep.subr.mxu0 0.0
    %1936 = vmatpush2.msra.mxu0 0.0
    %1937 = vmatprep.subr.mxu0 0.0
    %1938 = vmatpush2.msra.mxu0 0.0
    %1939 = vmatprep.subr.mxu0 0.0
    %1940 = vmatpush2.msra.mxu0 0.0
    %1941 = vmatprep.subr.mxu0 0.0
    %1942 = vmatpush2.msra.mxu0 0.0
    %1943 = vmatprep.subr.mxu0 0.0
    %1944 = vmatpush2.msra.mxu0 0.0
    %1945 = vmatprep.subr.mxu0 0.0
    %1946 = vmatpush2.msra.mxu0 0.0
    %1947 = vmatprep.subr.mxu0 0.0
    %1948 = vmatpush2.msra.mxu0 0.0
    %1949 = vmatprep.subr.mxu0 0.0
    %1950 = vmatpush2.msra.mxu0 0.0
    %1951 = vmatprep.subr.mxu0 0.0
    %1952 = vmatpush2.msra.mxu0 0.0
    %1953 = vmatprep.mubr.f32.mxu0 0.0
    %v1954 = vand.u32 %v1499, 4294901760
    %1955 = vmatmul.mubr.f32.gmra.mxu0 %v1954
    %v1956 = vpop.f32.mrf.mxu0
    %v1957 = vadd.f32 %v1884, %v1956
    %v1958 = vpop.f32.mrf.mxu0
    %1959 = vdwg.mxu0
    %v1960 = vxor.u32 %v1957, 2147483648
    %v1961 = vmul.f32 %v1960, 1.442695
    %v1962 = vpow.pop %v1961
    %v1963 = vadd.f32 %v1962, 1.0
    %v1964 = vrcp.pop %v1963
    %v1965 = vmul.f32 1.0, %v1964
    %v1966 = vld [vmem:[%s8] sm:$0xff]
    %v1967 = vld [vmem:[%s9] sm:$0xff]
    %1969 = vset.pattern.permute.xlu0 0
    %1970 = vperm.xlu0 %1969, %v1967
    %v1971 = vpop.permute.xlu0 %1970
    %v1974 = vsel %vm1497, %v1966, 0
    %1976 = vmatprep.subr.mxu0 0.0
    %1977 = vmatpush1.msra.mxu0 0.0
    %1978 = vmatprep.subr.mxu0 0.0
    %1979 = vmatpush1.msra.mxu0 0.0
    %1980 = vmatprep.subr.mxu0 0.0
    %1981 = vmatpush1.msra.mxu0 0.0
    %1982 = vmatprep.subr.mxu0 0.0
    %1983 = vmatpush1.msra.mxu0 0.0
    %1984 = vmatprep.subr.mxu0 0.0
    %1985 = vmatpush1.msra.mxu0 0.0
    %1986 = vmatprep.subr.mxu0 0.0
    %1987 = vmatpush1.msra.mxu0 0.0
    %1988 = vmatprep.subr.mxu0 0.0
    %1989 = vmatpush1.msra.mxu0 0.0
    %1990 = vmatprep.subr.mxu0 0.0
    %1991 = vmatpush1.msra.mxu0 0.0
    %1992 = vmatprep.subr.mxu0 0.0
    %1993 = vmatpush1.msra.mxu0 0.0
    %1994 = vmatprep.subr.mxu0 0.0
    %1995 = vmatpush1.msra.mxu0 0.0
    %1996 = vmatprep.subr.mxu0 0.0
    %1997 = vmatpush1.msra.mxu0 0.0
    %1998 = vmatprep.subr.mxu0 0.0
    %1999 = vmatpush1.msra.mxu0 0.0
    %2000 = vmatprep.subr.mxu0 0.0
    %2001 = vmatpush1.msra.mxu0 0.0
    %2002 = vmatprep.subr.mxu0 0.0
    %2003 = vmatpush1.msra.mxu0 0.0
    %2004 = vmatprep.subr.mxu0 0.0
    %v2005 = vand.u32 %v1489, 4294901760
    %2006 = vmatpush1.msra.mxu0 %v2005
    %2007 = vmatprep.subr.mxu0 0.0
    %v2008 = vand.u32 %v1488, 4294901760
    %2009 = vmatpush1.msra.mxu0 %v2008
    %2010 = vmatprep.subr.mxu0 0.0
    %2011 = vmatpush2.msra.mxu0 0.0
    %2012 = vmatprep.subr.mxu0 0.0
    %2013 = vmatpush2.msra.mxu0 0.0
    %2014 = vmatprep.subr.mxu0 0.0
    %2015 = vmatpush2.msra.mxu0 0.0
    %2016 = vmatprep.subr.mxu0 0.0
    %2017 = vmatpush2.msra.mxu0 0.0
    %2018 = vmatprep.subr.mxu0 0.0
    %2019 = vmatpush2.msra.mxu0 0.0
    %2020 = vmatprep.subr.mxu0 0.0
    %2021 = vmatpush2.msra.mxu0 0.0
    %2022 = vmatprep.subr.mxu0 0.0
    %2023 = vmatpush2.msra.mxu0 0.0
    %2024 = vmatprep.subr.mxu0 0.0
    %2025 = vmatpush2.msra.mxu0 0.0
    %2026 = vmatprep.subr.mxu0 0.0
    %2027 = vmatpush2.msra.mxu0 0.0
    %2028 = vmatprep.subr.mxu0 0.0
    %2029 = vmatpush2.msra.mxu0 0.0
    %2030 = vmatprep.subr.mxu0 0.0
    %2031 = vmatpush2.msra.mxu0 0.0
    %2032 = vmatprep.subr.mxu0 0.0
    %2033 = vmatpush2.msra.mxu0 0.0
    %2034 = vmatprep.subr.mxu0 0.0
    %2035 = vmatpush2.msra.mxu0 0.0
    %2036 = vmatprep.subr.mxu0 0.0
    %2037 = vmatpush2.msra.mxu0 0.0
    %2038 = vmatprep.subr.mxu0 0.0
    %2039 = vmatpush2.msra.mxu0 0.0
    %2040 = vmatprep.subr.mxu0 0.0
    %2041 = vmatpush2.msra.mxu0 0.0
    %2042 = vmatprep.mubr.f32.mxu0 0.0
    %v2043 = vand.u32 %v1974, 4294901760
    %v2044 = vsub.f32 %v1974, %v2043
    %v2045 = vand.u32 %v2044, 4294901760
    %v2046 = vsub.f32 %v2044, %v2045
    %v2047 = vand.u32 %v2046, 4294901760
    %2048 = vmatmul.mubr.f32.gmra.mxu0 %v2047
    %v2049 = vpop.f32.mrf.mxu0
    %v2050 = vadd.f32 %v1971, %v2049
    %v2051 = vpop.f32.mrf.mxu0
    %2052 = vdwg.mxu0
    %2053 = vmatprep.subr.mxu0 0.0
    %2054 = vmatpush1.msra.mxu0 0.0
    %2055 = vmatprep.subr.mxu0 0.0
    %2056 = vmatpush1.msra.mxu0 0.0
    %2057 = vmatprep.subr.mxu0 0.0
    %2058 = vmatpush1.msra.mxu0 0.0
    %2059 = vmatprep.subr.mxu0 0.0
    %2060 = vmatpush1.msra.mxu0 0.0
    %2061 = vmatprep.subr.mxu0 0.0
    %2062 = vmatpush1.msra.mxu0 0.0
    %2063 = vmatprep.subr.mxu0 0.0
    %2064 = vmatpush1.msra.mxu0 0.0
    %2065 = vmatprep.subr.mxu0 0.0
    %2066 = vmatpush1.msra.mxu0 0.0
    %2067 = vmatprep.subr.mxu0 0.0
    %2068 = vmatpush1.msra.mxu0 0.0
    %2069 = vmatprep.subr.mxu0 0.0
    %2070 = vmatpush1.msra.mxu0 0.0
    %2071 = vmatprep.subr.mxu0 0.0
    %2072 = vmatpush1.msra.mxu0 0.0
    %2073 = vmatprep.subr.mxu0 0.0
    %2074 = vmatpush1.msra.mxu0 0.0
    %2075 = vmatprep.subr.mxu0 0.0
    %2076 = vmatpush1.msra.mxu0 0.0
    %2077 = vmatprep.subr.mxu0 0.0
    %2078 = vmatpush1.msra.mxu0 0.0
    %2079 = vmatprep.subr.mxu0 0.0
    %2080 = vmatpush1.msra.mxu0 0.0
    %2081 = vmatprep.subr.mxu0 0.0
    %v2082 = vand.u32 %v1489, 4294901760
    %v2083 = vsub.f32 %v1489, %v2082
    %v2084 = vand.u32 %v2083, 4294901760
    %v2085 = vsub.f32 %v2083, %v2084
    %v2086 = vand.u32 %v2085, 4294901760
    %2087 = vmatpush1.msra.mxu0 %v2086
    %2088 = vmatprep.subr.mxu0 0.0
    %v2089 = vand.u32 %v1488, 4294901760
    %v2090 = vsub.f32 %v1488, %v2089
    %v2091 = vand.u32 %v2090, 4294901760
    %v2092 = vsub.f32 %v2090, %v2091
    %v2093 = vand.u32 %v2092, 4294901760
    %2094 = vmatpush1.msra.mxu0 %v2093
    %2095 = vmatprep.subr.mxu0 0.0
    %2096 = vmatpush2.msra.mxu0 0.0
    %2097 = vmatprep.subr.mxu0 0.0
    %2098 = vmatpush2.msra.mxu0 0.0
    %2099 = vmatprep.subr.mxu0 0.0
    %2100 = vmatpush2.msra.mxu0 0.0
    %2101 = vmatprep.subr.mxu0 0.0
    %2102 = vmatpush2.msra.mxu0 0.0
    %2103 = vmatprep.subr.mxu0 0.0
    %2104 = vmatpush2.msra.mxu0 0.0
    %2105 = vmatprep.subr.mxu0 0.0
    %2106 = vmatpush2.msra.mxu0 0.0
    %2107 = vmatprep.subr.mxu0 0.0
    %2108 = vmatpush2.msra.mxu0 0.0
    %2109 = vmatprep.subr.mxu0 0.0
    %2110 = vmatpush2.msra.mxu0 0.0
    %2111 = vmatprep.subr.mxu0 0.0
    %2112 = vmatpush2.msra.mxu0 0.0
    %2113 = vmatprep.subr.mxu0 0.0
    %2114 = vmatpush2.msra.mxu0 0.0
    %2115 = vmatprep.subr.mxu0 0.0
    %2116 = vmatpush2.msra.mxu0 0.0
    %2117 = vmatprep.subr.mxu0 0.0
    %2118 = vmatpush2.msra.mxu0 0.0
    %2119 = vmatprep.subr.mxu0 0.0
    %2120 = vmatpush2.msra.mxu0 0.0
    %2121 = vmatprep.subr.mxu0 0.0
    %2122 = vmatpush2.msra.mxu0 0.0
    %2123 = vmatprep.subr.mxu0 0.0
    %2124 = vmatpush2.msra.mxu0 0.0
    %2125 = vmatprep.subr.mxu0 0.0
    %2126 = vmatpush2.msra.mxu0 0.0
    %2127 = vmatprep.mubr.f32.mxu0 0.0
    %v2128 = vand.u32 %v1974, 4294901760
    %2129 = vmatmul.mubr.f32.gmra.mxu0 %v2128
    %v2130 = vpop.f32.mrf.mxu0
    %v2131 = vadd.f32 %v2050, %v2130
    %v2132 = vpop.f32.mrf.mxu0
    %2133 = vdwg.mxu0
    %2134 = vmatprep.subr.mxu0 0.0
    %2135 = vmatpush1.msra.mxu0 0.0
    %2136 = vmatprep.subr.mxu0 0.0
    %2137 = vmatpush1.msra.mxu0 0.0
    %2138 = vmatprep.subr.mxu0 0.0
    %2139 = vmatpush1.msra.mxu0 0.0
    %2140 = vmatprep.subr.mxu0 0.0
    %2141 = vmatpush1.msra.mxu0 0.0
    %2142 = vmatprep.subr.mxu0 0.0
    %2143 = vmatpush1.msra.mxu0 0.0
    %2144 = vmatprep.subr.mxu0 0.0
    %2145 = vmatpush1.msra.mxu0 0.0
    %2146 = vmatprep.subr.mxu0 0.0
    %2147 = vmatpush1.msra.mxu0 0.0
    %2148 = vmatprep.subr.mxu0 0.0
    %2149 = vmatpush1.msra.mxu0 0.0
    %2150 = vmatprep.subr.mxu0 0.0
    %2151 = vmatpush1.msra.mxu0 0.0
    %2152 = vmatprep.subr.mxu0 0.0
    %2153 = vmatpush1.msra.mxu0 0.0
    %2154 = vmatprep.subr.mxu0 0.0
    %2155 = vmatpush1.msra.mxu0 0.0
    %2156 = vmatprep.subr.mxu0 0.0
    %2157 = vmatpush1.msra.mxu0 0.0
    %2158 = vmatprep.subr.mxu0 0.0
    %2159 = vmatpush1.msra.mxu0 0.0
    %2160 = vmatprep.subr.mxu0 0.0
    %2161 = vmatpush1.msra.mxu0 0.0
    %2162 = vmatprep.subr.mxu0 0.0
    %v2163 = vand.u32 %v1489, 4294901760
    %v2164 = vsub.f32 %v1489, %v2163
    %2165 = vmatpush1.msra.mxu0 %v2164
    %2166 = vmatprep.subr.mxu0 0.0
    %v2167 = vand.u32 %v1488, 4294901760
    %v2168 = vsub.f32 %v1488, %v2167
    %2169 = vmatpush1.msra.mxu0 %v2168
    %2170 = vmatprep.subr.mxu0 0.0
    %2171 = vmatpush2.msra.mxu0 0.0
    %2172 = vmatprep.subr.mxu0 0.0
    %2173 = vmatpush2.msra.mxu0 0.0
    %2174 = vmatprep.subr.mxu0 0.0
    %2175 = vmatpush2.msra.mxu0 0.0
    %2176 = vmatprep.subr.mxu0 0.0
    %2177 = vmatpush2.msra.mxu0 0.0
    %2178 = vmatprep.subr.mxu0 0.0
    %2179 = vmatpush2.msra.mxu0 0.0
    %2180 = vmatprep.subr.mxu0 0.0
    %2181 = vmatpush2.msra.mxu0 0.0
    %2182 = vmatprep.subr.mxu0 0.0
    %2183 = vmatpush2.msra.mxu0 0.0
    %2184 = vmatprep.subr.mxu0 0.0
    %2185 = vmatpush2.msra.mxu0 0.0
    %2186 = vmatprep.subr.mxu0 0.0
    %2187 = vmatpush2.msra.mxu0 0.0
    %2188 = vmatprep.subr.mxu0 0.0
    %2189 = vmatpush2.msra.mxu0 0.0
    %2190 = vmatprep.subr.mxu0 0.0
    %2191 = vmatpush2.msra.mxu0 0.0
    %2192 = vmatprep.subr.mxu0 0.0
    %2193 = vmatpush2.msra.mxu0 0.0
    %2194 = vmatprep.subr.mxu0 0.0
    %2195 = vmatpush2.msra.mxu0 0.0
    %2196 = vmatprep.subr.mxu0 0.0
    %2197 = vmatpush2.msra.mxu0 0.0
    %2198 = vmatprep.subr.mxu0 0.0
    %2199 = vmatpush2.msra.mxu0 0.0
    %2200 = vmatprep.subr.mxu0 0.0
    %2201 = vmatpush2.msra.mxu0 0.0
    %2202 = vmatprep.mubr.f32.mxu0 0.0
    %v2203 = vand.u32 %v1974, 4294901760
    %v2204 = vsub.f32 %v1974, %v2203
    %2205 = vmatmul.mubr.f32.gmra.mxu0 %v2204
    %v2206 = vpop.f32.mrf.mxu0
    %v2207 = vadd.f32 %v2131, %v2206
    %v2208 = vpop.f32.mrf.mxu0
    %2209 = vdwg.mxu0
    %2210 = vmatprep.subr.mxu0 0.0
    %2211 = vmatpush1.msra.mxu0 0.0
    %2212 = vmatprep.subr.mxu0 0.0
    %2213 = vmatpush1.msra.mxu0 0.0
    %2214 = vmatprep.subr.mxu0 0.0
    %2215 = vmatpush1.msra.mxu0 0.0
    %2216 = vmatprep.subr.mxu0 0.0
    %2217 = vmatpush1.msra.mxu0 0.0
    %2218 = vmatprep.subr.mxu0 0.0
    %2219 = vmatpush1.msra.mxu0 0.0
    %2220 = vmatprep.subr.mxu0 0.0
    %2221 = vmatpush1.msra.mxu0 0.0
    %2222 = vmatprep.subr.mxu0 0.0
    %2223 = vmatpush1.msra.mxu0 0.0
    %2224 = vmatprep.subr.mxu0 0.0
    %2225 = vmatpush1.msra.mxu0 0.0
    %2226 = vmatprep.subr.mxu0 0.0
    %2227 = vmatpush1.msra.mxu0 0.0
    %2228 = vmatprep.subr.mxu0 0.0
    %2229 = vmatpush1.msra.mxu0 0.0
    %2230 = vmatprep.subr.mxu0 0.0
    %2231 = vmatpush1.msra.mxu0 0.0
    %2232 = vmatprep.subr.mxu0 0.0
    %2233 = vmatpush1.msra.mxu0 0.0
    %2234 = vmatprep.subr.mxu0 0.0
    %2235 = vmatpush1.msra.mxu0 0.0
    %2236 = vmatprep.subr.mxu0 0.0
    %2237 = vmatpush1.msra.mxu0 0.0
    %2238 = vmatprep.subr.mxu0 0.0
    %v2239 = vand.u32 %v1489, 4294901760
    %2240 = vmatpush1.msra.mxu0 %v2239
    %2241 = vmatprep.subr.mxu0 0.0
    %v2242 = vand.u32 %v1488, 4294901760
    %2243 = vmatpush1.msra.mxu0 %v2242
    %2244 = vmatprep.subr.mxu0 0.0
    %2245 = vmatpush2.msra.mxu0 0.0
    %2246 = vmatprep.subr.mxu0 0.0
    %2247 = vmatpush2.msra.mxu0 0.0
    %2248 = vmatprep.subr.mxu0 0.0
    %2249 = vmatpush2.msra.mxu0 0.0
    %2250 = vmatprep.subr.mxu0 0.0
    %2251 = vmatpush2.msra.mxu0 0.0
    %2252 = vmatprep.subr.mxu0 0.0
    %2253 = vmatpush2.msra.mxu0 0.0
    %2254 = vmatprep.subr.mxu0 0.0
    %2255 = vmatpush2.msra.mxu0 0.0
    %2256 = vmatprep.subr.mxu0 0.0
    %2257 = vmatpush2.msra.mxu0 0.0
    %2258 = vmatprep.subr.mxu0 0.0
    %2259 = vmatpush2.msra.mxu0 0.0
    %2260 = vmatprep.subr.mxu0 0.0
    %2261 = vmatpush2.msra.mxu0 0.0
    %2262 = vmatprep.subr.mxu0 0.0
    %2263 = vmatpush2.msra.mxu0 0.0
    %2264 = vmatprep.subr.mxu0 0.0
    %2265 = vmatpush2.msra.mxu0 0.0
    %2266 = vmatprep.subr.mxu0 0.0
    %2267 = vmatpush2.msra.mxu0 0.0
    %2268 = vmatprep.subr.mxu0 0.0
    %2269 = vmatpush2.msra.mxu0 0.0
    %2270 = vmatprep.subr.mxu0 0.0
    %2271 = vmatpush2.msra.mxu0 0.0
    %2272 = vmatprep.subr.mxu0 0.0
    %2273 = vmatpush2.msra.mxu0 0.0
    %2274 = vmatprep.subr.mxu0 0.0
    %2275 = vmatpush2.msra.mxu0 0.0
    %2276 = vmatprep.mubr.f32.mxu0 0.0
    %v2277 = vand.u32 %v1974, 4294901760
    %v2278 = vsub.f32 %v1974, %v2277
    %v2279 = vand.u32 %v2278, 4294901760
    %2280 = vmatmul.mubr.f32.gmra.mxu0 %v2279
    %v2281 = vpop.f32.mrf.mxu0
    %v2282 = vadd.f32 %v2207, %v2281
    %v2283 = vpop.f32.mrf.mxu0
    %2284 = vdwg.mxu0
    %2285 = vmatprep.subr.mxu0 0.0
    %2286 = vmatpush1.msra.mxu0 0.0
    %2287 = vmatprep.subr.mxu0 0.0
    %2288 = vmatpush1.msra.mxu0 0.0
    %2289 = vmatprep.subr.mxu0 0.0
    %2290 = vmatpush1.msra.mxu0 0.0
    %2291 = vmatprep.subr.mxu0 0.0
    %2292 = vmatpush1.msra.mxu0 0.0
    %2293 = vmatprep.subr.mxu0 0.0
    %2294 = vmatpush1.msra.mxu0 0.0
    %2295 = vmatprep.subr.mxu0 0.0
    %2296 = vmatpush1.msra.mxu0 0.0
    %2297 = vmatprep.subr.mxu0 0.0
    %2298 = vmatpush1.msra.mxu0 0.0
    %2299 = vmatprep.subr.mxu0 0.0
    %2300 = vmatpush1.msra.mxu0 0.0
    %2301 = vmatprep.subr.mxu0 0.0
    %2302 = vmatpush1.msra.mxu0 0.0
    %2303 = vmatprep.subr.mxu0 0.0
    %2304 = vmatpush1.msra.mxu0 0.0
    %2305 = vmatprep.subr.mxu0 0.0
    %2306 = vmatpush1.msra.mxu0 0.0
    %2307 = vmatprep.subr.mxu0 0.0
    %2308 = vmatpush1.msra.mxu0 0.0
    %2309 = vmatprep.subr.mxu0 0.0
    %2310 = vmatpush1.msra.mxu0 0.0
    %2311 = vmatprep.subr.mxu0 0.0
    %2312 = vmatpush1.msra.mxu0 0.0
    %2313 = vmatprep.subr.mxu0 0.0
    %v2314 = vand.u32 %v1489, 4294901760
    %v2315 = vsub.f32 %v1489, %v2314
    %v2316 = vand.u32 %v2315, 4294901760
    %2317 = vmatpush1.msra.mxu0 %v2316
    %2318 = vmatprep.subr.mxu0 0.0
    %v2319 = vand.u32 %v1488, 4294901760
    %v2320 = vsub.f32 %v1488, %v2319
    %v2321 = vand.u32 %v2320, 4294901760
    %2322 = vmatpush1.msra.mxu0 %v2321
    %2323 = vmatprep.subr.mxu0 0.0
    %2324 = vmatpush2.msra.mxu0 0.0
    %2325 = vmatprep.subr.mxu0 0.0
    %2326 = vmatpush2.msra.mxu0 0.0
    %2327 = vmatprep.subr.mxu0 0.0
    %2328 = vmatpush2.msra.mxu0 0.0
    %2329 = vmatprep.subr.mxu0 0.0
    %2330 = vmatpush2.msra.mxu0 0.0
    %2331 = vmatprep.subr.mxu0 0.0
    %2332 = vmatpush2.msra.mxu0 0.0
    %2333 = vmatprep.subr.mxu0 0.0
    %2334 = vmatpush2.msra.mxu0 0.0
    %2335 = vmatprep.subr.mxu0 0.0
    %2336 = vmatpush2.msra.mxu0 0.0
    %2337 = vmatprep.subr.mxu0 0.0
    %2338 = vmatpush2.msra.mxu0 0.0
    %2339 = vmatprep.subr.mxu0 0.0
    %2340 = vmatpush2.msra.mxu0 0.0
    %2341 = vmatprep.subr.mxu0 0.0
    %2342 = vmatpush2.msra.mxu0 0.0
    %2343 = vmatprep.subr.mxu0 0.0
    %2344 = vmatpush2.msra.mxu0 0.0
    %2345 = vmatprep.subr.mxu0 0.0
    %2346 = vmatpush2.msra.mxu0 0.0
    %2347 = vmatprep.subr.mxu0 0.0
    %2348 = vmatpush2.msra.mxu0 0.0
    %2349 = vmatprep.subr.mxu0 0.0
    %2350 = vmatpush2.msra.mxu0 0.0
    %2351 = vmatprep.subr.mxu0 0.0
    %2352 = vmatpush2.msra.mxu0 0.0
    %2353 = vmatprep.subr.mxu0 0.0
    %2354 = vmatpush2.msra.mxu0 0.0
    %2355 = vmatprep.mubr.f32.mxu0 0.0
    %v2356 = vand.u32 %v1974, 4294901760
    %2357 = vmatmul.mubr.f32.gmra.mxu0 %v2356
    %v2358 = vpop.f32.mrf.mxu0
    %v2359 = vadd.f32 %v2282, %v2358
    %v2360 = vpop.f32.mrf.mxu0
    %2361 = vdwg.mxu0
    %2362 = vmatprep.subr.mxu0 0.0
    %2363 = vmatpush1.msra.mxu0 0.0
    %2364 = vmatprep.subr.mxu0 0.0
    %2365 = vmatpush1.msra.mxu0 0.0
    %2366 = vmatprep.subr.mxu0 0.0
    %2367 = vmatpush1.msra.mxu0 0.0
    %2368 = vmatprep.subr.mxu0 0.0
    %2369 = vmatpush1.msra.mxu0 0.0
    %2370 = vmatprep.subr.mxu0 0.0
    %2371 = vmatpush1.msra.mxu0 0.0
    %2372 = vmatprep.subr.mxu0 0.0
    %2373 = vmatpush1.msra.mxu0 0.0
    %2374 = vmatprep.subr.mxu0 0.0
    %2375 = vmatpush1.msra.mxu0 0.0
    %2376 = vmatprep.subr.mxu0 0.0
    %2377 = vmatpush1.msra.mxu0 0.0
    %2378 = vmatprep.subr.mxu0 0.0
    %2379 = vmatpush1.msra.mxu0 0.0
    %2380 = vmatprep.subr.mxu0 0.0
    %2381 = vmatpush1.msra.mxu0 0.0
    %2382 = vmatprep.subr.mxu0 0.0
    %2383 = vmatpush1.msra.mxu0 0.0
    %2384 = vmatprep.subr.mxu0 0.0
    %2385 = vmatpush1.msra.mxu0 0.0
    %2386 = vmatprep.subr.mxu0 0.0
    %2387 = vmatpush1.msra.mxu0 0.0
    %2388 = vmatprep.subr.mxu0 0.0
    %2389 = vmatpush1.msra.mxu0 0.0
    %2390 = vmatprep.subr.mxu0 0.0
    %v2391 = vand.u32 %v1489, 4294901760
    %2392 = vmatpush1.msra.mxu0 %v2391
    %2393 = vmatprep.subr.mxu0 0.0
    %v2394 = vand.u32 %v1488, 4294901760
    %2395 = vmatpush1.msra.mxu0 %v2394
    %2396 = vmatprep.subr.mxu0 0.0
    %2397 = vmatpush2.msra.mxu0 0.0
    %2398 = vmatprep.subr.mxu0 0.0
    %2399 = vmatpush2.msra.mxu0 0.0
    %2400 = vmatprep.subr.mxu0 0.0
    %2401 = vmatpush2.msra.mxu0 0.0
    %2402 = vmatprep.subr.mxu0 0.0
    %2403 = vmatpush2.msra.mxu0 0.0
    %2404 = vmatprep.subr.mxu0 0.0
    %2405 = vmatpush2.msra.mxu0 0.0
    %2406 = vmatprep.subr.mxu0 0.0
    %2407 = vmatpush2.msra.mxu0 0.0
    %2408 = vmatprep.subr.mxu0 0.0
    %2409 = vmatpush2.msra.mxu0 0.0
    %2410 = vmatprep.subr.mxu0 0.0
    %2411 = vmatpush2.msra.mxu0 0.0
    %2412 = vmatprep.subr.mxu0 0.0
    %2413 = vmatpush2.msra.mxu0 0.0
    %2414 = vmatprep.subr.mxu0 0.0
    %2415 = vmatpush2.msra.mxu0 0.0
    %2416 = vmatprep.subr.mxu0 0.0
    %2417 = vmatpush2.msra.mxu0 0.0
    %2418 = vmatprep.subr.mxu0 0.0
    %2419 = vmatpush2.msra.mxu0 0.0
    %2420 = vmatprep.subr.mxu0 0.0
    %2421 = vmatpush2.msra.mxu0 0.0
    %2422 = vmatprep.subr.mxu0 0.0
    %2423 = vmatpush2.msra.mxu0 0.0
    %2424 = vmatprep.subr.mxu0 0.0
    %2425 = vmatpush2.msra.mxu0 0.0
    %2426 = vmatprep.subr.mxu0 0.0
    %2427 = vmatpush2.msra.mxu0 0.0
    %2428 = vmatprep.mubr.f32.mxu0 0.0
    %v2429 = vand.u32 %v1974, 4294901760
    %2430 = vmatmul.mubr.f32.gmra.mxu0 %v2429
    %v2431 = vpop.f32.mrf.mxu0
    %v2432 = vadd.f32 %v2359, %v2431
    %v2433 = vpop.f32.mrf.mxu0
    %2434 = vdwg.mxu0
    %v2435 = vxor.u32 %v2432, 2147483648
    %v2436 = vmul.f32 %v2435, 1.442695
    %v2437 = vpow.pop %v2436
    %v2438 = vadd.f32 %v2437, 1.0
    %v2439 = vrcp.pop %v2438
    %v2440 = vmul.f32 1.0, %v2439
    %v2441 = vpack.c.bf16 %v2440, %v2440
    %v2442 = vunpack.c.l.bf16 %v2441
    %v2443 = vsub.f32 %v2440, %v2442
    %v2444 = vpack.c.bf16 %v2443, %v2443
    %v2446 = vsel %vm1497, %v2444, 0
    %v2449 = vsel %vm1497, %v351, 0
    %v2452 = vsel %vm1497, %v352, 0
    %v2455 = vsel %vm1497, %v353, 0
    %v2458 = vsel %vm1497, %v354, 0
    %v2461 = vsel %vm1497, %v355, 0
    %v2464 = vsel %vm1497, %v356, 0
    %v2467 = vsel %vm1497, %v357, 0
    %v2470 = vsel %vm1497, %v358, 0
    %v2473 = vsel %vm1497, %v359, 0
    %v2476 = vsel %vm1497, %v360, 0
    %v2479 = vsel %vm1497, %v361, 0
    %v2482 = vsel %vm1497, %v362, 0
    %v2485 = vsel %vm1497, %v363, 0
    %v2488 = vsel %vm1497, %v364, 0
    %v2491 = vsel %vm1497, %v365, 0
    %v2494 = vsel %vm1497, %v366, 0
    %2496 = vmatprep.subr.bf16.mxu0 0
    %2497 = vmatpush1.bf16.xpose.msra.mxu0 %v2470
    %2498 = vmatprep.subr.bf16.mxu0 0
    %2499 = vmatpush1.bf16.xpose.msra.mxu0 %v2467
    %2500 = vmatprep.subr.bf16.mxu0 0
    %2501 = vmatpush1.bf16.xpose.msra.mxu0 %v2464
    %2502 = vmatprep.subr.bf16.mxu0 0
    %2503 = vmatpush1.bf16.xpose.msra.mxu0 %v2461
    %2504 = vmatprep.subr.bf16.mxu0 0
    %2505 = vmatpush1.bf16.xpose.msra.mxu0 %v2458
    %2506 = vmatprep.subr.bf16.mxu0 0
    %2507 = vmatpush1.bf16.xpose.msra.mxu0 %v2455
    %2508 = vmatprep.subr.bf16.mxu0 0
    %2509 = vmatpush1.bf16.xpose.msra.mxu0 %v2452
    %2510 = vmatprep.subr.bf16.mxu0 0
    %2511 = vmatpush1.bf16.xpose.msra.mxu0 %v2449
    %2512 = vmatprep.subr.bf16.mxu0 0
    %2513 = vmatpush2.bf16.xpose.msra.mxu0 %v2494
    %2514 = vmatprep.subr.bf16.mxu0 0
    %2515 = vmatpush2.bf16.xpose.msra.mxu0 %v2491
    %2516 = vmatprep.subr.bf16.mxu0 0
    %2517 = vmatpush2.bf16.xpose.msra.mxu0 %v2488
    %2518 = vmatprep.subr.bf16.mxu0 0
    %2519 = vmatpush2.bf16.xpose.msra.mxu0 %v2485
    %2520 = vmatprep.subr.bf16.mxu0 0
    %2521 = vmatpush2.bf16.xpose.msra.mxu0 %v2482
    %2522 = vmatprep.subr.bf16.mxu0 0
    %2523 = vmatpush2.bf16.xpose.msra.mxu0 %v2479
    %2524 = vmatprep.subr.bf16.mxu0 0
    %2525 = vmatpush2.bf16.xpose.msra.mxu0 %v2476
    %2526 = vmatprep.subr.bf16.mxu0 0
    %2527 = vmatpush2.bf16.xpose.msra.mxu0 %v2473
    %2528 = vmatprep.mubr.bf16.mxu0 0
    %2529 = vmatmul.mubr.bf16.gmra.mxu0 %v2446
    %v2530 = vpop.f32.mrf.mxu0
    %v2531 = vadd.f32 0.0, %v2530
    %v2532 = vpop.f32.mrf.mxu0
    %v2533 = vadd.f32 0.0, %v2532
    %v2534 = vpop.f32.mrf.mxu0
    %v2535 = vpop.f32.mrf.mxu0
    %2536 = vdwg.mxu0
    %v2538 = vsel %vm1497, %v2441, 0
    %2540 = vmatprep.subr.bf16.mxu0 0
    %2541 = vmatpush1.bf16.xpose.msra.mxu0 %v2470
    %2542 = vmatprep.subr.bf16.mxu0 0
    %2543 = vmatpush1.bf16.xpose.msra.mxu0 %v2467
    %2544 = vmatprep.subr.bf16.mxu0 0
    %2545 = vmatpush1.bf16.xpose.msra.mxu0 %v2464
    %2546 = vmatprep.subr.bf16.mxu0 0
    %2547 = vmatpush1.bf16.xpose.msra.mxu0 %v2461
    %2548 = vmatprep.subr.bf16.mxu0 0
    %2549 = vmatpush1.bf16.xpose.msra.mxu0 %v2458
    %2550 = vmatprep.subr.bf16.mxu0 0
    %2551 = vmatpush1.bf16.xpose.msra.mxu0 %v2455
    %2552 = vmatprep.subr.bf16.mxu0 0
    %2553 = vmatpush1.bf16.xpose.msra.mxu0 %v2452
    %2554 = vmatprep.subr.bf16.mxu0 0
    %2555 = vmatpush1.bf16.xpose.msra.mxu0 %v2449
    %2556 = vmatprep.subr.bf16.mxu0 0
    %2557 = vmatpush2.bf16.xpose.msra.mxu0 %v2494
    %2558 = vmatprep.subr.bf16.mxu0 0
    %2559 = vmatpush2.bf16.xpose.msra.mxu0 %v2491
    %2560 = vmatprep.subr.bf16.mxu0 0
    %2561 = vmatpush2.bf16.xpose.msra.mxu0 %v2488
    %2562 = vmatprep.subr.bf16.mxu0 0
    %2563 = vmatpush2.bf16.xpose.msra.mxu0 %v2485
    %2564 = vmatprep.subr.bf16.mxu0 0
    %2565 = vmatpush2.bf16.xpose.msra.mxu0 %v2482
    %2566 = vmatprep.subr.bf16.mxu0 0
    %2567 = vmatpush2.bf16.xpose.msra.mxu0 %v2479
    %2568 = vmatprep.subr.bf16.mxu0 0
    %2569 = vmatpush2.bf16.xpose.msra.mxu0 %v2476
    %2570 = vmatprep.subr.bf16.mxu0 0
    %2571 = vmatpush2.bf16.xpose.msra.mxu0 %v2473
    %2572 = vmatprep.mubr.bf16.mxu0 0
    %2573 = vmatmul.mubr.bf16.gmra.mxu0 %v2538
    %v2574 = vpop.f32.mrf.mxu0
    %v2575 = vadd.f32 %v2531, %v2574
    %v2576 = vpop.f32.mrf.mxu0
    %v2577 = vadd.f32 %v2533, %v2576
    %v2578 = vpop.f32.mrf.mxu0
    %v2579 = vpop.f32.mrf.mxu0
    %2580 = vdwg.mxu0
    %v2581 = vmul.f32 %v37, %v2575
    %v2582 = vmul.f32 %v38, %v2577
    %v2583 = vpack.c.bf16 %v1965, %v1965
    %v2584 = vunpack.c.l.bf16 %v2583
    %v2585 = vsub.f32 %v1965, %v2584
    %v2586 = vpack.c.bf16 %v2585, %v2585
    %v2588 = vsel %vm1497, %v2586, 0
    %v2591 = vsel %vm1497, %v175, 0
    %v2594 = vsel %vm1497, %v176, 0
    %v2597 = vsel %vm1497, %v177, 0
    %v2600 = vsel %vm1497, %v178, 0
    %v2603 = vsel %vm1497, %v179, 0
    %v2606 = vsel %vm1497, %v180, 0
    %v2609 = vsel %vm1497, %v181, 0
    %v2612 = vsel %vm1497, %v182, 0
    %v2615 = vsel %vm1497, %v183, 0
    %v2618 = vsel %vm1497, %v184, 0
    %v2621 = vsel %vm1497, %v185, 0
    %v2624 = vsel %vm1497, %v186, 0
    %v2627 = vsel %vm1497, %v187, 0
    %v2630 = vsel %vm1497, %v188, 0
    %v2633 = vsel %vm1497, %v189, 0
    %v2636 = vsel %vm1497, %v190, 0
    %2638 = vmatprep.subr.bf16.mxu0 0
    %2639 = vmatpush1.bf16.xpose.msra.mxu0 %v2612
    %2640 = vmatprep.subr.bf16.mxu0 0
    %2641 = vmatpush1.bf16.xpose.msra.mxu0 %v2609
    %2642 = vmatprep.subr.bf16.mxu0 0
    %2643 = vmatpush1.bf16.xpose.msra.mxu0 %v2606
    %2644 = vmatprep.subr.bf16.mxu0 0
    %2645 = vmatpush1.bf16.xpose.msra.mxu0 %v2603
    %2646 = vmatprep.subr.bf16.mxu0 0
    %2647 = vmatpush1.bf16.xpose.msra.mxu0 %v2600
    %2648 = vmatprep.subr.bf16.mxu0 0
    %2649 = vmatpush1.bf16.xpose.msra.mxu0 %v2597
    %2650 = vmatprep.subr.bf16.mxu0 0
    %2651 = vmatpush1.bf16.xpose.msra.mxu0 %v2594
    %2652 = vmatprep.subr.bf16.mxu0 0
    %2653 = vmatpush1.bf16.xpose.msra.mxu0 %v2591
    %2654 = vmatprep.subr.bf16.mxu0 0
    %2655 = vmatpush2.bf16.xpose.msra.mxu0 %v2636
    %2656 = vmatprep.subr.bf16.mxu0 0
    %2657 = vmatpush2.bf16.xpose.msra.mxu0 %v2633
    %2658 = vmatprep.subr.bf16.mxu0 0
    %2659 = vmatpush2.bf16.xpose.msra.mxu0 %v2630
    %2660 = vmatprep.subr.bf16.mxu0 0
    %2661 = vmatpush2.bf16.xpose.msra.mxu0 %v2627
    %2662 = vmatprep.subr.bf16.mxu0 0
    %2663 = vmatpush2.bf16.xpose.msra.mxu0 %v2624
    %2664 = vmatprep.subr.bf16.mxu0 0
    %2665 = vmatpush2.bf16.xpose.msra.mxu0 %v2621
    %2666 = vmatprep.subr.bf16.mxu0 0
    %2667 = vmatpush2.bf16.xpose.msra.mxu0 %v2618
    %2668 = vmatprep.subr.bf16.mxu0 0
    %2669 = vmatpush2.bf16.xpose.msra.mxu0 %v2615
    %2670 = vmatprep.mubr.bf16.mxu0 0
    %2671 = vmatmul.mubr.bf16.gmra.mxu0 %v2588
    %v2672 = vpop.f32.mrf.mxu0
    %v2673 = vadd.f32 0.0, %v2672
    %v2674 = vpop.f32.mrf.mxu0
    %v2675 = vadd.f32 0.0, %v2674
    %v2676 = vpop.f32.mrf.mxu0
    %v2677 = vpop.f32.mrf.mxu0
    %2678 = vdwg.mxu0
    %v2680 = vsel %vm1497, %v2583, 0
    %2682 = vmatprep.subr.bf16.mxu0 0
    %2683 = vmatpush1.bf16.xpose.msra.mxu0 %v2612
    %2684 = vmatprep.subr.bf16.mxu0 0
    %2685 = vmatpush1.bf16.xpose.msra.mxu0 %v2609
    %2686 = vmatprep.subr.bf16.mxu0 0
    %2687 = vmatpush1.bf16.xpose.msra.mxu0 %v2606
    %2688 = vmatprep.subr.bf16.mxu0 0
    %2689 = vmatpush1.bf16.xpose.msra.mxu0 %v2603
    %2690 = vmatprep.subr.bf16.mxu0 0
    %2691 = vmatpush1.bf16.xpose.msra.mxu0 %v2600
    %2692 = vmatprep.subr.bf16.mxu0 0
    %2693 = vmatpush1.bf16.xpose.msra.mxu0 %v2597
    %2694 = vmatprep.subr.bf16.mxu0 0
    %2695 = vmatpush1.bf16.xpose.msra.mxu0 %v2594
    %2696 = vmatprep.subr.bf16.mxu0 0
    %2697 = vmatpush1.bf16.xpose.msra.mxu0 %v2591
    %2698 = vmatprep.subr.bf16.mxu0 0
    %2699 = vmatpush2.bf16.xpose.msra.mxu0 %v2636
    %2700 = vmatprep.subr.bf16.mxu0 0
    %2701 = vmatpush2.bf16.xpose.msra.mxu0 %v2633
    %2702 = vmatprep.subr.bf16.mxu0 0
    %2703 = vmatpush2.bf16.xpose.msra.mxu0 %v2630
    %2704 = vmatprep.subr.bf16.mxu0 0
    %2705 = vmatpush2.bf16.xpose.msra.mxu0 %v2627
    %2706 = vmatprep.subr.bf16.mxu0 0
    %2707 = vmatpush2.bf16.xpose.msra.mxu0 %v2624
    %2708 = vmatprep.subr.bf16.mxu0 0
    %2709 = vmatpush2.bf16.xpose.msra.mxu0 %v2621
    %2710 = vmatprep.subr.bf16.mxu0 0
    %2711 = vmatpush2.bf16.xpose.msra.mxu0 %v2618
    %2712 = vmatprep.subr.bf16.mxu0 0
    %2713 = vmatpush2.bf16.xpose.msra.mxu0 %v2615
    %2714 = vmatprep.mubr.bf16.mxu0 0
    %2715 = vmatmul.mubr.bf16.gmra.mxu0 %v2680
    %v2716 = vpop.f32.mrf.mxu0
    %v2717 = vadd.f32 %v2673, %v2716
    %v2718 = vpop.f32.mrf.mxu0
    %v2719 = vadd.f32 %v2675, %v2718
    %v2720 = vpop.f32.mrf.mxu0
    %v2721 = vpop.f32.mrf.mxu0
    %2722 = vdwg.mxu0
    %v2723 = vmul.f32 %v2581, %v2717
    %v2724 = vmul.f32 %v2582, %v2719
    %2725 = vst [vmem:[#allocation2] sm:$0xff] %v2723
    %2726 = vst [vmem:[#allocation2 + $0x8] sm:$0xff] %v2724
    // Predicated region
    $region42: #{tpu_custom_call.1} parent=1 // pred_check
      _
    $region43: #{tpu_custom_call.1} parent=1 // pred_check_branch
      %2728 = sbr.rel (0) target = $region45
    $region44: #{tpu_custom_call.1} parent=1 // pred_region
      %s2730 = ssub.s32 256, 256
      %2731 = vsyncadd [#allocation3], %s2730
      %s2733 = sshll.u32 [#allocation2], 4
      %s2734 = int_to_ptr.vmem [resolvable:$true] %s2733
      %2736 = dma.vmem_to_hbm [thread:$0]  %s2734, 256, %s10, [#allocation3]
    $region45: #{tpu_custom_call.1} parent=1 // pred_fallthru
      _
    // Predicated region
    $region46: #{tpu_custom_call.1} parent=1 // pred_check
      _
    $region47: #{tpu_custom_call.1} parent=1 // pred_check_branch
      %2738 = sbr.rel (0) target = $region49
    $region48: #{tpu_custom_call.1} parent=1 // pred_region
      %2739 = dma.done [#allocation3], 256
    $region49: #{tpu_custom_call.1} parent=1 // pred_fallthru
      _
    %2740 = vsyncpa [#allocation3], 1

</llo_original>
